<compile_context>
chip_gen: v7x
topology: tpu7x:2x2x1
jax: 0.10.0
libtpu: 0.0.40
codegen_flags: <defaults>
</compile_context>

<pallas_src>
import functools

import jax
import jax.numpy as jnp
from jax.experimental import pallas as pl
from jax.experimental.pallas import tpu as pltpu


# ----------------------------- Pallas kernel -------------------------------

def _transformer_layer_kernel(x_ref, wqkv_ref, bqkv_ref, wo_ref, bo_ref,
                              g_ref, beta_ref, w1_ref, b1_ref, w2_ref, b2_ref,
                              o_ref, *, heads, eps):
    BB, S, D = x_ref.shape
    d_k = D // heads
    cdt = wqkv_ref.dtype                    # compute dtype taken from weights
    f32 = jnp.float32

    # Weights: constant block index across the grid -> fetched once.
    wqkv = wqkv_ref[...]                    # (D, 3D)  [ wq*scale | wk | wv ]
    bqkv = bqkv_ref[...]                    # (1, 3D)  f32 (scale folded into bq)
    wo = wo_ref[...]                        # (D, D)
    bo = bo_ref[...]                        # (1, D)   f32

    def split_heads(t):                     # (S, D) -> (H, S, d_k)
        return t.reshape(S, heads, d_k).transpose(1, 0, 2)

    def mha(t):                             # t: (BB*S, D) f32 ; q = k = v = t
        # One full-width QKV matmul (M = BB*S, N = 3D) instead of per-head bmm.
        qkv = jnp.dot(t.astype(cdt), wqkv,
                      preferred_element_type=f32) + bqkv          # (BB*S, 3D)
        outs = []
        for b in range(BB):                 # static unroll over batch block
            qkv_b = qkv[b * S:(b + 1) * S]                        # (S, 3D)
            q = split_heads(qkv_b[:, 0 * D:1 * D]).astype(cdt)    # (H, S, dk)
            k = split_heads(qkv_b[:, 1 * D:2 * D]).astype(cdt)
            v = split_heads(qkv_b[:, 2 * D:3 * D]).astype(cdt)
            s = jnp.einsum('hqd,hkd->hqk', q, k,
                           preferred_element_type=f32)            # (H, S, S)
            s = s - jnp.max(s, axis=-1, keepdims=True)
            p = jnp.exp(s)
            p = p * pl.reciprocal(jnp.sum(p, axis=-1, keepdims=True),
                                  approx=True)
            o = jnp.einsum('hqk,hkd->hqd', p.astype(cdt), v,
                           preferred_element_type=f32)            # (H, S, dk)
            # Merge heads back to (S, D) so the output projection runs as one
            # full-depth (S,D)@(D,D) matmul.
            outs.append(o.transpose(1, 0, 2).reshape(S, D))
        o2 = outs[0] if BB == 1 else jnp.concatenate(outs, axis=0)  # (BB*S, D)
        return jnp.dot(o2.astype(cdt), wo,
                       preferred_element_type=f32) + bo             # (BB*S, D)

    x = x_ref[...].reshape(BB * S, D)       # f32, rows = batch*seq
    z = mha(x)                              # z = self_attn(x)
    a = mha(z)                              # self_attn(q=z, k=z, v=z, mask=None)
    xr = x + a                              # x + dropout(a); dropout == identity

    # norm_FFN LayerNorm (f32)
    mu = jnp.mean(xr, axis=-1, keepdims=True)
    var = jnp.mean((xr - mu) ** 2, axis=-1, keepdims=True)
    zn = (xr - mu) * jax.lax.rsqrt(var + eps) * g_ref[...] + beta_ref[...]

    # FeedForward: Linear -> ReLU -> Linear (not gated, dropout == identity)
    h = jnp.dot(zn.astype(cdt), w1_ref[...],
                preferred_element_type=f32) + b1_ref[...]
    h = jnp.maximum(h, 0.0)
    y = jnp.dot(h.astype(cdt), w2_ref[...],
                preferred_element_type=f32) + b2_ref[...]

    o_ref[...] = (xr + y).reshape(BB, S, D)


# --------------------------- one-time weight pack ----------------------------

def pack_transformer_params(p, *, heads, compute_dtype=jnp.bfloat16):
    """One-time repack: fuse Q/K/V weights, fold 1/sqrt(d_k) into the q
    columns, cast MXU operands to compute_dtype.  Call once, reuse for every
    forward call."""
    D = p['wq'].shape[0]
    d_k = D // heads
    scale = 1.0 / float(d_k) ** 0.5
    wqkv = jnp.concatenate([p['wq'] * scale, p['wk'], p['wv']], axis=1)  # (D,3D)
    bqkv = jnp.concatenate([p['bq'] * scale, p['bk'], p['bv']], axis=1)  # (1,3D)
    return {
        'wqkv': wqkv.astype(compute_dtype),
        'bqkv': bqkv.astype(jnp.float32),
        'wo': p['wo'].astype(compute_dtype), 'bo': p['bo'],
        'ln_g': p['ln_g'], 'ln_b': p['ln_b'],
        'w1': p['w1'].astype(compute_dtype), 'b1': p['b1'],
        'w2': p['w2'].astype(compute_dtype), 'b2': p['b2'],
    }


# ------------------------------- wrapper ------------------------------------

def _full_spec(shape):
    return pl.BlockSpec(shape, lambda b: (0,) * len(shape))


def transformer_layer(x, packed, *, heads, eps=1e-5, batch_block=None,
                      vmem_limit_bytes=None):
    """Fused TransformerLayer.forward (mask=None, src=None, dropout=identity).

    batch_block=None  -> whole batch in one grid step (best on 1-TC v5e/v6e).
    batch_block=B//2  -> 2-way 'parallel' grid (v7x megacore sharding).
    """
    B, S, D = x.shape
    bb = B if batch_block is None else batch_block
    assert B % bb == 0, "batch_block must divide batch"
    F = packed['w1'].shape[1]

    kernel = functools.partial(_transformer_layer_kernel, heads=heads, eps=eps)
    return pl.pallas_call(
        kernel,
        out_shape=jax.ShapeDtypeStruct((B, S, D), jnp.float32),
        grid=(B // bb,),
        in_specs=[pl.BlockSpec((bb, S, D), lambda b: (b, 0, 0)),   # x
                  _full_spec((D, 3 * D)),                          # wqkv
                  _full_spec((1, 3 * D)),                          # bqkv
                  _full_spec((D, D)),                              # wo
                  _full_spec((1, D)),                              # bo
                  _full_spec((1, D)), _full_spec((1, D)),          # ln gamma/beta
                  _full_spec((D, F)), _full_spec((1, F)),          # w1, b1
                  _full_spec((F, D)), _full_spec((1, D))],         # w2, b2
        out_specs=pl.BlockSpec((bb, S, D), lambda b: (b, 0, 0)),
        compiler_params=pltpu.CompilerParams(
            dimension_semantics=("parallel",),
            vmem_limit_bytes=vmem_limit_bytes),
    )(x, packed['wqkv'], packed['bqkv'], packed['wo'], packed['bo'],
      packed['ln_g'], packed['ln_b'], packed['w1'], packed['b1'],
      packed['w2'], packed['b2'])


# ------------------------- pure-JAX reference -------------------------------

def _ref_mha(x, p, heads):
    B, S, D = x.shape
    d_k = D // heads
    q = x @ p['wq'] + p['bq'][0]
    k = x @ p['wk'] + p['bk'][0]
    v = x @ p['wv'] + p['bv'][0]
    q = q.reshape(B, S, heads, d_k)
    k = k.reshape(B, S, heads, d_k)
    v = v.reshape(B, S, heads, d_k)
    s = jnp.einsum('bqhd,bkhd->bhqk', q, k) / jnp.sqrt(jnp.float32(d_k))
    w = jax.nn.softmax(s, axis=-1)
    o = jnp.einsum('bhqk,bkhd->bqhd', w, v).reshape(B, S, D)
    return o @ p['wo'] + p['bo'][0]


def _ref_forward(x, p, heads, eps=1e-5):
    z = _ref_mha(x, p, heads)
    a = _ref_mha(z, p, heads)
    xr = x + a
    mu = jnp.mean(xr, axis=-1, keepdims=True)
    var = jnp.mean((xr - mu) ** 2, axis=-1, keepdims=True)
    zn = (xr - mu) / jnp.sqrt(var + eps) * p['ln_g'][0] + p['ln_b'][0]
    h = jnp.maximum(zn @ p['w1'] + p['b1'][0], 0.0)
    return xr + (h @ p['w2'] + p['b2'][0])


# --------------------------------- main -------------------------------------

if __name__ == "__main__":
    B, S, D, H, F = 2, 8, 32, 4, 64      # batch, seq, d_model, heads, ffn feat

    key = jax.random.PRNGKey(0)
    ks = jax.random.split(key, 16)

    def init(k, shape, scale=0.1):
        return jax.random.normal(k, shape, dtype=jnp.float32) * scale

    params = {
        'wq': init(ks[0], (D, D)), 'bq': init(ks[1], (1, D)),
        'wk': init(ks[2], (D, D)), 'bk': init(ks[3], (1, D)),
        'wv': init(ks[4], (D, D)), 'bv': init(ks[5], (1, D)),
        'wo': init(ks[6], (D, D)), 'bo': init(ks[7], (1, D)),
        'ln_g': jnp.ones((1, D), jnp.float32),
        'ln_b': jnp.zeros((1, D), jnp.float32),
        'w1': init(ks[8], (D, F)), 'b1': init(ks[9], (1, F)),
        'w2': init(ks[10], (F, D)), 'b2': init(ks[11], (1, D)),
    }

    x = jax.random.normal(ks[12], (B, S, D), dtype=jnp.float32)

    ref = _ref_forward(x, params, H)

    # One-time weight packing (hoisted out of the per-call wrapper).
    packed_f32 = pack_transformer_params(params, heads=H,
                                         compute_dtype=jnp.float32)
    packed_bf16 = pack_transformer_params(params, heads=H)   # bf16 MXU operands

    # f32 MXU-operand path, single-block grid (v5e/v6e-friendly): tight check
    # (tolerance covers the EUP approximate reciprocal in the softmax denom).
    out_f32 = jax.block_until_ready(
        transformer_layer(x, packed_f32, heads=H))
    assert out_f32.shape == (B, S, D)
    assert jnp.allclose(out_f32, ref, atol=1e-2, rtol=1e-2), "f32 path mismatch"

    # Default bf16-operand / f32-accumulate path, 2-way parallel batch grid
    # (v7x megacore split): looser tolerance for bf16 operand rounding.
    out_bf16 = jax.block_until_ready(
        transformer_layer(x, packed_bf16, heads=H, batch_block=1))
    assert out_bf16.shape == (B, S, D)
    assert jnp.allclose(out_bf16, ref, atol=5e-2, rtol=5e-2), "bf16 path mismatch"

    # bf16 path with the whole batch in one block (exercises BB > 1 path).
    out_bf16_1blk = jax.block_until_ready(
        transformer_layer(x, packed_bf16, heads=H))
    assert jnp.allclose(out_bf16_1blk, ref, atol=5e-2, rtol=5e-2), \
        "bf16 single-block mismatch"

    print("KERNEL_OK")
</pallas_src>

<mosaic_0001>
module attributes {stable_mosaic.version = 11 : i64} {
  func.func @_transformer_layer_kernel(%arg0: i32, %arg1: memref<2x8x32xf32, #tpu.memory_space<vmem>>, %arg2: memref<32x96xf32, #tpu.memory_space<vmem>>, %arg3: memref<1x96xf32, #tpu.memory_space<vmem>>, %arg4: memref<32x32xf32, #tpu.memory_space<vmem>>, %arg5: memref<1x32xf32, #tpu.memory_space<vmem>>, %arg6: memref<1x32xf32, #tpu.memory_space<vmem>>, %arg7: memref<1x32xf32, #tpu.memory_space<vmem>>, %arg8: memref<32x64xf32, #tpu.memory_space<vmem>>, %arg9: memref<1x64xf32, #tpu.memory_space<vmem>>, %arg10: memref<64x32xf32, #tpu.memory_space<vmem>>, %arg11: memref<1x32xf32, #tpu.memory_space<vmem>>, %arg12: memref<2x8x32xf32, #tpu.memory_space<vmem>>) attributes {dimension_semantics = [#tpu.dimension_semantics<parallel>], iteration_bounds = array<i64: 1>, scalar_prefetch = 0 : i64, scratch_operands = 0 : i64, tpu.core_type = #tpu.core_type<tc>, window_params = [{transform_indices = @transform_0, window_bounds = array<i64: 2, 8, 32>}, {pipeline_mode = #tpu.pipeline_mode<synchronous>, transform_indices = @transform_1, window_bounds = array<i64: 32, 96>}, {pipeline_mode = #tpu.pipeline_mode<synchronous>, transform_indices = @transform_2, window_bounds = array<i64: 1, 96>}, {pipeline_mode = #tpu.pipeline_mode<synchronous>, transform_indices = @transform_3, window_bounds = array<i64: 32, 32>}, {pipeline_mode = #tpu.pipeline_mode<synchronous>, transform_indices = @transform_4, window_bounds = array<i64: 1, 32>}, {pipeline_mode = #tpu.pipeline_mode<synchronous>, transform_indices = @transform_5, window_bounds = array<i64: 1, 32>}, {pipeline_mode = #tpu.pipeline_mode<synchronous>, transform_indices = @transform_6, window_bounds = array<i64: 1, 32>}, {pipeline_mode = #tpu.pipeline_mode<synchronous>, transform_indices = @transform_7, window_bounds = array<i64: 32, 64>}, {pipeline_mode = #tpu.pipeline_mode<synchronous>, transform_indices = @transform_8, window_bounds = array<i64: 1, 64>}, {pipeline_mode = #tpu.pipeline_mode<synchronous>, transform_indices = @transform_9, window_bounds = array<i64: 64, 32>}, {pipeline_mode = #tpu.pipeline_mode<synchronous>, transform_indices = @transform_10, window_bounds = array<i64: 1, 32>}, {transform_indices = @transform_11, window_bounds = array<i64: 2, 8, 32>}]} {
    %c0 = arith.constant 0 : index
    %c0_0 = arith.constant 0 : index
    %0 = vector.load %arg2[%c0, %c0_0] : memref<32x96xf32, #tpu.memory_space<vmem>>, vector<32x96xf32>
    %c0_1 = arith.constant 0 : index
    %c0_2 = arith.constant 0 : index
    %1 = vector.load %arg3[%c0_1, %c0_2] : memref<1x96xf32, #tpu.memory_space<vmem>>, vector<1x96xf32>
    %c0_3 = arith.constant 0 : index
    %c0_4 = arith.constant 0 : index
    %2 = vector.load %arg4[%c0_3, %c0_4] : memref<32x32xf32, #tpu.memory_space<vmem>>, vector<32x32xf32>
    %c0_5 = arith.constant 0 : index
    %c0_6 = arith.constant 0 : index
    %3 = vector.load %arg5[%c0_5, %c0_6] : memref<1x32xf32, #tpu.memory_space<vmem>>, vector<1x32xf32>
    %c0_7 = arith.constant 0 : index
    %c0_8 = arith.constant 0 : index
    %c0_9 = arith.constant 0 : index
    %4 = vector.load %arg1[%c0_7, %c0_8, %c0_9] : memref<2x8x32xf32, #tpu.memory_space<vmem>>, vector<2x8x32xf32>
    %5 = vector.shape_cast %4 : vector<2x8x32xf32> to vector<16x32xf32>
    %cst = arith.constant dense<0.000000e+00> : vector<16x96xf32>
    %6 = tpu.matmul %5, %0, %cst {dimension_numbers = #tpu.dot_dimension_numbers<[1], [0], [0], [1], [0, 0, 1, 1], [], []>} : vector<16x32xf32>, vector<32x96xf32>, vector<16x96xf32> -> vector<16x96xf32>
    %7 = vector.broadcast %1 : vector<1x96xf32> to vector<16x96xf32>
    %8 = arith.addf %6, %7 : vector<16x96xf32>
    %9 = vector.extract_strided_slice %8 {offsets = [0, 0], sizes = [8, 96], strides = [1, 1]} : vector<16x96xf32> to vector<8x96xf32>
    %10 = vector.extract_strided_slice %9 {offsets = [0, 0], sizes = [8, 32], strides = [1, 1]} : vector<8x96xf32> to vector<8x32xf32>
    %11 = vector.shape_cast %10 : vector<8x32xf32> to vector<8x4x8xf32>
    %12 = tpu.transpose %11, [1, 0, 2] : vector<8x4x8xf32> -> vector<4x8x8xf32>
    %13 = vector.extract_strided_slice %9 {offsets = [0, 32], sizes = [8, 32], strides = [1, 1]} : vector<8x96xf32> to vector<8x32xf32>
    %14 = vector.shape_cast %13 : vector<8x32xf32> to vector<8x4x8xf32>
    %15 = tpu.transpose %14, [1, 0, 2] : vector<8x4x8xf32> -> vector<4x8x8xf32>
    %16 = vector.extract_strided_slice %9 {offsets = [0, 64], sizes = [8, 32], strides = [1, 1]} : vector<8x96xf32> to vector<8x32xf32>
    %17 = vector.shape_cast %16 : vector<8x32xf32> to vector<8x4x8xf32>
    %18 = tpu.transpose %17, [1, 0, 2] : vector<8x4x8xf32> -> vector<4x8x8xf32>
    "tpu.trace_start"() <{level = 10 : i32, message = "hqd,hkd->hqk"}> : () -> ()
    %cst_10 = arith.constant dense<0.000000e+00> : vector<4x8x8xf32>
    %19 = tpu.matmul %12, %15, %cst_10 {dimension_numbers = #tpu.dot_dimension_numbers<[2], [2], [1], [1], [0, 0, 0, 1, 1, 1], [0], [0]>} : vector<4x8x8xf32>, vector<4x8x8xf32>, vector<4x8x8xf32> -> vector<4x8x8xf32>
    "tpu.trace_stop"() : () -> ()
    %cst_11 = arith.constant dense<0xFF800000> : vector<4x8xf32>
    %20 = vector.multi_reduction <maximumf>, %19, %cst_11 [2] : vector<4x8x8xf32> to vector<4x8xf32>
    %21 = vector.shape_cast %20 : vector<4x8xf32> to vector<4x8x1xf32>
    %22 = vector.broadcast %21 : vector<4x8x1xf32> to vector<4x8x8xf32>
    %23 = arith.subf %19, %22 : vector<4x8x8xf32>
    %24 = math.exp %23 : vector<4x8x8xf32>
    %cst_12 = arith.constant dense<0.000000e+00> : vector<4x8xf32>
    %25 = vector.multi_reduction <add>, %24, %cst_12 [2] : vector<4x8x8xf32> to vector<4x8xf32>
    %26 = vector.shape_cast %25 : vector<4x8xf32> to vector<4x8x1xf32>
    %27 = tpu.reciprocal %26 {approx = true} : vector<4x8x1xf32> -> vector<4x8x1xf32>
    %28 = vector.broadcast %27 : vector<4x8x1xf32> to vector<4x8x8xf32>
    %29 = arith.mulf %24, %28 : vector<4x8x8xf32>
    "tpu.trace_start"() <{level = 10 : i32, message = "hqk,hkd->hqd"}> : () -> ()
    %cst_13 = arith.constant dense<0.000000e+00> : vector<4x8x8xf32>
    %30 = tpu.matmul %29, %18, %cst_13 {dimension_numbers = #tpu.dot_dimension_numbers<[2], [1], [1], [2], [0, 0, 0, 1, 1, 2], [0], [0]>} : vector<4x8x8xf32>, vector<4x8x8xf32>, vector<4x8x8xf32> -> vector<4x8x8xf32>
    "tpu.trace_stop"() : () -> ()
    %31 = tpu.transpose %30, [1, 0, 2] : vector<4x8x8xf32> -> vector<8x4x8xf32>
    %32 = vector.shape_cast %31 : vector<8x4x8xf32> to vector<8x32xf32>
    %33 = vector.extract_strided_slice %8 {offsets = [8, 0], sizes = [8, 96], strides = [1, 1]} : vector<16x96xf32> to vector<8x96xf32>
    %34 = vector.extract_strided_slice %33 {offsets = [0, 0], sizes = [8, 32], strides = [1, 1]} : vector<8x96xf32> to vector<8x32xf32>
    %35 = vector.shape_cast %34 : vector<8x32xf32> to vector<8x4x8xf32>
    %36 = tpu.transpose %35, [1, 0, 2] : vector<8x4x8xf32> -> vector<4x8x8xf32>
    %37 = vector.extract_strided_slice %33 {offsets = [0, 32], sizes = [8, 32], strides = [1, 1]} : vector<8x96xf32> to vector<8x32xf32>
    %38 = vector.shape_cast %37 : vector<8x32xf32> to vector<8x4x8xf32>
    %39 = tpu.transpose %38, [1, 0, 2] : vector<8x4x8xf32> -> vector<4x8x8xf32>
    %40 = vector.extract_strided_slice %33 {offsets = [0, 64], sizes = [8, 32], strides = [1, 1]} : vector<8x96xf32> to vector<8x32xf32>
    %41 = vector.shape_cast %40 : vector<8x32xf32> to vector<8x4x8xf32>
    %42 = tpu.transpose %41, [1, 0, 2] : vector<8x4x8xf32> -> vector<4x8x8xf32>
    "tpu.trace_start"() <{level = 10 : i32, message = "hqd,hkd->hqk"}> : () -> ()
    %cst_14 = arith.constant dense<0.000000e+00> : vector<4x8x8xf32>
    %43 = tpu.matmul %36, %39, %cst_14 {dimension_numbers = #tpu.dot_dimension_numbers<[2], [2], [1], [1], [0, 0, 0, 1, 1, 1], [0], [0]>} : vector<4x8x8xf32>, vector<4x8x8xf32>, vector<4x8x8xf32> -> vector<4x8x8xf32>
    "tpu.trace_stop"() : () -> ()
    %cst_15 = arith.constant dense<0xFF800000> : vector<4x8xf32>
    %44 = vector.multi_reduction <maximumf>, %43, %cst_15 [2] : vector<4x8x8xf32> to vector<4x8xf32>
    %45 = vector.shape_cast %44 : vector<4x8xf32> to vector<4x8x1xf32>
    %46 = vector.broadcast %45 : vector<4x8x1xf32> to vector<4x8x8xf32>
    %47 = arith.subf %43, %46 : vector<4x8x8xf32>
    %48 = math.exp %47 : vector<4x8x8xf32>
    %cst_16 = arith.constant dense<0.000000e+00> : vector<4x8xf32>
    %49 = vector.multi_reduction <add>, %48, %cst_16 [2] : vector<4x8x8xf32> to vector<4x8xf32>
    %50 = vector.shape_cast %49 : vector<4x8xf32> to vector<4x8x1xf32>
    %51 = tpu.reciprocal %50 {approx = true} : vector<4x8x1xf32> -> vector<4x8x1xf32>
    %52 = vector.broadcast %51 : vector<4x8x1xf32> to vector<4x8x8xf32>
    %53 = arith.mulf %48, %52 : vector<4x8x8xf32>
    "tpu.trace_start"() <{level = 10 : i32, message = "hqk,hkd->hqd"}> : () -> ()
    %cst_17 = arith.constant dense<0.000000e+00> : vector<4x8x8xf32>
    %54 = tpu.matmul %53, %42, %cst_17 {dimension_numbers = #tpu.dot_dimension_numbers<[2], [1], [1], [2], [0, 0, 0, 1, 1, 2], [0], [0]>} : vector<4x8x8xf32>, vector<4x8x8xf32>, vector<4x8x8xf32> -> vector<4x8x8xf32>
    "tpu.trace_stop"() : () -> ()
    %55 = tpu.transpose %54, [1, 0, 2] : vector<4x8x8xf32> -> vector<8x4x8xf32>
    %56 = vector.shape_cast %55 : vector<8x4x8xf32> to vector<8x32xf32>
    %57 = tpu.concatenate %32, %56 in 0 : vector<8x32xf32>, vector<8x32xf32> -> vector<16x32xf32>
    %cst_18 = arith.constant dense<0.000000e+00> : vector<16x32xf32>
    %58 = tpu.matmul %57, %2, %cst_18 {dimension_numbers = #tpu.dot_dimension_numbers<[1], [0], [0], [1], [0, 0, 1, 1], [], []>} : vector<16x32xf32>, vector<32x32xf32>, vector<16x32xf32> -> vector<16x32xf32>
    %59 = vector.broadcast %3 : vector<1x32xf32> to vector<16x32xf32>
    %60 = arith.addf %58, %59 : vector<16x32xf32>
    %cst_19 = arith.constant dense<0.000000e+00> : vector<16x96xf32>
    %61 = tpu.matmul %60, %0, %cst_19 {dimension_numbers = #tpu.dot_dimension_numbers<[1], [0], [0], [1], [0, 0, 1, 1], [], []>} : vector<16x32xf32>, vector<32x96xf32>, vector<16x96xf32> -> vector<16x96xf32>
    %62 = vector.broadcast %1 : vector<1x96xf32> to vector<16x96xf32>
    %63 = arith.addf %61, %62 : vector<16x96xf32>
    %64 = vector.extract_strided_slice %63 {offsets = [0, 0], sizes = [8, 96], strides = [1, 1]} : vector<16x96xf32> to vector<8x96xf32>
    %65 = vector.extract_strided_slice %64 {offsets = [0, 0], sizes = [8, 32], strides = [1, 1]} : vector<8x96xf32> to vector<8x32xf32>
    %66 = vector.shape_cast %65 : vector<8x32xf32> to vector<8x4x8xf32>
    %67 = tpu.transpose %66, [1, 0, 2] : vector<8x4x8xf32> -> vector<4x8x8xf32>
    %68 = vector.extract_strided_slice %64 {offsets = [0, 32], sizes = [8, 32], strides = [1, 1]} : vector<8x96xf32> to vector<8x32xf32>
    %69 = vector.shape_cast %68 : vector<8x32xf32> to vector<8x4x8xf32>
    %70 = tpu.transpose %69, [1, 0, 2] : vector<8x4x8xf32> -> vector<4x8x8xf32>
    %71 = vector.extract_strided_slice %64 {offsets = [0, 64], sizes = [8, 32], strides = [1, 1]} : vector<8x96xf32> to vector<8x32xf32>
    %72 = vector.shape_cast %71 : vector<8x32xf32> to vector<8x4x8xf32>
    %73 = tpu.transpose %72, [1, 0, 2] : vector<8x4x8xf32> -> vector<4x8x8xf32>
    "tpu.trace_start"() <{level = 10 : i32, message = "hqd,hkd->hqk"}> : () -> ()
    %cst_20 = arith.constant dense<0.000000e+00> : vector<4x8x8xf32>
    %74 = tpu.matmul %67, %70, %cst_20 {dimension_numbers = #tpu.dot_dimension_numbers<[2], [2], [1], [1], [0, 0, 0, 1, 1, 1], [0], [0]>} : vector<4x8x8xf32>, vector<4x8x8xf32>, vector<4x8x8xf32> -> vector<4x8x8xf32>
    "tpu.trace_stop"() : () -> ()
    %cst_21 = arith.constant dense<0xFF800000> : vector<4x8xf32>
    %75 = vector.multi_reduction <maximumf>, %74, %cst_21 [2] : vector<4x8x8xf32> to vector<4x8xf32>
    %76 = vector.shape_cast %75 : vector<4x8xf32> to vector<4x8x1xf32>
    %77 = vector.broadcast %76 : vector<4x8x1xf32> to vector<4x8x8xf32>
    %78 = arith.subf %74, %77 : vector<4x8x8xf32>
    %79 = math.exp %78 : vector<4x8x8xf32>
    %cst_22 = arith.constant dense<0.000000e+00> : vector<4x8xf32>
    %80 = vector.multi_reduction <add>, %79, %cst_22 [2] : vector<4x8x8xf32> to vector<4x8xf32>
    %81 = vector.shape_cast %80 : vector<4x8xf32> to vector<4x8x1xf32>
    %82 = tpu.reciprocal %81 {approx = true} : vector<4x8x1xf32> -> vector<4x8x1xf32>
    %83 = vector.broadcast %82 : vector<4x8x1xf32> to vector<4x8x8xf32>
    %84 = arith.mulf %79, %83 : vector<4x8x8xf32>
    "tpu.trace_start"() <{level = 10 : i32, message = "hqk,hkd->hqd"}> : () -> ()
    %cst_23 = arith.constant dense<0.000000e+00> : vector<4x8x8xf32>
    %85 = tpu.matmul %84, %73, %cst_23 {dimension_numbers = #tpu.dot_dimension_numbers<[2], [1], [1], [2], [0, 0, 0, 1, 1, 2], [0], [0]>} : vector<4x8x8xf32>, vector<4x8x8xf32>, vector<4x8x8xf32> -> vector<4x8x8xf32>
    "tpu.trace_stop"() : () -> ()
    %86 = tpu.transpose %85, [1, 0, 2] : vector<4x8x8xf32> -> vector<8x4x8xf32>
    %87 = vector.shape_cast %86 : vector<8x4x8xf32> to vector<8x32xf32>
    %88 = vector.extract_strided_slice %63 {offsets = [8, 0], sizes = [8, 96], strides = [1, 1]} : vector<16x96xf32> to vector<8x96xf32>
    %89 = vector.extract_strided_slice %88 {offsets = [0, 0], sizes = [8, 32], strides = [1, 1]} : vector<8x96xf32> to vector<8x32xf32>
    %90 = vector.shape_cast %89 : vector<8x32xf32> to vector<8x4x8xf32>
    %91 = tpu.transpose %90, [1, 0, 2] : vector<8x4x8xf32> -> vector<4x8x8xf32>
    %92 = vector.extract_strided_slice %88 {offsets = [0, 32], sizes = [8, 32], strides = [1, 1]} : vector<8x96xf32> to vector<8x32xf32>
    %93 = vector.shape_cast %92 : vector<8x32xf32> to vector<8x4x8xf32>
    %94 = tpu.transpose %93, [1, 0, 2] : vector<8x4x8xf32> -> vector<4x8x8xf32>
    %95 = vector.extract_strided_slice %88 {offsets = [0, 64], sizes = [8, 32], strides = [1, 1]} : vector<8x96xf32> to vector<8x32xf32>
    %96 = vector.shape_cast %95 : vector<8x32xf32> to vector<8x4x8xf32>
    %97 = tpu.transpose %96, [1, 0, 2] : vector<8x4x8xf32> -> vector<4x8x8xf32>
    "tpu.trace_start"() <{level = 10 : i32, message = "hqd,hkd->hqk"}> : () -> ()
    %cst_24 = arith.constant dense<0.000000e+00> : vector<4x8x8xf32>
    %98 = tpu.matmul %91, %94, %cst_24 {dimension_numbers = #tpu.dot_dimension_numbers<[2], [2], [1], [1], [0, 0, 0, 1, 1, 1], [0], [0]>} : vector<4x8x8xf32>, vector<4x8x8xf32>, vector<4x8x8xf32> -> vector<4x8x8xf32>
    "tpu.trace_stop"() : () -> ()
    %cst_25 = arith.constant dense<0xFF800000> : vector<4x8xf32>
    %99 = vector.multi_reduction <maximumf>, %98, %cst_25 [2] : vector<4x8x8xf32> to vector<4x8xf32>
    %100 = vector.shape_cast %99 : vector<4x8xf32> to vector<4x8x1xf32>
    %101 = vector.broadcast %100 : vector<4x8x1xf32> to vector<4x8x8xf32>
    %102 = arith.subf %98, %101 : vector<4x8x8xf32>
    %103 = math.exp %102 : vector<4x8x8xf32>
    %cst_26 = arith.constant dense<0.000000e+00> : vector<4x8xf32>
    %104 = vector.multi_reduction <add>, %103, %cst_26 [2] : vector<4x8x8xf32> to vector<4x8xf32>
    %105 = vector.shape_cast %104 : vector<4x8xf32> to vector<4x8x1xf32>
    %106 = tpu.reciprocal %105 {approx = true} : vector<4x8x1xf32> -> vector<4x8x1xf32>
    %107 = vector.broadcast %106 : vector<4x8x1xf32> to vector<4x8x8xf32>
    %108 = arith.mulf %103, %107 : vector<4x8x8xf32>
    "tpu.trace_start"() <{level = 10 : i32, message = "hqk,hkd->hqd"}> : () -> ()
    %cst_27 = arith.constant dense<0.000000e+00> : vector<4x8x8xf32>
    %109 = tpu.matmul %108, %97, %cst_27 {dimension_numbers = #tpu.dot_dimension_numbers<[2], [1], [1], [2], [0, 0, 0, 1, 1, 2], [0], [0]>} : vector<4x8x8xf32>, vector<4x8x8xf32>, vector<4x8x8xf32> -> vector<4x8x8xf32>
    "tpu.trace_stop"() : () -> ()
    %110 = tpu.transpose %109, [1, 0, 2] : vector<4x8x8xf32> -> vector<8x4x8xf32>
    %111 = vector.shape_cast %110 : vector<8x4x8xf32> to vector<8x32xf32>
    %112 = tpu.concatenate %87, %111 in 0 : vector<8x32xf32>, vector<8x32xf32> -> vector<16x32xf32>
    %cst_28 = arith.constant dense<0.000000e+00> : vector<16x32xf32>
    %113 = tpu.matmul %112, %2, %cst_28 {dimension_numbers = #tpu.dot_dimension_numbers<[1], [0], [0], [1], [0, 0, 1, 1], [], []>} : vector<16x32xf32>, vector<32x32xf32>, vector<16x32xf32> -> vector<16x32xf32>
    %114 = vector.broadcast %3 : vector<1x32xf32> to vector<16x32xf32>
    %115 = arith.addf %113, %114 : vector<16x32xf32>
    %116 = arith.addf %5, %115 : vector<16x32xf32>
    %cst_29 = arith.constant dense<0.000000e+00> : vector<16xf32>
    %117 = vector.multi_reduction <add>, %116, %cst_29 [1] : vector<16x32xf32> to vector<16xf32>
    %118 = vector.shape_cast %117 : vector<16xf32> to vector<16x1xf32>
    %cst_30 = arith.constant 3.200000e+01 : f32
    %119 = vector.broadcast %cst_30 : f32 to vector<16x1xf32>
    %120 = arith.divf %118, %119 : vector<16x1xf32>
    %121 = vector.broadcast %120 : vector<16x1xf32> to vector<16x32xf32>
    %122 = arith.subf %116, %121 : vector<16x32xf32>
    %123 = arith.mulf %122, %122 : vector<16x32xf32>
    %cst_31 = arith.constant dense<0.000000e+00> : vector<16xf32>
    %124 = vector.multi_reduction <add>, %123, %cst_31 [1] : vector<16x32xf32> to vector<16xf32>
    %125 = vector.shape_cast %124 : vector<16xf32> to vector<16x1xf32>
    %cst_32 = arith.constant 3.200000e+01 : f32
    %126 = vector.broadcast %cst_32 : f32 to vector<16x1xf32>
    %127 = arith.divf %125, %126 : vector<16x1xf32>
    %128 = vector.broadcast %120 : vector<16x1xf32> to vector<16x32xf32>
    %129 = arith.subf %116, %128 : vector<16x32xf32>
    %cst_33 = arith.constant 9.99999974E-6 : f32
    %130 = vector.broadcast %cst_33 : f32 to vector<16x1xf32>
    %131 = arith.addf %127, %130 : vector<16x1xf32>
    %132 = math.rsqrt %131 : vector<16x1xf32>
    %133 = vector.broadcast %132 : vector<16x1xf32> to vector<16x32xf32>
    %134 = arith.mulf %129, %133 : vector<16x32xf32>
    %c0_34 = arith.constant 0 : index
    %c0_35 = arith.constant 0 : index
    %135 = vector.load %arg6[%c0_34, %c0_35] : memref<1x32xf32, #tpu.memory_space<vmem>>, vector<1x32xf32>
    %136 = vector.broadcast %135 : vector<1x32xf32> to vector<16x32xf32>
    %137 = arith.mulf %134, %136 : vector<16x32xf32>
    %c0_36 = arith.constant 0 : index
    %c0_37 = arith.constant 0 : index
    %138 = vector.load %arg7[%c0_36, %c0_37] : memref<1x32xf32, #tpu.memory_space<vmem>>, vector<1x32xf32>
    %139 = vector.broadcast %138 : vector<1x32xf32> to vector<16x32xf32>
    %140 = arith.addf %137, %139 : vector<16x32xf32>
    %c0_38 = arith.constant 0 : index
    %c0_39 = arith.constant 0 : index
    %141 = vector.load %arg8[%c0_38, %c0_39] : memref<32x64xf32, #tpu.memory_space<vmem>>, vector<32x64xf32>
    %cst_40 = arith.constant dense<0.000000e+00> : vector<16x64xf32>
    %142 = tpu.matmul %140, %141, %cst_40 {dimension_numbers = #tpu.dot_dimension_numbers<[1], [0], [0], [1], [0, 0, 1, 1], [], []>} : vector<16x32xf32>, vector<32x64xf32>, vector<16x64xf32> -> vector<16x64xf32>
    %c0_41 = arith.constant 0 : index
    %c0_42 = arith.constant 0 : index
    %143 = vector.load %arg9[%c0_41, %c0_42] : memref<1x64xf32, #tpu.memory_space<vmem>>, vector<1x64xf32>
    %144 = vector.broadcast %143 : vector<1x64xf32> to vector<16x64xf32>
    %145 = arith.addf %142, %144 : vector<16x64xf32>
    %cst_43 = arith.constant 0.000000e+00 : f32
    %146 = vector.broadcast %cst_43 : f32 to vector<16x64xf32>
    %147 = arith.maximumf %145, %146 : vector<16x64xf32>
    %c0_44 = arith.constant 0 : index
    %c0_45 = arith.constant 0 : index
    %148 = vector.load %arg10[%c0_44, %c0_45] : memref<64x32xf32, #tpu.memory_space<vmem>>, vector<64x32xf32>
    %cst_46 = arith.constant dense<0.000000e+00> : vector<16x32xf32>
    %149 = tpu.matmul %147, %148, %cst_46 {dimension_numbers = #tpu.dot_dimension_numbers<[1], [0], [0], [1], [0, 0, 1, 1], [], []>} : vector<16x64xf32>, vector<64x32xf32>, vector<16x32xf32> -> vector<16x32xf32>
    %c0_47 = arith.constant 0 : index
    %c0_48 = arith.constant 0 : index
    %150 = vector.load %arg11[%c0_47, %c0_48] : memref<1x32xf32, #tpu.memory_space<vmem>>, vector<1x32xf32>
    %151 = vector.broadcast %150 : vector<1x32xf32> to vector<16x32xf32>
    %152 = arith.addf %149, %151 : vector<16x32xf32>
    %153 = arith.addf %116, %152 : vector<16x32xf32>
    %154 = vector.shape_cast %153 : vector<16x32xf32> to vector<2x8x32xf32>
    %c0_49 = arith.constant 0 : index
    %c0_50 = arith.constant 0 : index
    %c0_51 = arith.constant 0 : index
    %155 = vector.load %arg12[%c0_49, %c0_50, %c0_51] : memref<2x8x32xf32, #tpu.memory_space<vmem>>, vector<2x8x32xf32>
    tpu.vector_store %arg12[%c0_49, %c0_50, %c0_51], %154 {strides = array<i32>} : memref<2x8x32xf32, #tpu.memory_space<vmem>>, vector<2x8x32xf32>,
    return
  }
  func.func @transform_0(%arg0: i32) -> (i32, i32, i32) {
    %c0_i32 = arith.constant 0 : i32
    %c0_i32_0 = arith.constant 0 : i32
    %c0_i32_1 = arith.constant 0 : i32
    return %arg0, %c0_i32, %c0_i32_0 : i32, i32, i32
  }
  func.func @transform_1(%arg0: i32) -> (i32, i32) {
    %c0_i32 = arith.constant 0 : i32
    %c0_i32_0 = arith.constant 0 : i32
    %c0_i32_1 = arith.constant 0 : i32
    return %c0_i32, %c0_i32_0 : i32, i32
  }
  func.func @transform_2(%arg0: i32) -> (i32, i32) {
    %c0_i32 = arith.constant 0 : i32
    %c0_i32_0 = arith.constant 0 : i32
    %c0_i32_1 = arith.constant 0 : i32
    return %c0_i32, %c0_i32_0 : i32, i32
  }
  func.func @transform_3(%arg0: i32) -> (i32, i32) {
    %c0_i32 = arith.constant 0 : i32
    %c0_i32_0 = arith.constant 0 : i32
    %c0_i32_1 = arith.constant 0 : i32
    return %c0_i32, %c0_i32_0 : i32, i32
  }
  func.func @transform_4(%arg0: i32) -> (i32, i32) {
    %c0_i32 = arith.constant 0 : i32
    %c0_i32_0 = arith.constant 0 : i32
    %c0_i32_1 = arith.constant 0 : i32
    return %c0_i32, %c0_i32_0 : i32, i32
  }
  func.func @transform_5(%arg0: i32) -> (i32, i32) {
    %c0_i32 = arith.constant 0 : i32
    %c0_i32_0 = arith.constant 0 : i32
    %c0_i32_1 = arith.constant 0 : i32
    return %c0_i32, %c0_i32_0 : i32, i32
  }
  func.func @transform_6(%arg0: i32) -> (i32, i32) {
    %c0_i32 = arith.constant 0 : i32
    %c0_i32_0 = arith.constant 0 : i32
    %c0_i32_1 = arith.constant 0 : i32
    return %c0_i32, %c0_i32_0 : i32, i32
  }
  func.func @transform_7(%arg0: i32) -> (i32, i32) {
    %c0_i32 = arith.constant 0 : i32
    %c0_i32_0 = arith.constant 0 : i32
    %c0_i32_1 = arith.constant 0 : i32
    return %c0_i32, %c0_i32_0 : i32, i32
  }
  func.func @transform_8(%arg0: i32) -> (i32, i32) {
    %c0_i32 = arith.constant 0 : i32
    %c0_i32_0 = arith.constant 0 : i32
    %c0_i32_1 = arith.constant 0 : i32
    return %c0_i32, %c0_i32_0 : i32, i32
  }
  func.func @transform_9(%arg0: i32) -> (i32, i32) {
    %c0_i32 = arith.constant 0 : i32
    %c0_i32_0 = arith.constant 0 : i32
    %c0_i32_1 = arith.constant 0 : i32
    return %c0_i32, %c0_i32_0 : i32, i32
  }
  func.func @transform_10(%arg0: i32) -> (i32, i32) {
    %c0_i32 = arith.constant 0 : i32
    %c0_i32_0 = arith.constant 0 : i32
    %c0_i32_1 = arith.constant 0 : i32
    return %c0_i32, %c0_i32_0 : i32, i32
  }
  func.func @transform_11(%arg0: i32) -> (i32, i32, i32) {
    %c0_i32 = arith.constant 0 : i32
    %c0_i32_0 = arith.constant 0 : i32
    %c0_i32_1 = arith.constant 0 : i32
    return %arg0, %c0_i32, %c0_i32_0 : i32, i32, i32
  }
}

</mosaic_0001>

<llo_original>
// kernel: tpu_custom_call.1
$region0: #{tpu_custom_call.1}
  #allocation0 [shape = 'u32[]', space=smem, size = 0x4, offset = 0x4, fixed_abs, tag = 'smem constant byte address 0x4 - core index']
  #allocation1 [shape = 'u32[144,128]{1,0:T(1,128)}', space=vmem, size = 0x12000, scoped, tag = 'internal scratch']
  %s0 = inlined_call_operand.hbm [shape: f32[2,8,32], index: 0, kind: input, shape index: {}]
  %s1 = inlined_call_operand.vmem [shape: f32[32,96], index: 1, kind: input, shape index: {}]
  %s2 = inlined_call_operand.vmem [shape: f32[1,96], index: 2, kind: input, shape index: {}]
  %s3 = inlined_call_operand.vmem [shape: f32[32,32], index: 3, kind: input, shape index: {}]
  %s4 = inlined_call_operand.vmem [shape: f32[1,32], index: 4, kind: input, shape index: {}]
  %s5 = inlined_call_operand.hbm [shape: f32[1,32], index: 5, kind: input, shape index: {}]
  %s6 = inlined_call_operand.hbm [shape: f32[1,32], index: 6, kind: input, shape index: {}]
  %s7 = inlined_call_operand.vmem [shape: f32[32,64], index: 7, kind: input, shape index: {}]
  %s8 = inlined_call_operand.hbm [shape: f32[1,64], index: 8, kind: input, shape index: {}]
  %s9 = inlined_call_operand.vmem [shape: f32[64,32], index: 9, kind: input, shape index: {}]
  %s10 = inlined_call_operand.vmem [shape: f32[1,32], index: 10, kind: input, shape index: {}]
  %s11 = inlined_call_operand.hbm [shape: f32[2,8,32], index: 11, kind: output, shape index: {}]
  %s12 = sld [smem:[#allocation0]]
  $region70: #{tpu_custom_call.1} parent=0
    _
  %s14 = ssub.s32 1, %s12
  %s15 = scalar_select 0, %s14, %s12
  $region1: #{tpu_custom_call.1} parent=0
    #allocation2 [shape = 'u8[8192]{0}', space=vmem, size = 0x2000, scoped, tag = 'input window, operand 0, single buffered']
    #allocation3 [shape = 's32[1]{0}', space=sflag, size = 0x4, scoped, tag = 'scoped memory for tpu_custom_call.1']
    #allocation4 [shape = 's32[1]{0}', space=sflag, size = 0x4, scoped, tag = 'scoped memory for tpu_custom_call.1']
    #allocation5 [shape = 'u8[512]{0}', space=vmem, size = 0x400, scoped, tag = 'input window, operand 5, single buffered']
    #allocation6 [shape = 's32[1]{0}', space=sflag, size = 0x4, scoped, tag = 'scoped memory for tpu_custom_call.1']
    #allocation7 [shape = 'u8[512]{0}', space=vmem, size = 0x400, scoped, tag = 'input window, operand 6, single buffered']
    #allocation8 [shape = 'u8[512]{0}', space=vmem, size = 0x400, scoped, tag = 'input window, operand 8, single buffered']
    #allocation9 [shape = 's32[1]{0}', space=sflag, size = 0x4, scoped, tag = 'scoped memory for tpu_custom_call.1']
    #allocation10 [shape = 'u8[8192]{0}', space=vmem, size = 0x2000, scoped, tag = 'output window, operand 0, single buffered']
    %16 = vsyncpa [#allocation3], 0
    %17 = vsyncpa [#allocation6], 0
    %18 = vsyncpa [#allocation9], 0
    %19 = vsyncpa [#allocation4], 0
    // Predicated region
    $region2: #{tpu_custom_call.1} parent=1 // pred_check
      _
    $region3: #{tpu_custom_call.1} parent=1 // pred_check_branch
      %21 = sbr.rel (0) target = $region5
    $region4: #{tpu_custom_call.1} parent=1 // pred_region
      %s23 = ssub.s32 256, 256
      %24 = vsyncadd [#allocation3], %s23
      %s25 = sshll.u32 [#allocation2], 4
      %s26 = int_to_ptr.vmem [resolvable:$true] %s25
      %31 = dma.hbm_to_vmem [thread:$0]  %s0, 256, %s26, [#allocation3], 128, 128, 8
    $region5: #{tpu_custom_call.1} parent=1 // pred_fallthru
      _
    // Predicated region
    $region6: #{tpu_custom_call.1} parent=1 // pred_check
      _
    $region7: #{tpu_custom_call.1} parent=1 // pred_check_branch
      %33 = sbr.rel (0) target = $region9
    $region8: #{tpu_custom_call.1} parent=1 // pred_region
      _
    $region9: #{tpu_custom_call.1} parent=1 // pred_fallthru
      _
    // Predicated region
    $region10: #{tpu_custom_call.1} parent=1 // pred_check
      _
    $region11: #{tpu_custom_call.1} parent=1 // pred_check_branch
      %35 = sbr.rel (0) target = $region13
    $region12: #{tpu_custom_call.1} parent=1 // pred_region
      _
    $region13: #{tpu_custom_call.1} parent=1 // pred_fallthru
      _
    // Predicated region
    $region14: #{tpu_custom_call.1} parent=1 // pred_check
      _
    $region15: #{tpu_custom_call.1} parent=1 // pred_check_branch
      %37 = sbr.rel (0) target = $region17
    $region16: #{tpu_custom_call.1} parent=1 // pred_region
      _
    $region17: #{tpu_custom_call.1} parent=1 // pred_fallthru
      _
    // Predicated region
    $region18: #{tpu_custom_call.1} parent=1 // pred_check
      _
    $region19: #{tpu_custom_call.1} parent=1 // pred_check_branch
      %39 = sbr.rel (0) target = $region21
    $region20: #{tpu_custom_call.1} parent=1 // pred_region
      _
    $region21: #{tpu_custom_call.1} parent=1 // pred_fallthru
      _
    // Predicated region
    $region22: #{tpu_custom_call.1} parent=1 // pred_check
      _
    $region23: #{tpu_custom_call.1} parent=1 // pred_check_branch
      %41 = sbr.rel (0) target = $region25
    $region24: #{tpu_custom_call.1} parent=1 // pred_region
      %s43 = ssub.s32 16, 16
      %44 = vsyncadd [#allocation6], %s43
      %s46 = sshll.u32 [#allocation5], 4
      %s47 = int_to_ptr.vmem [resolvable:$true] %s46
      %49 = dma.hbm_to_vmem [thread:$0]  %s5, 16, %s47, [#allocation6]
    $region25: #{tpu_custom_call.1} parent=1 // pred_fallthru
      _
    // Predicated region
    $region26: #{tpu_custom_call.1} parent=1 // pred_check
      _
    $region27: #{tpu_custom_call.1} parent=1 // pred_check_branch
      %51 = sbr.rel (0) target = $region29
    $region28: #{tpu_custom_call.1} parent=1 // pred_region
      %s53 = ssub.s32 16, 16
      %54 = vsyncadd [#allocation6], %s53
      %s56 = sshll.u32 [#allocation7], 4
      %s57 = int_to_ptr.vmem [resolvable:$true] %s56
      %59 = dma.hbm_to_vmem [thread:$0]  %s6, 16, %s57, [#allocation6]
    $region29: #{tpu_custom_call.1} parent=1 // pred_fallthru
      _
    // Predicated region
    $region30: #{tpu_custom_call.1} parent=1 // pred_check
      _
    $region31: #{tpu_custom_call.1} parent=1 // pred_check_branch
      %61 = sbr.rel (0) target = $region33
    $region32: #{tpu_custom_call.1} parent=1 // pred_region
      _
    $region33: #{tpu_custom_call.1} parent=1 // pred_fallthru
      _
    // Predicated region
    $region34: #{tpu_custom_call.1} parent=1 // pred_check
      _
    $region35: #{tpu_custom_call.1} parent=1 // pred_check_branch
      %63 = sbr.rel (0) target = $region37
    $region36: #{tpu_custom_call.1} parent=1 // pred_region
      %s65 = ssub.s32 16, 16
      %66 = vsyncadd [#allocation9], %s65
      %s68 = sshll.u32 [#allocation8], 4
      %s69 = int_to_ptr.vmem [resolvable:$true] %s68
      %71 = dma.hbm_to_vmem [thread:$0]  %s8, 16, %s69, [#allocation9]
    $region37: #{tpu_custom_call.1} parent=1 // pred_fallthru
      _
    // Predicated region
    $region38: #{tpu_custom_call.1} parent=1 // pred_check
      _
    $region39: #{tpu_custom_call.1} parent=1 // pred_check_branch
      %73 = sbr.rel (0) target = $region41
    $region40: #{tpu_custom_call.1} parent=1 // pred_region
      _
    $region41: #{tpu_custom_call.1} parent=1 // pred_fallthru
      _
    // Predicated region
    $region42: #{tpu_custom_call.1} parent=1 // pred_check
      _
    $region43: #{tpu_custom_call.1} parent=1 // pred_check_branch
      %75 = sbr.rel (0) target = $region45
    $region44: #{tpu_custom_call.1} parent=1 // pred_region
      _
    $region45: #{tpu_custom_call.1} parent=1 // pred_fallthru
      _
    // Predicated region
    $region46: #{tpu_custom_call.1} parent=1 // pred_check
      _
    $region47: #{tpu_custom_call.1} parent=1 // pred_check_branch
      %77 = sbr.rel (0) target = $region49
    $region48: #{tpu_custom_call.1} parent=1 // pred_region
      %78 = dma.done [#allocation3], 256
    $region49: #{tpu_custom_call.1} parent=1 // pred_fallthru
      _
    // Predicated region
    $region50: #{tpu_custom_call.1} parent=1 // pred_check
      _
    $region51: #{tpu_custom_call.1} parent=1 // pred_check_branch
      %80 = sbr.rel (0) target = $region53
    $region52: #{tpu_custom_call.1} parent=1 // pred_region
      %81 = dma.done [#allocation6], 16
    $region53: #{tpu_custom_call.1} parent=1 // pred_fallthru
      _
    // Predicated region
    $region54: #{tpu_custom_call.1} parent=1 // pred_check
      _
    $region55: #{tpu_custom_call.1} parent=1 // pred_check_branch
      %83 = sbr.rel (0) target = $region57
    $region56: #{tpu_custom_call.1} parent=1 // pred_region
      %84 = dma.done [#allocation6], 16
    $region57: #{tpu_custom_call.1} parent=1 // pred_fallthru
      _
    // Predicated region
    $region58: #{tpu_custom_call.1} parent=1 // pred_check
      _
    $region59: #{tpu_custom_call.1} parent=1 // pred_check_branch
      %86 = sbr.rel (0) target = $region61
    $region60: #{tpu_custom_call.1} parent=1 // pred_region
      %87 = dma.done [#allocation9], 16
    $region61: #{tpu_custom_call.1} parent=1 // pred_fallthru
      _
    %v88 = vld [vmem:[%s1] sm:$0xff]
    %v89 = vld [vmem:[%s1 + $0x8] sm:$0xff]
    %v90 = vld [vmem:[%s1 + $0x10] sm:$0xff]
    %v91 = vld [vmem:[%s1 + $0x18] sm:$0xff]
    %v92 = vld [vmem:[%s2] sm:$0x1]
    %v93 = vld [vmem:[%s3] sm:$0xff]
    %v94 = vld [vmem:[%s3 + $0x8] sm:$0xff]
    %v95 = vld [vmem:[%s3 + $0x10] sm:$0xff]
    %v96 = vld [vmem:[%s3 + $0x18] sm:$0xff]
    %v97 = vld [vmem:[%s4] sm:$0x1]
    %v98 = vld [vmem:[#allocation2] sm:$0xff]
    %v99 = vld [vmem:[#allocation2 + $0x8] sm:$0xff]
    %v101 = vlaneseq
    %v102 = vshrl.u32 %v101, 7
    %v103 = vsub.s32 0, %v102
    %v104 = vrot.slane %v92, %v103
    %vm106 = vcmask 261120
    %v108 = vsel %vm106, %v98, 0
    %v111 = vsel %vm106, %v99, 0
    %113 = vmatprep.subr.mxu0 0.0
    %114 = vmatpush1.msra.mxu0 %v88
    %115 = vmatprep.subr.mxu0 0.0
    %116 = vmatpush1.msra.mxu0 %v89
    %117 = vmatprep.subr.mxu0 0.0
    %118 = vmatpush1.msra.mxu0 %v90
    %119 = vmatprep.subr.mxu0 0.0
    %120 = vmatpush1.msra.mxu0 %v91
    %121 = vmatprep.subr.mxu0 0.0
    %122 = vmatpush1.msra.mxu0 0.0
    %123 = vmatprep.subr.mxu0 0.0
    %124 = vmatpush1.msra.mxu0 0.0
    %125 = vmatprep.subr.mxu0 0.0
    %126 = vmatpush1.msra.mxu0 0.0
    %127 = vmatprep.subr.mxu0 0.0
    %128 = vmatpush1.msra.mxu0 0.0
    %129 = vmatprep.subr.mxu0 0.0
    %130 = vmatpush1.msra.mxu0 0.0
    %131 = vmatprep.subr.mxu0 0.0
    %132 = vmatpush1.msra.mxu0 0.0
    %133 = vmatprep.subr.mxu0 0.0
    %134 = vmatpush1.msra.mxu0 0.0
    %135 = vmatprep.subr.mxu0 0.0
    %136 = vmatpush1.msra.mxu0 0.0
    %137 = vmatprep.subr.mxu0 0.0
    %138 = vmatpush1.msra.mxu0 0.0
    %139 = vmatprep.subr.mxu0 0.0
    %140 = vmatpush1.msra.mxu0 0.0
    %141 = vmatprep.subr.mxu0 0.0
    %142 = vmatpush1.msra.mxu0 0.0
    %143 = vmatprep.subr.mxu0 0.0
    %144 = vmatpush1.msra.mxu0 0.0
    %145 = vmatprep.subr.mxu0 0.0
    %146 = vmatpush1.msra.mxu0 0.0
    %147 = vmatprep.subr.mxu0 0.0
    %148 = vmatpush1.msra.mxu0 0.0
    %149 = vmatprep.subr.mxu0 0.0
    %150 = vmatpush1.msra.mxu0 0.0
    %151 = vmatprep.subr.mxu0 0.0
    %152 = vmatpush1.msra.mxu0 0.0
    %153 = vmatprep.subr.mxu0 0.0
    %154 = vmatpush1.msra.mxu0 0.0
    %155 = vmatprep.subr.mxu0 0.0
    %156 = vmatpush1.msra.mxu0 0.0
    %157 = vmatprep.subr.mxu0 0.0
    %158 = vmatpush1.msra.mxu0 0.0
    %159 = vmatprep.subr.mxu0 0.0
    %160 = vmatpush1.msra.mxu0 0.0
    %161 = vmatprep.subr.mxu0 0.0
    %162 = vmatpush1.msra.mxu0 0.0
    %163 = vmatprep.subr.mxu0 0.0
    %164 = vmatpush1.msra.mxu0 0.0
    %165 = vmatprep.subr.mxu0 0.0
    %166 = vmatpush1.msra.mxu0 0.0
    %167 = vmatprep.subr.mxu0 0.0
    %168 = vmatpush1.msra.mxu0 0.0
    %169 = vmatprep.subr.mxu0 0.0
    %170 = vmatpush1.msra.mxu0 0.0
    %171 = vmatprep.subr.mxu0 0.0
    %172 = vmatpush1.msra.mxu0 0.0
    %173 = vmatprep.subr.mxu0 0.0
    %174 = vmatpush1.msra.mxu0 0.0
    %175 = vmatprep.subr.mxu0 0.0
    %176 = vmatpush1.msra.mxu0 0.0
    %177 = vmatprep.mubr.f32.mxu0 0.0
    %178 = vmatmul.mubr.f32.gmra.mrb[0].mxu0 %v108
    %v179 = vpop.f32.mrb[0].mxu0
    %v180 = vadd.f32 %v104, %v179
    %v181 = vpop.f32.mrb[0].mxu0
    %182 = vmatprep.mubr.f32.mxu0 0.0
    %183 = vmatmul.mubr.f32.gmra.mrb[0].mxu0 %v111
    %v184 = vpop.f32.mrb[0].mxu0
    %v185 = vadd.f32 %v104, %v184
    %v186 = vpop.f32.mrb[0].mxu0
    %187 = vdwg.mxu0
    %189 = vrot.lane.b32.xlu0 %v180, 120
    %v190 = vpop.permute.xlu0 %189
    %192 = vrot.lane.b32.xlu0 %v180, 112
    %v193 = vpop.permute.xlu0 %192
    %195 = vrot.lane.b32.xlu0 %v180, 104
    %v196 = vpop.permute.xlu0 %195
    %v198 = vcombine.low %v180, %v193
    %v199 = vcombine.high %v180, %v193
    %v201 = vunpack.c.l.s4 1983009808
    %v202 = vunpack.c.0.s8 %v201
    %v203 = vlaneseq
    %v204 = vshrl.u32 %v203, 7
    %v205 = vsub.s32 %v202, %v204
    %v206 = vrot.slane %v198, %v205
    %v208 = vunpack.c.l.s4 1983009808
    %v209 = vunpack.c.0.s8 %v208
    %v210 = vlaneseq
    %v211 = vshrl.u32 %v210, 7
    %v212 = vsub.s32 %v209, %v211
    %v213 = vrot.slane %v199, %v212
    %v214 = vcombine.low %v190, %v196
    %v215 = vcombine.high %v190, %v196
    %v217 = vunpack.c.l.s4 1983009808
    %v218 = vunpack.c.0.s8 %v217
    %v219 = vlaneseq
    %v220 = vshrl.u32 %v219, 7
    %v221 = vsub.s32 %v218, %v220
    %v222 = vrot.slane %v214, %v221
    %v224 = vunpack.c.l.s4 1983009808
    %v225 = vunpack.c.0.s8 %v224
    %v226 = vlaneseq
    %v227 = vshrl.u32 %v226, 7
    %v228 = vsub.s32 %v225, %v227
    %v229 = vrot.slane %v215, %v228
    %v230 = vcombine.low %v206, %v222
    %v231 = vcombine.high %v206, %v222
    %v233 = vunpack.c.l.s4 1934713408
    %v234 = vunpack.c.0.s8 %v233
    %v235 = vlaneseq
    %v236 = vshrl.u32 %v235, 7
    %v237 = vsub.s32 %v234, %v236
    %v238 = vrot.slane %v230, %v237
    %v240 = vunpack.c.l.s4 1934713408
    %v241 = vunpack.c.0.s8 %v240
    %v242 = vlaneseq
    %v243 = vshrl.u32 %v242, 7
    %v244 = vsub.s32 %v241, %v243
    %v245 = vrot.slane %v231, %v244
    %v246 = vcombine.low %v213, %v229
    %v247 = vcombine.high %v213, %v229
    %v249 = vunpack.c.l.s4 1934713408
    %v250 = vunpack.c.0.s8 %v249
    %v251 = vlaneseq
    %v252 = vshrl.u32 %v251, 7
    %v253 = vsub.s32 %v250, %v252
    %v254 = vrot.slane %v246, %v253
    %v256 = vunpack.c.l.s4 1934713408
    %v257 = vunpack.c.0.s8 %v256
    %v258 = vlaneseq
    %v259 = vshrl.u32 %v258, 7
    %v260 = vsub.s32 %v257, %v259
    %v261 = vrot.slane %v247, %v260
    %v262 = vcombine.high %v238, 0.0
    %v263 = vcombine.high %v245, 0.0
    %v264 = vcombine.high %v254, 0.0
    %v265 = vcombine.high %v261, 0.0
    %v266 = vcombine.low %v238, %v245
    %v268 = vunpack.c.l.s4 1983009808
    %v269 = vunpack.c.0.s8 %v268
    %v270 = vlaneseq
    %v271 = vshrl.u32 %v270, 7
    %v272 = vsub.s32 %v269, %v271
    %v273 = vrot.slane %v266, %v272
    %v274 = vcombine.low %v262, %v263
    %v276 = vunpack.c.l.s4 1983009808
    %v277 = vunpack.c.0.s8 %v276
    %v278 = vlaneseq
    %v279 = vshrl.u32 %v278, 7
    %v280 = vsub.s32 %v277, %v279
    %v281 = vrot.slane %v274, %v280
    %v282 = vcombine.low %v254, %v261
    %v284 = vunpack.c.l.s4 1983009808
    %v285 = vunpack.c.0.s8 %v284
    %v286 = vlaneseq
    %v287 = vshrl.u32 %v286, 7
    %v288 = vsub.s32 %v285, %v287
    %v289 = vrot.slane %v282, %v288
    %v290 = vcombine.low %v264, %v265
    %v292 = vunpack.c.l.s4 1983009808
    %v293 = vunpack.c.0.s8 %v292
    %v294 = vlaneseq
    %v295 = vshrl.u32 %v294, 7
    %v296 = vsub.s32 %v293, %v295
    %v297 = vrot.slane %v290, %v296
    %v298 = vcombine.low %v273, %v281
    %v299 = vcombine.high %v273, %v281
    %v301 = vunpack.c.l.s4 1934713408
    %v302 = vunpack.c.0.s8 %v301
    %v303 = vlaneseq
    %v304 = vshrl.u32 %v303, 7
    %v305 = vsub.s32 %v302, %v304
    %v306 = vrot.slane %v298, %v305
    %v308 = vunpack.c.l.s4 1934713408
    %v309 = vunpack.c.0.s8 %v308
    %v310 = vlaneseq
    %v311 = vshrl.u32 %v310, 7
    %v312 = vsub.s32 %v309, %v311
    %v313 = vrot.slane %v299, %v312
    %v314 = vcombine.low %v289, %v297
    %v315 = vcombine.high %v289, %v297
    %v317 = vunpack.c.l.s4 1934713408
    %v318 = vunpack.c.0.s8 %v317
    %v319 = vlaneseq
    %v320 = vshrl.u32 %v319, 7
    %v321 = vsub.s32 %v318, %v320
    %v322 = vrot.slane %v314, %v321
    %v324 = vunpack.c.l.s4 1934713408
    %v325 = vunpack.c.0.s8 %v324
    %v326 = vlaneseq
    %v327 = vshrl.u32 %v326, 7
    %v328 = vsub.s32 %v325, %v327
    %v329 = vrot.slane %v315, %v328
    %v330 = vcombine.low %v306, %v322
    %v331 = vcombine.high %v306, %v322
    %v332 = vcombine.low %v313, %v329
    %v333 = vcombine.high %v313, %v329
    %334 = vrot.lane.b32.xlu0 %v180, 96
    %v335 = vpop.permute.xlu0 %334
    %336 = vrot.lane.b32.xlu0 %v190, 96
    %v337 = vpop.permute.xlu0 %336
    %338 = vrot.lane.b32.xlu0 %v193, 96
    %v339 = vpop.permute.xlu0 %338
    %340 = vrot.lane.b32.xlu0 %v196, 96
    %v341 = vpop.permute.xlu0 %340
    %v346 = vcombine.low %v335, %v339
    %v347 = vcombine.high %v335, %v339
    %v349 = vunpack.c.l.s4 1983009808
    %v350 = vunpack.c.0.s8 %v349
    %v351 = vlaneseq
    %v352 = vshrl.u32 %v351, 7
    %v353 = vsub.s32 %v350, %v352
    %v354 = vrot.slane %v346, %v353
    %v356 = vunpack.c.l.s4 1983009808
    %v357 = vunpack.c.0.s8 %v356
    %v358 = vlaneseq
    %v359 = vshrl.u32 %v358, 7
    %v360 = vsub.s32 %v357, %v359
    %v361 = vrot.slane %v347, %v360
    %v362 = vcombine.low %v337, %v341
    %v363 = vcombine.high %v337, %v341
    %v365 = vunpack.c.l.s4 1983009808
    %v366 = vunpack.c.0.s8 %v365
    %v367 = vlaneseq
    %v368 = vshrl.u32 %v367, 7
    %v369 = vsub.s32 %v366, %v368
    %v370 = vrot.slane %v362, %v369
    %v372 = vunpack.c.l.s4 1983009808
    %v373 = vunpack.c.0.s8 %v372
    %v374 = vlaneseq
    %v375 = vshrl.u32 %v374, 7
    %v376 = vsub.s32 %v373, %v375
    %v377 = vrot.slane %v363, %v376
    %v378 = vcombine.low %v354, %v370
    %v379 = vcombine.high %v354, %v370
    %v381 = vunpack.c.l.s4 1934713408
    %v382 = vunpack.c.0.s8 %v381
    %v383 = vlaneseq
    %v384 = vshrl.u32 %v383, 7
    %v385 = vsub.s32 %v382, %v384
    %v386 = vrot.slane %v378, %v385
    %v388 = vunpack.c.l.s4 1934713408
    %v389 = vunpack.c.0.s8 %v388
    %v390 = vlaneseq
    %v391 = vshrl.u32 %v390, 7
    %v392 = vsub.s32 %v389, %v391
    %v393 = vrot.slane %v379, %v392
    %v394 = vcombine.low %v361, %v377
    %v395 = vcombine.high %v361, %v377
    %v397 = vunpack.c.l.s4 1934713408
    %v398 = vunpack.c.0.s8 %v397
    %v399 = vlaneseq
    %v400 = vshrl.u32 %v399, 7
    %v401 = vsub.s32 %v398, %v400
    %v402 = vrot.slane %v394, %v401
    %v404 = vunpack.c.l.s4 1934713408
    %v405 = vunpack.c.0.s8 %v404
    %v406 = vlaneseq
    %v407 = vshrl.u32 %v406, 7
    %v408 = vsub.s32 %v405, %v407
    %v409 = vrot.slane %v395, %v408
    %v410 = vcombine.high %v386, 0.0
    %v411 = vcombine.high %v393, 0.0
    %v412 = vcombine.high %v402, 0.0
    %v413 = vcombine.high %v409, 0.0
    %v414 = vcombine.low %v386, %v393
    %v416 = vunpack.c.l.s4 1983009808
    %v417 = vunpack.c.0.s8 %v416
    %v418 = vlaneseq
    %v419 = vshrl.u32 %v418, 7
    %v420 = vsub.s32 %v417, %v419
    %v421 = vrot.slane %v414, %v420
    %v422 = vcombine.low %v410, %v411
    %v424 = vunpack.c.l.s4 1983009808
    %v425 = vunpack.c.0.s8 %v424
    %v426 = vlaneseq
    %v427 = vshrl.u32 %v426, 7
    %v428 = vsub.s32 %v425, %v427
    %v429 = vrot.slane %v422, %v428
    %v430 = vcombine.low %v402, %v409
    %v432 = vunpack.c.l.s4 1983009808
    %v433 = vunpack.c.0.s8 %v432
    %v434 = vlaneseq
    %v435 = vshrl.u32 %v434, 7
    %v436 = vsub.s32 %v433, %v435
    %v437 = vrot.slane %v430, %v436
    %v438 = vcombine.low %v412, %v413
    %v440 = vunpack.c.l.s4 1983009808
    %v441 = vunpack.c.0.s8 %v440
    %v442 = vlaneseq
    %v443 = vshrl.u32 %v442, 7
    %v444 = vsub.s32 %v441, %v443
    %v445 = vrot.slane %v438, %v444
    %v446 = vcombine.low %v421, %v429
    %v447 = vcombine.high %v421, %v429
    %v449 = vunpack.c.l.s4 1934713408
    %v450 = vunpack.c.0.s8 %v449
    %v451 = vlaneseq
    %v452 = vshrl.u32 %v451, 7
    %v453 = vsub.s32 %v450, %v452
    %v454 = vrot.slane %v446, %v453
    %v456 = vunpack.c.l.s4 1934713408
    %v457 = vunpack.c.0.s8 %v456
    %v458 = vlaneseq
    %v459 = vshrl.u32 %v458, 7
    %v460 = vsub.s32 %v457, %v459
    %v461 = vrot.slane %v447, %v460
    %v462 = vcombine.low %v437, %v445
    %v463 = vcombine.high %v437, %v445
    %v465 = vunpack.c.l.s4 1934713408
    %v466 = vunpack.c.0.s8 %v465
    %v467 = vlaneseq
    %v468 = vshrl.u32 %v467, 7
    %v469 = vsub.s32 %v466, %v468
    %v470 = vrot.slane %v462, %v469
    %v472 = vunpack.c.l.s4 1934713408
    %v473 = vunpack.c.0.s8 %v472
    %v474 = vlaneseq
    %v475 = vshrl.u32 %v474, 7
    %v476 = vsub.s32 %v473, %v475
    %v477 = vrot.slane %v463, %v476
    %v478 = vcombine.low %v454, %v470
    %v479 = vcombine.high %v454, %v470
    %v480 = vcombine.low %v461, %v477
    %v481 = vcombine.high %v461, %v477
    %482 = vrot.lane.b32.xlu0 %v180, 64
    %v483 = vpop.permute.xlu0 %482
    %484 = vrot.lane.b32.xlu0 %v190, 64
    %v485 = vpop.permute.xlu0 %484
    %486 = vrot.lane.b32.xlu0 %v193, 64
    %v487 = vpop.permute.xlu0 %486
    %488 = vrot.lane.b32.xlu0 %v196, 64
    %v489 = vpop.permute.xlu0 %488
    %v494 = vcombine.low %v483, %v487
    %v495 = vcombine.high %v483, %v487
    %v497 = vunpack.c.l.s4 1983009808
    %v498 = vunpack.c.0.s8 %v497
    %v499 = vlaneseq
    %v500 = vshrl.u32 %v499, 7
    %v501 = vsub.s32 %v498, %v500
    %v502 = vrot.slane %v494, %v501
    %v504 = vunpack.c.l.s4 1983009808
    %v505 = vunpack.c.0.s8 %v504
    %v506 = vlaneseq
    %v507 = vshrl.u32 %v506, 7
    %v508 = vsub.s32 %v505, %v507
    %v509 = vrot.slane %v495, %v508
    %v510 = vcombine.low %v485, %v489
    %v511 = vcombine.high %v485, %v489
    %v513 = vunpack.c.l.s4 1983009808
    %v514 = vunpack.c.0.s8 %v513
    %v515 = vlaneseq
    %v516 = vshrl.u32 %v515, 7
    %v517 = vsub.s32 %v514, %v516
    %v518 = vrot.slane %v510, %v517
    %v520 = vunpack.c.l.s4 1983009808
    %v521 = vunpack.c.0.s8 %v520
    %v522 = vlaneseq
    %v523 = vshrl.u32 %v522, 7
    %v524 = vsub.s32 %v521, %v523
    %v525 = vrot.slane %v511, %v524
    %v526 = vcombine.low %v502, %v518
    %v527 = vcombine.high %v502, %v518
    %v529 = vunpack.c.l.s4 1934713408
    %v530 = vunpack.c.0.s8 %v529
    %v531 = vlaneseq
    %v532 = vshrl.u32 %v531, 7
    %v533 = vsub.s32 %v530, %v532
    %v534 = vrot.slane %v526, %v533
    %v536 = vunpack.c.l.s4 1934713408
    %v537 = vunpack.c.0.s8 %v536
    %v538 = vlaneseq
    %v539 = vshrl.u32 %v538, 7
    %v540 = vsub.s32 %v537, %v539
    %v541 = vrot.slane %v527, %v540
    %v542 = vcombine.low %v509, %v525
    %v543 = vcombine.high %v509, %v525
    %v545 = vunpack.c.l.s4 1934713408
    %v546 = vunpack.c.0.s8 %v545
    %v547 = vlaneseq
    %v548 = vshrl.u32 %v547, 7
    %v549 = vsub.s32 %v546, %v548
    %v550 = vrot.slane %v542, %v549
    %v552 = vunpack.c.l.s4 1934713408
    %v553 = vunpack.c.0.s8 %v552
    %v554 = vlaneseq
    %v555 = vshrl.u32 %v554, 7
    %v556 = vsub.s32 %v553, %v555
    %v557 = vrot.slane %v543, %v556
    %v558 = vcombine.high %v534, 0.0
    %v559 = vcombine.high %v541, 0.0
    %v560 = vcombine.high %v550, 0.0
    %v561 = vcombine.high %v557, 0.0
    %v562 = vcombine.low %v534, %v541
    %v564 = vunpack.c.l.s4 1983009808
    %v565 = vunpack.c.0.s8 %v564
    %v566 = vlaneseq
    %v567 = vshrl.u32 %v566, 7
    %v568 = vsub.s32 %v565, %v567
    %v569 = vrot.slane %v562, %v568
    %v570 = vcombine.low %v558, %v559
    %v572 = vunpack.c.l.s4 1983009808
    %v573 = vunpack.c.0.s8 %v572
    %v574 = vlaneseq
    %v575 = vshrl.u32 %v574, 7
    %v576 = vsub.s32 %v573, %v575
    %v577 = vrot.slane %v570, %v576
    %v578 = vcombine.low %v550, %v557
    %v580 = vunpack.c.l.s4 1983009808
    %v581 = vunpack.c.0.s8 %v580
    %v582 = vlaneseq
    %v583 = vshrl.u32 %v582, 7
    %v584 = vsub.s32 %v581, %v583
    %v585 = vrot.slane %v578, %v584
    %v586 = vcombine.low %v560, %v561
    %v588 = vunpack.c.l.s4 1983009808
    %v589 = vunpack.c.0.s8 %v588
    %v590 = vlaneseq
    %v591 = vshrl.u32 %v590, 7
    %v592 = vsub.s32 %v589, %v591
    %v593 = vrot.slane %v586, %v592
    %v594 = vcombine.low %v569, %v577
    %v595 = vcombine.high %v569, %v577
    %v597 = vunpack.c.l.s4 1934713408
    %v598 = vunpack.c.0.s8 %v597
    %v599 = vlaneseq
    %v600 = vshrl.u32 %v599, 7
    %v601 = vsub.s32 %v598, %v600
    %v602 = vrot.slane %v594, %v601
    %v604 = vunpack.c.l.s4 1934713408
    %v605 = vunpack.c.0.s8 %v604
    %v606 = vlaneseq
    %v607 = vshrl.u32 %v606, 7
    %v608 = vsub.s32 %v605, %v607
    %v609 = vrot.slane %v595, %v608
    %v610 = vcombine.low %v585, %v593
    %v611 = vcombine.high %v585, %v593
    %v613 = vunpack.c.l.s4 1934713408
    %v614 = vunpack.c.0.s8 %v613
    %v615 = vlaneseq
    %v616 = vshrl.u32 %v615, 7
    %v617 = vsub.s32 %v614, %v616
    %v618 = vrot.slane %v610, %v617
    %v620 = vunpack.c.l.s4 1934713408
    %v621 = vunpack.c.0.s8 %v620
    %v622 = vlaneseq
    %v623 = vshrl.u32 %v622, 7
    %v624 = vsub.s32 %v621, %v623
    %v625 = vrot.slane %v611, %v624
    %v626 = vcombine.low %v602, %v618
    %v627 = vcombine.high %v602, %v618
    %v628 = vcombine.low %v609, %v625
    %v629 = vcombine.high %v609, %v625
    %vm630 = vcmask 64512
    %v632 = vsel %vm630, %v330, 0
    %v635 = vsel %vm630, %v478, 0
    %637 = vmatprep.subr.mxu0 0.0
    %638 = vmatpush1.xpose.msra.mxu0 %v635
    %639 = vmatprep.subr.mxu0 0.0
    %640 = vmatpush1.xpose.msra.mxu0 0.0
    %641 = vmatprep.subr.mxu0 0.0
    %642 = vmatpush1.xpose.msra.mxu0 0.0
    %643 = vmatprep.subr.mxu0 0.0
    %644 = vmatpush1.xpose.msra.mxu0 0.0
    %645 = vmatprep.subr.mxu0 0.0
    %646 = vmatpush1.xpose.msra.mxu0 0.0
    %647 = vmatprep.subr.mxu0 0.0
    %648 = vmatpush1.xpose.msra.mxu0 0.0
    %649 = vmatprep.subr.mxu0 0.0
    %650 = vmatpush1.xpose.msra.mxu0 0.0
    %651 = vmatprep.subr.mxu0 0.0
    %652 = vmatpush1.xpose.msra.mxu0 0.0
    %653 = vmatprep.subr.mxu0 0.0
    %654 = vmatpush1.xpose.msra.mxu0 0.0
    %655 = vmatprep.subr.mxu0 0.0
    %656 = vmatpush1.xpose.msra.mxu0 0.0
    %657 = vmatprep.subr.mxu0 0.0
    %658 = vmatpush1.xpose.msra.mxu0 0.0
    %659 = vmatprep.subr.mxu0 0.0
    %660 = vmatpush1.xpose.msra.mxu0 0.0
    %661 = vmatprep.subr.mxu0 0.0
    %662 = vmatpush1.xpose.msra.mxu0 0.0
    %663 = vmatprep.subr.mxu0 0.0
    %664 = vmatpush1.xpose.msra.mxu0 0.0
    %665 = vmatprep.subr.mxu0 0.0
    %666 = vmatpush1.xpose.msra.mxu0 0.0
    %667 = vmatprep.subr.mxu0 0.0
    %668 = vmatpush1.xpose.msra.mxu0 0.0
    %669 = vmatprep.subr.mxu0 0.0
    %670 = vmatpush1.xpose.msra.mxu0 0.0
    %671 = vmatprep.subr.mxu0 0.0
    %672 = vmatpush1.xpose.msra.mxu0 0.0
    %673 = vmatprep.subr.mxu0 0.0
    %674 = vmatpush1.xpose.msra.mxu0 0.0
    %675 = vmatprep.subr.mxu0 0.0
    %676 = vmatpush1.xpose.msra.mxu0 0.0
    %677 = vmatprep.subr.mxu0 0.0
    %678 = vmatpush1.xpose.msra.mxu0 0.0
    %679 = vmatprep.subr.mxu0 0.0
    %680 = vmatpush1.xpose.msra.mxu0 0.0
    %681 = vmatprep.subr.mxu0 0.0
    %682 = vmatpush1.xpose.msra.mxu0 0.0
    %683 = vmatprep.subr.mxu0 0.0
    %684 = vmatpush1.xpose.msra.mxu0 0.0
    %685 = vmatprep.subr.mxu0 0.0
    %686 = vmatpush1.xpose.msra.mxu0 0.0
    %687 = vmatprep.subr.mxu0 0.0
    %688 = vmatpush1.xpose.msra.mxu0 0.0
    %689 = vmatprep.subr.mxu0 0.0
    %690 = vmatpush1.xpose.msra.mxu0 0.0
    %691 = vmatprep.subr.mxu0 0.0
    %692 = vmatpush1.xpose.msra.mxu0 0.0
    %693 = vmatprep.subr.mxu0 0.0
    %694 = vmatpush1.xpose.msra.mxu0 0.0
    %695 = vmatprep.subr.mxu0 0.0
    %696 = vmatpush1.xpose.msra.mxu0 0.0
    %697 = vmatprep.subr.mxu0 0.0
    %698 = vmatpush1.xpose.msra.mxu0 0.0
    %699 = vmatprep.subr.mxu0 0.0
    %700 = vmatpush1.xpose.msra.mxu0 0.0
    %701 = vmatprep.mubr.f32.mxu0 0.0
    %702 = vmatmul.mubr.f32.gmra.mrb[0].mxu0 %v632
    %v703 = vpop.f32.mrb[0].mxu0
    %v704 = vadd.f32 0.0, %v703
    %v705 = vpop.f32.mrb[0].mxu0
    %706 = vdwg.mxu0
    %v708 = vsel %vm630, %v331, 0
    %v711 = vsel %vm630, %v479, 0
    %713 = vmatprep.subr.mxu0 0.0
    %714 = vmatpush1.xpose.msra.mxu0 %v711
    %715 = vmatprep.subr.mxu0 0.0
    %716 = vmatpush1.xpose.msra.mxu0 0.0
    %717 = vmatprep.subr.mxu0 0.0
    %718 = vmatpush1.xpose.msra.mxu0 0.0
    %719 = vmatprep.subr.mxu0 0.0
    %720 = vmatpush1.xpose.msra.mxu0 0.0
    %721 = vmatprep.subr.mxu0 0.0
    %722 = vmatpush1.xpose.msra.mxu0 0.0
    %723 = vmatprep.subr.mxu0 0.0
    %724 = vmatpush1.xpose.msra.mxu0 0.0
    %725 = vmatprep.subr.mxu0 0.0
    %726 = vmatpush1.xpose.msra.mxu0 0.0
    %727 = vmatprep.subr.mxu0 0.0
    %728 = vmatpush1.xpose.msra.mxu0 0.0
    %729 = vmatprep.subr.mxu0 0.0
    %730 = vmatpush1.xpose.msra.mxu0 0.0
    %731 = vmatprep.subr.mxu0 0.0
    %732 = vmatpush1.xpose.msra.mxu0 0.0
    %733 = vmatprep.subr.mxu0 0.0
    %734 = vmatpush1.xpose.msra.mxu0 0.0
    %735 = vmatprep.subr.mxu0 0.0
    %736 = vmatpush1.xpose.msra.mxu0 0.0
    %737 = vmatprep.subr.mxu0 0.0
    %738 = vmatpush1.xpose.msra.mxu0 0.0
    %739 = vmatprep.subr.mxu0 0.0
    %740 = vmatpush1.xpose.msra.mxu0 0.0
    %741 = vmatprep.subr.mxu0 0.0
    %742 = vmatpush1.xpose.msra.mxu0 0.0
    %743 = vmatprep.subr.mxu0 0.0
    %744 = vmatpush1.xpose.msra.mxu0 0.0
    %745 = vmatprep.subr.mxu0 0.0
    %746 = vmatpush1.xpose.msra.mxu0 0.0
    %747 = vmatprep.subr.mxu0 0.0
    %748 = vmatpush1.xpose.msra.mxu0 0.0
    %749 = vmatprep.subr.mxu0 0.0
    %750 = vmatpush1.xpose.msra.mxu0 0.0
    %751 = vmatprep.subr.mxu0 0.0
    %752 = vmatpush1.xpose.msra.mxu0 0.0
    %753 = vmatprep.subr.mxu0 0.0
    %754 = vmatpush1.xpose.msra.mxu0 0.0
    %755 = vmatprep.subr.mxu0 0.0
    %756 = vmatpush1.xpose.msra.mxu0 0.0
    %757 = vmatprep.subr.mxu0 0.0
    %758 = vmatpush1.xpose.msra.mxu0 0.0
    %759 = vmatprep.subr.mxu0 0.0
    %760 = vmatpush1.xpose.msra.mxu0 0.0
    %761 = vmatprep.subr.mxu0 0.0
    %762 = vmatpush1.xpose.msra.mxu0 0.0
    %763 = vmatprep.subr.mxu0 0.0
    %764 = vmatpush1.xpose.msra.mxu0 0.0
    %765 = vmatprep.subr.mxu0 0.0
    %766 = vmatpush1.xpose.msra.mxu0 0.0
    %767 = vmatprep.subr.mxu0 0.0
    %768 = vmatpush1.xpose.msra.mxu0 0.0
    %769 = vmatprep.subr.mxu0 0.0
    %770 = vmatpush1.xpose.msra.mxu0 0.0
    %771 = vmatprep.subr.mxu0 0.0
    %772 = vmatpush1.xpose.msra.mxu0 0.0
    %773 = vmatprep.subr.mxu0 0.0
    %774 = vmatpush1.xpose.msra.mxu0 0.0
    %775 = vmatprep.subr.mxu0 0.0
    %776 = vmatpush1.xpose.msra.mxu0 0.0
    %777 = vmatprep.mubr.f32.mxu0 0.0
    %778 = vmatmul.mubr.f32.gmra.mrb[0].mxu0 %v708
    %v779 = vpop.f32.mrb[0].mxu0
    %v780 = vadd.f32 0.0, %v779
    %v781 = vpop.f32.mrb[0].mxu0
    %782 = vdwg.mxu0
    %v784 = vsel %vm630, %v332, 0
    %v787 = vsel %vm630, %v480, 0
    %789 = vmatprep.subr.mxu0 0.0
    %790 = vmatpush1.xpose.msra.mxu0 %v787
    %791 = vmatprep.subr.mxu0 0.0
    %792 = vmatpush1.xpose.msra.mxu0 0.0
    %793 = vmatprep.subr.mxu0 0.0
    %794 = vmatpush1.xpose.msra.mxu0 0.0
    %795 = vmatprep.subr.mxu0 0.0
    %796 = vmatpush1.xpose.msra.mxu0 0.0
    %797 = vmatprep.subr.mxu0 0.0
    %798 = vmatpush1.xpose.msra.mxu0 0.0
    %799 = vmatprep.subr.mxu0 0.0
    %800 = vmatpush1.xpose.msra.mxu0 0.0
    %801 = vmatprep.subr.mxu0 0.0
    %802 = vmatpush1.xpose.msra.mxu0 0.0
    %803 = vmatprep.subr.mxu0 0.0
    %804 = vmatpush1.xpose.msra.mxu0 0.0
    %805 = vmatprep.subr.mxu0 0.0
    %806 = vmatpush1.xpose.msra.mxu0 0.0
    %807 = vmatprep.subr.mxu0 0.0
    %808 = vmatpush1.xpose.msra.mxu0 0.0
    %809 = vmatprep.subr.mxu0 0.0
    %810 = vmatpush1.xpose.msra.mxu0 0.0
    %811 = vmatprep.subr.mxu0 0.0
    %812 = vmatpush1.xpose.msra.mxu0 0.0
    %813 = vmatprep.subr.mxu0 0.0
    %814 = vmatpush1.xpose.msra.mxu0 0.0
    %815 = vmatprep.subr.mxu0 0.0
    %816 = vmatpush1.xpose.msra.mxu0 0.0
    %817 = vmatprep.subr.mxu0 0.0
    %818 = vmatpush1.xpose.msra.mxu0 0.0
    %819 = vmatprep.subr.mxu0 0.0
    %820 = vmatpush1.xpose.msra.mxu0 0.0
    %821 = vmatprep.subr.mxu0 0.0
    %822 = vmatpush1.xpose.msra.mxu0 0.0
    %823 = vmatprep.subr.mxu0 0.0
    %824 = vmatpush1.xpose.msra.mxu0 0.0
    %825 = vmatprep.subr.mxu0 0.0
    %826 = vmatpush1.xpose.msra.mxu0 0.0
    %827 = vmatprep.subr.mxu0 0.0
    %828 = vmatpush1.xpose.msra.mxu0 0.0
    %829 = vmatprep.subr.mxu0 0.0
    %830 = vmatpush1.xpose.msra.mxu0 0.0
    %831 = vmatprep.subr.mxu0 0.0
    %832 = vmatpush1.xpose.msra.mxu0 0.0
    %833 = vmatprep.subr.mxu0 0.0
    %834 = vmatpush1.xpose.msra.mxu0 0.0
    %835 = vmatprep.subr.mxu0 0.0
    %836 = vmatpush1.xpose.msra.mxu0 0.0
    %837 = vmatprep.subr.mxu0 0.0
    %838 = vmatpush1.xpose.msra.mxu0 0.0
    %839 = vmatprep.subr.mxu0 0.0
    %840 = vmatpush1.xpose.msra.mxu0 0.0
    %841 = vmatprep.subr.mxu0 0.0
    %842 = vmatpush1.xpose.msra.mxu0 0.0
    %843 = vmatprep.subr.mxu0 0.0
    %844 = vmatpush1.xpose.msra.mxu0 0.0
    %845 = vmatprep.subr.mxu0 0.0
    %846 = vmatpush1.xpose.msra.mxu0 0.0
    %847 = vmatprep.subr.mxu0 0.0
    %848 = vmatpush1.xpose.msra.mxu0 0.0
    %849 = vmatprep.subr.mxu0 0.0
    %850 = vmatpush1.xpose.msra.mxu0 0.0
    %851 = vmatprep.subr.mxu0 0.0
    %852 = vmatpush1.xpose.msra.mxu0 0.0
    %853 = vmatprep.mubr.f32.mxu0 0.0
    %854 = vmatmul.mubr.f32.gmra.mrb[0].mxu0 %v784
    %v855 = vpop.f32.mrb[0].mxu0
    %v856 = vadd.f32 0.0, %v855
    %v857 = vpop.f32.mrb[0].mxu0
    %858 = vdwg.mxu0
    %v860 = vsel %vm630, %v333, 0
    %v863 = vsel %vm630, %v481, 0
    %865 = vmatprep.subr.mxu0 0.0
    %866 = vmatpush1.xpose.msra.mxu0 %v863
    %867 = vmatprep.subr.mxu0 0.0
    %868 = vmatpush1.xpose.msra.mxu0 0.0
    %869 = vmatprep.subr.mxu0 0.0
    %870 = vmatpush1.xpose.msra.mxu0 0.0
    %871 = vmatprep.subr.mxu0 0.0
    %872 = vmatpush1.xpose.msra.mxu0 0.0
    %873 = vmatprep.subr.mxu0 0.0
    %874 = vmatpush1.xpose.msra.mxu0 0.0
    %875 = vmatprep.subr.mxu0 0.0
    %876 = vmatpush1.xpose.msra.mxu0 0.0
    %877 = vmatprep.subr.mxu0 0.0
    %878 = vmatpush1.xpose.msra.mxu0 0.0
    %879 = vmatprep.subr.mxu0 0.0
    %880 = vmatpush1.xpose.msra.mxu0 0.0
    %881 = vmatprep.subr.mxu0 0.0
    %882 = vmatpush1.xpose.msra.mxu0 0.0
    %883 = vmatprep.subr.mxu0 0.0
    %884 = vmatpush1.xpose.msra.mxu0 0.0
    %885 = vmatprep.subr.mxu0 0.0
    %886 = vmatpush1.xpose.msra.mxu0 0.0
    %887 = vmatprep.subr.mxu0 0.0
    %888 = vmatpush1.xpose.msra.mxu0 0.0
    %889 = vmatprep.subr.mxu0 0.0
    %890 = vmatpush1.xpose.msra.mxu0 0.0
    %891 = vmatprep.subr.mxu0 0.0
    %892 = vmatpush1.xpose.msra.mxu0 0.0
    %893 = vmatprep.subr.mxu0 0.0
    %894 = vmatpush1.xpose.msra.mxu0 0.0
    %895 = vmatprep.subr.mxu0 0.0
    %896 = vmatpush1.xpose.msra.mxu0 0.0
    %897 = vmatprep.subr.mxu0 0.0
    %898 = vmatpush1.xpose.msra.mxu0 0.0
    %899 = vmatprep.subr.mxu0 0.0
    %900 = vmatpush1.xpose.msra.mxu0 0.0
    %901 = vmatprep.subr.mxu0 0.0
    %902 = vmatpush1.xpose.msra.mxu0 0.0
    %903 = vmatprep.subr.mxu0 0.0
    %904 = vmatpush1.xpose.msra.mxu0 0.0
    %905 = vmatprep.subr.mxu0 0.0
    %906 = vmatpush1.xpose.msra.mxu0 0.0
    %907 = vmatprep.subr.mxu0 0.0
    %908 = vmatpush1.xpose.msra.mxu0 0.0
    %909 = vmatprep.subr.mxu0 0.0
    %910 = vmatpush1.xpose.msra.mxu0 0.0
    %911 = vmatprep.subr.mxu0 0.0
    %912 = vmatpush1.xpose.msra.mxu0 0.0
    %913 = vmatprep.subr.mxu0 0.0
    %914 = vmatpush1.xpose.msra.mxu0 0.0
    %915 = vmatprep.subr.mxu0 0.0
    %916 = vmatpush1.xpose.msra.mxu0 0.0
    %917 = vmatprep.subr.mxu0 0.0
    %918 = vmatpush1.xpose.msra.mxu0 0.0
    %919 = vmatprep.subr.mxu0 0.0
    %920 = vmatpush1.xpose.msra.mxu0 0.0
    %921 = vmatprep.subr.mxu0 0.0
    %922 = vmatpush1.xpose.msra.mxu0 0.0
    %923 = vmatprep.subr.mxu0 0.0
    %924 = vmatpush1.xpose.msra.mxu0 0.0
    %925 = vmatprep.subr.mxu0 0.0
    %926 = vmatpush1.xpose.msra.mxu0 0.0
    %927 = vmatprep.subr.mxu0 0.0
    %928 = vmatpush1.xpose.msra.mxu0 0.0
    %929 = vmatprep.mubr.f32.mxu0 0.0
    %930 = vmatmul.mubr.f32.gmra.mrb[0].mxu0 %v860
    %v931 = vpop.f32.mrb[0].mxu0
    %v932 = vadd.f32 0.0, %v931
    %v933 = vpop.f32.mrb[0].mxu0
    %934 = vdwg.mxu0
    %v935 = vsel %vm630, %v704, -inf
    %936 = vmax.xlane.f32.xlu0 %v935
    %v937 = vpop.xlane.xlu0 %936
    %v938 = vsel %vm630, %v780, -inf
    %939 = vmax.xlane.f32.xlu0 %v938
    %v940 = vpop.xlane.xlu0 %939
    %v941 = vsel %vm630, %v856, -inf
    %942 = vmax.xlane.f32.xlu0 %v941
    %v943 = vpop.xlane.xlu0 %942
    %v944 = vsel %vm630, %v932, -inf
    %945 = vmax.xlane.f32.xlu0 %v944
    %v946 = vpop.xlane.xlu0 %945
    %v947 = vsub.f32 %v704, %v937
    %v948 = vsub.f32 %v780, %v940
    %v949 = vsub.f32 %v856, %v943
    %v950 = vsub.f32 %v932, %v946
    %v951 = vmul.f32 %v947, 1.442695
    %v952 = vpow.pop %v951
    %v953 = vmul.f32 %v948, 1.442695
    %v954 = vpow.pop %v953
    %v955 = vmul.f32 %v949, 1.442695
    %v956 = vpow.pop %v955
    %v957 = vmul.f32 %v950, 1.442695
    %v958 = vpow.pop %v957
    %v959 = vsel %vm630, %v952, 0.0
    %960 = vadd.xlane.f32.xlu0 %v959
    %v961 = vpop.xlane.xlu0 %960
    %v962 = vsel %vm630, %v954, 0.0
    %963 = vadd.xlane.f32.xlu0 %v962
    %v964 = vpop.xlane.xlu0 %963
    %v965 = vsel %vm630, %v956, 0.0
    %966 = vadd.xlane.f32.xlu0 %v965
    %v967 = vpop.xlane.xlu0 %966
    %v968 = vsel %vm630, %v958, 0.0
    %969 = vadd.xlane.f32.xlu0 %v968
    %v970 = vpop.xlane.xlu0 %969
    %v971 = vrcp.pop %v961
    %v972 = vrcp.pop %v964
    %v973 = vrcp.pop %v967
    %v974 = vrcp.pop %v970
    %v975 = vmul.f32 %v952, %v971
    %v976 = vmul.f32 %v954, %v972
    %v977 = vmul.f32 %v956, %v973
    %v978 = vmul.f32 %v958, %v974
    %v980 = vsel %vm630, %v975, 0
    %982 = vmatprep.subr.mxu0 0.0
    %983 = vmatpush1.msra.mxu0 %v626
    %984 = vmatprep.subr.mxu0 0.0
    %985 = vmatpush1.msra.mxu0 0.0
    %986 = vmatprep.subr.mxu0 0.0
    %987 = vmatpush1.msra.mxu0 0.0
    %988 = vmatprep.subr.mxu0 0.0
    %989 = vmatpush1.msra.mxu0 0.0
    %990 = vmatprep.subr.mxu0 0.0
    %991 = vmatpush1.msra.mxu0 0.0
    %992 = vmatprep.subr.mxu0 0.0
    %993 = vmatpush1.msra.mxu0 0.0
    %994 = vmatprep.subr.mxu0 0.0
    %995 = vmatpush1.msra.mxu0 0.0
    %996 = vmatprep.subr.mxu0 0.0
    %997 = vmatpush1.msra.mxu0 0.0
    %998 = vmatprep.subr.mxu0 0.0
    %999 = vmatpush1.msra.mxu0 0.0
    %1000 = vmatprep.subr.mxu0 0.0
    %1001 = vmatpush1.msra.mxu0 0.0
    %1002 = vmatprep.subr.mxu0 0.0
    %1003 = vmatpush1.msra.mxu0 0.0
    %1004 = vmatprep.subr.mxu0 0.0
    %1005 = vmatpush1.msra.mxu0 0.0
    %1006 = vmatprep.subr.mxu0 0.0
    %1007 = vmatpush1.msra.mxu0 0.0
    %1008 = vmatprep.subr.mxu0 0.0
    %1009 = vmatpush1.msra.mxu0 0.0
    %1010 = vmatprep.subr.mxu0 0.0
    %1011 = vmatpush1.msra.mxu0 0.0
    %1012 = vmatprep.subr.mxu0 0.0
    %1013 = vmatpush1.msra.mxu0 0.0
    %1014 = vmatprep.subr.mxu0 0.0
    %1015 = vmatpush1.msra.mxu0 0.0
    %1016 = vmatprep.subr.mxu0 0.0
    %1017 = vmatpush1.msra.mxu0 0.0
    %1018 = vmatprep.subr.mxu0 0.0
    %1019 = vmatpush1.msra.mxu0 0.0
    %1020 = vmatprep.subr.mxu0 0.0
    %1021 = vmatpush1.msra.mxu0 0.0
    %1022 = vmatprep.subr.mxu0 0.0
    %1023 = vmatpush1.msra.mxu0 0.0
    %1024 = vmatprep.subr.mxu0 0.0
    %1025 = vmatpush1.msra.mxu0 0.0
    %1026 = vmatprep.subr.mxu0 0.0
    %1027 = vmatpush1.msra.mxu0 0.0
    %1028 = vmatprep.subr.mxu0 0.0
    %1029 = vmatpush1.msra.mxu0 0.0
    %1030 = vmatprep.subr.mxu0 0.0
    %1031 = vmatpush1.msra.mxu0 0.0
    %1032 = vmatprep.subr.mxu0 0.0
    %1033 = vmatpush1.msra.mxu0 0.0
    %1034 = vmatprep.subr.mxu0 0.0
    %1035 = vmatpush1.msra.mxu0 0.0
    %1036 = vmatprep.subr.mxu0 0.0
    %1037 = vmatpush1.msra.mxu0 0.0
    %1038 = vmatprep.subr.mxu0 0.0
    %1039 = vmatpush1.msra.mxu0 0.0
    %1040 = vmatprep.subr.mxu0 0.0
    %1041 = vmatpush1.msra.mxu0 0.0
    %1042 = vmatprep.subr.mxu0 0.0
    %1043 = vmatpush1.msra.mxu0 0.0
    %1044 = vmatprep.subr.mxu0 0.0
    %1045 = vmatpush1.msra.mxu0 0.0
    %1046 = vmatprep.mubr.f32.mxu0 0.0
    %1047 = vmatmul.mubr.f32.gmra.mrb[0].mxu0 %v980
    %v1048 = vpop.f32.mrb[0].mxu0
    %v1049 = vadd.f32 0.0, %v1048
    %v1050 = vpop.f32.mrb[0].mxu0
    %1051 = vdwg.mxu0
    %v1053 = vsel %vm630, %v976, 0
    %1055 = vmatprep.subr.mxu0 0.0
    %1056 = vmatpush1.msra.mxu0 %v627
    %1057 = vmatprep.subr.mxu0 0.0
    %1058 = vmatpush1.msra.mxu0 0.0
    %1059 = vmatprep.subr.mxu0 0.0
    %1060 = vmatpush1.msra.mxu0 0.0
    %1061 = vmatprep.subr.mxu0 0.0
    %1062 = vmatpush1.msra.mxu0 0.0
    %1063 = vmatprep.subr.mxu0 0.0
    %1064 = vmatpush1.msra.mxu0 0.0
    %1065 = vmatprep.subr.mxu0 0.0
    %1066 = vmatpush1.msra.mxu0 0.0
    %1067 = vmatprep.subr.mxu0 0.0
    %1068 = vmatpush1.msra.mxu0 0.0
    %1069 = vmatprep.subr.mxu0 0.0
    %1070 = vmatpush1.msra.mxu0 0.0
    %1071 = vmatprep.subr.mxu0 0.0
    %1072 = vmatpush1.msra.mxu0 0.0
    %1073 = vmatprep.subr.mxu0 0.0
    %1074 = vmatpush1.msra.mxu0 0.0
    %1075 = vmatprep.subr.mxu0 0.0
    %1076 = vmatpush1.msra.mxu0 0.0
    %1077 = vmatprep.subr.mxu0 0.0
    %1078 = vmatpush1.msra.mxu0 0.0
    %1079 = vmatprep.subr.mxu0 0.0
    %1080 = vmatpush1.msra.mxu0 0.0
    %1081 = vmatprep.subr.mxu0 0.0
    %1082 = vmatpush1.msra.mxu0 0.0
    %1083 = vmatprep.subr.mxu0 0.0
    %1084 = vmatpush1.msra.mxu0 0.0
    %1085 = vmatprep.subr.mxu0 0.0
    %1086 = vmatpush1.msra.mxu0 0.0
    %1087 = vmatprep.subr.mxu0 0.0
    %1088 = vmatpush1.msra.mxu0 0.0
    %1089 = vmatprep.subr.mxu0 0.0
    %1090 = vmatpush1.msra.mxu0 0.0
    %1091 = vmatprep.subr.mxu0 0.0
    %1092 = vmatpush1.msra.mxu0 0.0
    %1093 = vmatprep.subr.mxu0 0.0
    %1094 = vmatpush1.msra.mxu0 0.0
    %1095 = vmatprep.subr.mxu0 0.0
    %1096 = vmatpush1.msra.mxu0 0.0
    %1097 = vmatprep.subr.mxu0 0.0
    %1098 = vmatpush1.msra.mxu0 0.0
    %1099 = vmatprep.subr.mxu0 0.0
    %1100 = vmatpush1.msra.mxu0 0.0
    %1101 = vmatprep.subr.mxu0 0.0
    %1102 = vmatpush1.msra.mxu0 0.0
    %1103 = vmatprep.subr.mxu0 0.0
    %1104 = vmatpush1.msra.mxu0 0.0
    %1105 = vmatprep.subr.mxu0 0.0
    %1106 = vmatpush1.msra.mxu0 0.0
    %1107 = vmatprep.subr.mxu0 0.0
    %1108 = vmatpush1.msra.mxu0 0.0
    %1109 = vmatprep.subr.mxu0 0.0
    %1110 = vmatpush1.msra.mxu0 0.0
    %1111 = vmatprep.subr.mxu0 0.0
    %1112 = vmatpush1.msra.mxu0 0.0
    %1113 = vmatprep.subr.mxu0 0.0
    %1114 = vmatpush1.msra.mxu0 0.0
    %1115 = vmatprep.subr.mxu0 0.0
    %1116 = vmatpush1.msra.mxu0 0.0
    %1117 = vmatprep.subr.mxu0 0.0
    %1118 = vmatpush1.msra.mxu0 0.0
    %1119 = vmatprep.mubr.f32.mxu0 0.0
    %1120 = vmatmul.mubr.f32.gmra.mrb[0].mxu0 %v1053
    %v1121 = vpop.f32.mrb[0].mxu0
    %v1122 = vadd.f32 0.0, %v1121
    %v1123 = vpop.f32.mrb[0].mxu0
    %1124 = vdwg.mxu0
    %v1126 = vsel %vm630, %v977, 0
    %1128 = vmatprep.subr.mxu0 0.0
    %1129 = vmatpush1.msra.mxu0 %v628
    %1130 = vmatprep.subr.mxu0 0.0
    %1131 = vmatpush1.msra.mxu0 0.0
    %1132 = vmatprep.subr.mxu0 0.0
    %1133 = vmatpush1.msra.mxu0 0.0
    %1134 = vmatprep.subr.mxu0 0.0
    %1135 = vmatpush1.msra.mxu0 0.0
    %1136 = vmatprep.subr.mxu0 0.0
    %1137 = vmatpush1.msra.mxu0 0.0
    %1138 = vmatprep.subr.mxu0 0.0
    %1139 = vmatpush1.msra.mxu0 0.0
    %1140 = vmatprep.subr.mxu0 0.0
    %1141 = vmatpush1.msra.mxu0 0.0
    %1142 = vmatprep.subr.mxu0 0.0
    %1143 = vmatpush1.msra.mxu0 0.0
    %1144 = vmatprep.subr.mxu0 0.0
    %1145 = vmatpush1.msra.mxu0 0.0
    %1146 = vmatprep.subr.mxu0 0.0
    %1147 = vmatpush1.msra.mxu0 0.0
    %1148 = vmatprep.subr.mxu0 0.0
    %1149 = vmatpush1.msra.mxu0 0.0
    %1150 = vmatprep.subr.mxu0 0.0
    %1151 = vmatpush1.msra.mxu0 0.0
    %1152 = vmatprep.subr.mxu0 0.0
    %1153 = vmatpush1.msra.mxu0 0.0
    %1154 = vmatprep.subr.mxu0 0.0
    %1155 = vmatpush1.msra.mxu0 0.0
    %1156 = vmatprep.subr.mxu0 0.0
    %1157 = vmatpush1.msra.mxu0 0.0
    %1158 = vmatprep.subr.mxu0 0.0
    %1159 = vmatpush1.msra.mxu0 0.0
    %1160 = vmatprep.subr.mxu0 0.0
    %1161 = vmatpush1.msra.mxu0 0.0
    %1162 = vmatprep.subr.mxu0 0.0
    %1163 = vmatpush1.msra.mxu0 0.0
    %1164 = vmatprep.subr.mxu0 0.0
    %1165 = vmatpush1.msra.mxu0 0.0
    %1166 = vmatprep.subr.mxu0 0.0
    %1167 = vmatpush1.msra.mxu0 0.0
    %1168 = vmatprep.subr.mxu0 0.0
    %1169 = vmatpush1.msra.mxu0 0.0
    %1170 = vmatprep.subr.mxu0 0.0
    %1171 = vmatpush1.msra.mxu0 0.0
    %1172 = vmatprep.subr.mxu0 0.0
    %1173 = vmatpush1.msra.mxu0 0.0
    %1174 = vmatprep.subr.mxu0 0.0
    %1175 = vmatpush1.msra.mxu0 0.0
    %1176 = vmatprep.subr.mxu0 0.0
    %1177 = vmatpush1.msra.mxu0 0.0
    %1178 = vmatprep.subr.mxu0 0.0
    %1179 = vmatpush1.msra.mxu0 0.0
    %1180 = vmatprep.subr.mxu0 0.0
    %1181 = vmatpush1.msra.mxu0 0.0
    %1182 = vmatprep.subr.mxu0 0.0
    %1183 = vmatpush1.msra.mxu0 0.0
    %1184 = vmatprep.subr.mxu0 0.0
    %1185 = vmatpush1.msra.mxu0 0.0
    %1186 = vmatprep.subr.mxu0 0.0
    %1187 = vmatpush1.msra.mxu0 0.0
    %1188 = vmatprep.subr.mxu0 0.0
    %1189 = vmatpush1.msra.mxu0 0.0
    %1190 = vmatprep.subr.mxu0 0.0
    %1191 = vmatpush1.msra.mxu0 0.0
    %1192 = vmatprep.mubr.f32.mxu0 0.0
    %1193 = vmatmul.mubr.f32.gmra.mrb[0].mxu0 %v1126
    %v1194 = vpop.f32.mrb[0].mxu0
    %v1195 = vadd.f32 0.0, %v1194
    %v1196 = vpop.f32.mrb[0].mxu0
    %1197 = vdwg.mxu0
    %v1199 = vsel %vm630, %v978, 0
    %1201 = vmatprep.subr.mxu0 0.0
    %1202 = vmatpush1.msra.mxu0 %v629
    %1203 = vmatprep.subr.mxu0 0.0
    %1204 = vmatpush1.msra.mxu0 0.0
    %1205 = vmatprep.subr.mxu0 0.0
    %1206 = vmatpush1.msra.mxu0 0.0
    %1207 = vmatprep.subr.mxu0 0.0
    %1208 = vmatpush1.msra.mxu0 0.0
    %1209 = vmatprep.subr.mxu0 0.0
    %1210 = vmatpush1.msra.mxu0 0.0
    %1211 = vmatprep.subr.mxu0 0.0
    %1212 = vmatpush1.msra.mxu0 0.0
    %1213 = vmatprep.subr.mxu0 0.0
    %1214 = vmatpush1.msra.mxu0 0.0
    %1215 = vmatprep.subr.mxu0 0.0
    %1216 = vmatpush1.msra.mxu0 0.0
    %1217 = vmatprep.subr.mxu0 0.0
    %1218 = vmatpush1.msra.mxu0 0.0
    %1219 = vmatprep.subr.mxu0 0.0
    %1220 = vmatpush1.msra.mxu0 0.0
    %1221 = vmatprep.subr.mxu0 0.0
    %1222 = vmatpush1.msra.mxu0 0.0
    %1223 = vmatprep.subr.mxu0 0.0
    %1224 = vmatpush1.msra.mxu0 0.0
    %1225 = vmatprep.subr.mxu0 0.0
    %1226 = vmatpush1.msra.mxu0 0.0
    %1227 = vmatprep.subr.mxu0 0.0
    %1228 = vmatpush1.msra.mxu0 0.0
    %1229 = vmatprep.subr.mxu0 0.0
    %1230 = vmatpush1.msra.mxu0 0.0
    %1231 = vmatprep.subr.mxu0 0.0
    %1232 = vmatpush1.msra.mxu0 0.0
    %1233 = vmatprep.subr.mxu0 0.0
    %1234 = vmatpush1.msra.mxu0 0.0
    %1235 = vmatprep.subr.mxu0 0.0
    %1236 = vmatpush1.msra.mxu0 0.0
    %1237 = vmatprep.subr.mxu0 0.0
    %1238 = vmatpush1.msra.mxu0 0.0
    %1239 = vmatprep.subr.mxu0 0.0
    %1240 = vmatpush1.msra.mxu0 0.0
    %1241 = vmatprep.subr.mxu0 0.0
    %1242 = vmatpush1.msra.mxu0 0.0
    %1243 = vmatprep.subr.mxu0 0.0
    %1244 = vmatpush1.msra.mxu0 0.0
    %1245 = vmatprep.subr.mxu0 0.0
    %1246 = vmatpush1.msra.mxu0 0.0
    %1247 = vmatprep.subr.mxu0 0.0
    %1248 = vmatpush1.msra.mxu0 0.0
    %1249 = vmatprep.subr.mxu0 0.0
    %1250 = vmatpush1.msra.mxu0 0.0
    %1251 = vmatprep.subr.mxu0 0.0
    %1252 = vmatpush1.msra.mxu0 0.0
    %1253 = vmatprep.subr.mxu0 0.0
    %1254 = vmatpush1.msra.mxu0 0.0
    %1255 = vmatprep.subr.mxu0 0.0
    %1256 = vmatpush1.msra.mxu0 0.0
    %1257 = vmatprep.subr.mxu0 0.0
    %1258 = vmatpush1.msra.mxu0 0.0
    %1259 = vmatprep.subr.mxu0 0.0
    %1260 = vmatpush1.msra.mxu0 0.0
    %1261 = vmatprep.subr.mxu0 0.0
    %1262 = vmatpush1.msra.mxu0 0.0
    %1263 = vmatprep.subr.mxu0 0.0
    %1264 = vmatpush1.msra.mxu0 0.0
    %1265 = vmatprep.mubr.f32.mxu0 0.0
    %1266 = vmatmul.mubr.f32.gmra.mrb[0].mxu0 %v1199
    %v1267 = vpop.f32.mrb[0].mxu0
    %v1268 = vadd.f32 0.0, %v1267
    %v1269 = vpop.f32.mrb[0].mxu0
    %1270 = vdwg.mxu0
    %v1271 = vcombine.low %v1049, %v1195
    %v1272 = vcombine.high %v1049, %v1195
    %v1274 = vunpack.c.l.s4 1983009808
    %v1275 = vunpack.c.0.s8 %v1274
    %v1276 = vlaneseq
    %v1277 = vshrl.u32 %v1276, 7
    %v1278 = vsub.s32 %v1275, %v1277
    %v1279 = vrot.slane %v1271, %v1278
    %v1281 = vunpack.c.l.s4 1983009808
    %v1282 = vunpack.c.0.s8 %v1281
    %v1283 = vlaneseq
    %v1284 = vshrl.u32 %v1283, 7
    %v1285 = vsub.s32 %v1282, %v1284
    %v1286 = vrot.slane %v1272, %v1285
    %v1287 = vcombine.low %v1122, %v1268
    %v1288 = vcombine.high %v1122, %v1268
    %v1290 = vunpack.c.l.s4 1983009808
    %v1291 = vunpack.c.0.s8 %v1290
    %v1292 = vlaneseq
    %v1293 = vshrl.u32 %v1292, 7
    %v1294 = vsub.s32 %v1291, %v1293
    %v1295 = vrot.slane %v1287, %v1294
    %v1297 = vunpack.c.l.s4 1983009808
    %v1298 = vunpack.c.0.s8 %v1297
    %v1299 = vlaneseq
    %v1300 = vshrl.u32 %v1299, 7
    %v1301 = vsub.s32 %v1298, %v1300
    %v1302 = vrot.slane %v1288, %v1301
    %v1303 = vcombine.low %v1279, %v1295
    %v1304 = vcombine.high %v1279, %v1295
    %v1306 = vunpack.c.l.s4 1934713408
    %v1307 = vunpack.c.0.s8 %v1306
    %v1308 = vlaneseq
    %v1309 = vshrl.u32 %v1308, 7
    %v1310 = vsub.s32 %v1307, %v1309
    %v1311 = vrot.slane %v1303, %v1310
    %v1313 = vunpack.c.l.s4 1934713408
    %v1314 = vunpack.c.0.s8 %v1313
    %v1315 = vlaneseq
    %v1316 = vshrl.u32 %v1315, 7
    %v1317 = vsub.s32 %v1314, %v1316
    %v1318 = vrot.slane %v1304, %v1317
    %v1319 = vcombine.low %v1286, %v1302
    %v1320 = vcombine.high %v1286, %v1302
    %v1322 = vunpack.c.l.s4 1934713408
    %v1323 = vunpack.c.0.s8 %v1322
    %v1324 = vlaneseq
    %v1325 = vshrl.u32 %v1324, 7
    %v1326 = vsub.s32 %v1323, %v1325
    %v1327 = vrot.slane %v1319, %v1326
    %v1329 = vunpack.c.l.s4 1934713408
    %v1330 = vunpack.c.0.s8 %v1329
    %v1331 = vlaneseq
    %v1332 = vshrl.u32 %v1331, 7
    %v1333 = vsub.s32 %v1330, %v1332
    %v1334 = vrot.slane %v1320, %v1333
    %v1335 = vcombine.high %v1311, 0.0
    %v1336 = vcombine.high %v1318, 0.0
    %v1337 = vcombine.high %v1327, 0.0
    %v1338 = vcombine.high %v1334, 0.0
    %v1339 = vcombine.low %v1311, %v1318
    %v1341 = vunpack.c.l.s4 1983009808
    %v1342 = vunpack.c.0.s8 %v1341
    %v1343 = vlaneseq
    %v1344 = vshrl.u32 %v1343, 7
    %v1345 = vsub.s32 %v1342, %v1344
    %v1346 = vrot.slane %v1339, %v1345
    %v1347 = vcombine.low %v1335, %v1336
    %v1349 = vunpack.c.l.s4 1983009808
    %v1350 = vunpack.c.0.s8 %v1349
    %v1351 = vlaneseq
    %v1352 = vshrl.u32 %v1351, 7
    %v1353 = vsub.s32 %v1350, %v1352
    %v1354 = vrot.slane %v1347, %v1353
    %v1355 = vcombine.low %v1327, %v1334
    %v1357 = vunpack.c.l.s4 1983009808
    %v1358 = vunpack.c.0.s8 %v1357
    %v1359 = vlaneseq
    %v1360 = vshrl.u32 %v1359, 7
    %v1361 = vsub.s32 %v1358, %v1360
    %v1362 = vrot.slane %v1355, %v1361
    %v1363 = vcombine.low %v1337, %v1338
    %v1365 = vunpack.c.l.s4 1983009808
    %v1366 = vunpack.c.0.s8 %v1365
    %v1367 = vlaneseq
    %v1368 = vshrl.u32 %v1367, 7
    %v1369 = vsub.s32 %v1366, %v1368
    %v1370 = vrot.slane %v1363, %v1369
    %v1371 = vcombine.low %v1346, %v1354
    %v1372 = vcombine.high %v1346, %v1354
    %v1374 = vunpack.c.l.s4 1934713408
    %v1375 = vunpack.c.0.s8 %v1374
    %v1376 = vlaneseq
    %v1377 = vshrl.u32 %v1376, 7
    %v1378 = vsub.s32 %v1375, %v1377
    %v1379 = vrot.slane %v1371, %v1378
    %v1381 = vunpack.c.l.s4 1934713408
    %v1382 = vunpack.c.0.s8 %v1381
    %v1383 = vlaneseq
    %v1384 = vshrl.u32 %v1383, 7
    %v1385 = vsub.s32 %v1382, %v1384
    %v1386 = vrot.slane %v1372, %v1385
    %v1387 = vcombine.low %v1362, %v1370
    %v1388 = vcombine.high %v1362, %v1370
    %v1390 = vunpack.c.l.s4 1934713408
    %v1391 = vunpack.c.0.s8 %v1390
    %v1392 = vlaneseq
    %v1393 = vshrl.u32 %v1392, 7
    %v1394 = vsub.s32 %v1391, %v1393
    %v1395 = vrot.slane %v1387, %v1394
    %v1397 = vunpack.c.l.s4 1934713408
    %v1398 = vunpack.c.0.s8 %v1397
    %v1399 = vlaneseq
    %v1400 = vshrl.u32 %v1399, 7
    %v1401 = vsub.s32 %v1398, %v1400
    %v1402 = vrot.slane %v1388, %v1401
    %v1403 = vcombine.low %v1379, %v1395
    %v1404 = vcombine.high %v1379, %v1395
    %v1405 = vcombine.low %v1386, %v1402
    %v1406 = vcombine.high %v1386, %v1402
    %1408 = vrot.lane.b32.xlu0 %v1404, 8
    %v1409 = vpop.permute.xlu0 %1408
    %1412 = vrot.lane.b32.xlu0 %v1405, 16
    %v1413 = vpop.permute.xlu0 %1412
    %1416 = vrot.lane.b32.xlu0 %v1406, 24
    %v1417 = vpop.permute.xlu0 %1416
    %v1419 = vsel %vm630, %v1403, %v1409
    %vm1420 = vcmask 130048
    %v1421 = vsel %vm1420, %v1419, %v1413
    %vm1422 = vcmask 195584
    %v1423 = vsel %vm1422, %v1421, %v1417
    %1425 = vrot.lane.b32.xlu0 %v185, 120
    %v1426 = vpop.permute.xlu0 %1425
    %1428 = vrot.lane.b32.xlu0 %v185, 112
    %v1429 = vpop.permute.xlu0 %1428
    %1431 = vrot.lane.b32.xlu0 %v185, 104
    %v1432 = vpop.permute.xlu0 %1431
    %v1434 = vcombine.low %v185, %v1429
    %v1435 = vcombine.high %v185, %v1429
    %v1437 = vunpack.c.l.s4 1983009808
    %v1438 = vunpack.c.0.s8 %v1437
    %v1439 = vlaneseq
    %v1440 = vshrl.u32 %v1439, 7
    %v1441 = vsub.s32 %v1438, %v1440
    %v1442 = vrot.slane %v1434, %v1441
    %v1444 = vunpack.c.l.s4 1983009808
    %v1445 = vunpack.c.0.s8 %v1444
    %v1446 = vlaneseq
    %v1447 = vshrl.u32 %v1446, 7
    %v1448 = vsub.s32 %v1445, %v1447
    %v1449 = vrot.slane %v1435, %v1448
    %v1450 = vcombine.low %v1426, %v1432
    %v1451 = vcombine.high %v1426, %v1432
    %v1453 = vunpack.c.l.s4 1983009808
    %v1454 = vunpack.c.0.s8 %v1453
    %v1455 = vlaneseq
    %v1456 = vshrl.u32 %v1455, 7
    %v1457 = vsub.s32 %v1454, %v1456
    %v1458 = vrot.slane %v1450, %v1457
    %v1460 = vunpack.c.l.s4 1983009808
    %v1461 = vunpack.c.0.s8 %v1460
    %v1462 = vlaneseq
    %v1463 = vshrl.u32 %v1462, 7
    %v1464 = vsub.s32 %v1461, %v1463
    %v1465 = vrot.slane %v1451, %v1464
    %v1466 = vcombine.low %v1442, %v1458
    %v1467 = vcombine.high %v1442, %v1458
    %v1469 = vunpack.c.l.s4 1934713408
    %v1470 = vunpack.c.0.s8 %v1469
    %v1471 = vlaneseq
    %v1472 = vshrl.u32 %v1471, 7
    %v1473 = vsub.s32 %v1470, %v1472
    %v1474 = vrot.slane %v1466, %v1473
    %v1476 = vunpack.c.l.s4 1934713408
    %v1477 = vunpack.c.0.s8 %v1476
    %v1478 = vlaneseq
    %v1479 = vshrl.u32 %v1478, 7
    %v1480 = vsub.s32 %v1477, %v1479
    %v1481 = vrot.slane %v1467, %v1480
    %v1482 = vcombine.low %v1449, %v1465
    %v1483 = vcombine.high %v1449, %v1465
    %v1485 = vunpack.c.l.s4 1934713408
    %v1486 = vunpack.c.0.s8 %v1485
    %v1487 = vlaneseq
    %v1488 = vshrl.u32 %v1487, 7
    %v1489 = vsub.s32 %v1486, %v1488
    %v1490 = vrot.slane %v1482, %v1489
    %v1492 = vunpack.c.l.s4 1934713408
    %v1493 = vunpack.c.0.s8 %v1492
    %v1494 = vlaneseq
    %v1495 = vshrl.u32 %v1494, 7
    %v1496 = vsub.s32 %v1493, %v1495
    %v1497 = vrot.slane %v1483, %v1496
    %v1498 = vcombine.high %v1474, 0.0
    %v1499 = vcombine.high %v1481, 0.0
    %v1500 = vcombine.high %v1490, 0.0
    %v1501 = vcombine.high %v1497, 0.0
    %v1502 = vcombine.low %v1474, %v1481
    %v1504 = vunpack.c.l.s4 1983009808
    %v1505 = vunpack.c.0.s8 %v1504
    %v1506 = vlaneseq
    %v1507 = vshrl.u32 %v1506, 7
    %v1508 = vsub.s32 %v1505, %v1507
    %v1509 = vrot.slane %v1502, %v1508
    %v1510 = vcombine.low %v1498, %v1499
    %v1512 = vunpack.c.l.s4 1983009808
    %v1513 = vunpack.c.0.s8 %v1512
    %v1514 = vlaneseq
    %v1515 = vshrl.u32 %v1514, 7
    %v1516 = vsub.s32 %v1513, %v1515
    %v1517 = vrot.slane %v1510, %v1516
    %v1518 = vcombine.low %v1490, %v1497
    %v1520 = vunpack.c.l.s4 1983009808
    %v1521 = vunpack.c.0.s8 %v1520
    %v1522 = vlaneseq
    %v1523 = vshrl.u32 %v1522, 7
    %v1524 = vsub.s32 %v1521, %v1523
    %v1525 = vrot.slane %v1518, %v1524
    %v1526 = vcombine.low %v1500, %v1501
    %v1528 = vunpack.c.l.s4 1983009808
    %v1529 = vunpack.c.0.s8 %v1528
    %v1530 = vlaneseq
    %v1531 = vshrl.u32 %v1530, 7
    %v1532 = vsub.s32 %v1529, %v1531
    %v1533 = vrot.slane %v1526, %v1532
    %v1534 = vcombine.low %v1509, %v1517
    %v1535 = vcombine.high %v1509, %v1517
    %v1537 = vunpack.c.l.s4 1934713408
    %v1538 = vunpack.c.0.s8 %v1537
    %v1539 = vlaneseq
    %v1540 = vshrl.u32 %v1539, 7
    %v1541 = vsub.s32 %v1538, %v1540
    %v1542 = vrot.slane %v1534, %v1541
    %v1544 = vunpack.c.l.s4 1934713408
    %v1545 = vunpack.c.0.s8 %v1544
    %v1546 = vlaneseq
    %v1547 = vshrl.u32 %v1546, 7
    %v1548 = vsub.s32 %v1545, %v1547
    %v1549 = vrot.slane %v1535, %v1548
    %v1550 = vcombine.low %v1525, %v1533
    %v1551 = vcombine.high %v1525, %v1533
    %v1553 = vunpack.c.l.s4 1934713408
    %v1554 = vunpack.c.0.s8 %v1553
    %v1555 = vlaneseq
    %v1556 = vshrl.u32 %v1555, 7
    %v1557 = vsub.s32 %v1554, %v1556
    %v1558 = vrot.slane %v1550, %v1557
    %v1560 = vunpack.c.l.s4 1934713408
    %v1561 = vunpack.c.0.s8 %v1560
    %v1562 = vlaneseq
    %v1563 = vshrl.u32 %v1562, 7
    %v1564 = vsub.s32 %v1561, %v1563
    %v1565 = vrot.slane %v1551, %v1564
    %v1566 = vcombine.low %v1542, %v1558
    %v1567 = vcombine.high %v1542, %v1558
    %v1568 = vcombine.low %v1549, %v1565
    %v1569 = vcombine.high %v1549, %v1565
    %1570 = vrot.lane.b32.xlu0 %v185, 96
    %v1571 = vpop.permute.xlu0 %1570
    %1572 = vrot.lane.b32.xlu0 %v1426, 96
    %v1573 = vpop.permute.xlu0 %1572
    %1574 = vrot.lane.b32.xlu0 %v1429, 96
    %v1575 = vpop.permute.xlu0 %1574
    %1576 = vrot.lane.b32.xlu0 %v1432, 96
    %v1577 = vpop.permute.xlu0 %1576
    %v1582 = vcombine.low %v1571, %v1575
    %v1583 = vcombine.high %v1571, %v1575
    %v1585 = vunpack.c.l.s4 1983009808
    %v1586 = vunpack.c.0.s8 %v1585
    %v1587 = vlaneseq
    %v1588 = vshrl.u32 %v1587, 7
    %v1589 = vsub.s32 %v1586, %v1588
    %v1590 = vrot.slane %v1582, %v1589
    %v1592 = vunpack.c.l.s4 1983009808
    %v1593 = vunpack.c.0.s8 %v1592
    %v1594 = vlaneseq
    %v1595 = vshrl.u32 %v1594, 7
    %v1596 = vsub.s32 %v1593, %v1595
    %v1597 = vrot.slane %v1583, %v1596
    %v1598 = vcombine.low %v1573, %v1577
    %v1599 = vcombine.high %v1573, %v1577
    %v1601 = vunpack.c.l.s4 1983009808
    %v1602 = vunpack.c.0.s8 %v1601
    %v1603 = vlaneseq
    %v1604 = vshrl.u32 %v1603, 7
    %v1605 = vsub.s32 %v1602, %v1604
    %v1606 = vrot.slane %v1598, %v1605
    %v1608 = vunpack.c.l.s4 1983009808
    %v1609 = vunpack.c.0.s8 %v1608
    %v1610 = vlaneseq
    %v1611 = vshrl.u32 %v1610, 7
    %v1612 = vsub.s32 %v1609, %v1611
    %v1613 = vrot.slane %v1599, %v1612
    %v1614 = vcombine.low %v1590, %v1606
    %v1615 = vcombine.high %v1590, %v1606
    %v1617 = vunpack.c.l.s4 1934713408
    %v1618 = vunpack.c.0.s8 %v1617
    %v1619 = vlaneseq
    %v1620 = vshrl.u32 %v1619, 7
    %v1621 = vsub.s32 %v1618, %v1620
    %v1622 = vrot.slane %v1614, %v1621
    %v1624 = vunpack.c.l.s4 1934713408
    %v1625 = vunpack.c.0.s8 %v1624
    %v1626 = vlaneseq
    %v1627 = vshrl.u32 %v1626, 7
    %v1628 = vsub.s32 %v1625, %v1627
    %v1629 = vrot.slane %v1615, %v1628
    %v1630 = vcombine.low %v1597, %v1613
    %v1631 = vcombine.high %v1597, %v1613
    %v1633 = vunpack.c.l.s4 1934713408
    %v1634 = vunpack.c.0.s8 %v1633
    %v1635 = vlaneseq
    %v1636 = vshrl.u32 %v1635, 7
    %v1637 = vsub.s32 %v1634, %v1636
    %v1638 = vrot.slane %v1630, %v1637
    %v1640 = vunpack.c.l.s4 1934713408
    %v1641 = vunpack.c.0.s8 %v1640
    %v1642 = vlaneseq
    %v1643 = vshrl.u32 %v1642, 7
    %v1644 = vsub.s32 %v1641, %v1643
    %v1645 = vrot.slane %v1631, %v1644
    %v1646 = vcombine.high %v1622, 0.0
    %v1647 = vcombine.high %v1629, 0.0
    %v1648 = vcombine.high %v1638, 0.0
    %v1649 = vcombine.high %v1645, 0.0
    %v1650 = vcombine.low %v1622, %v1629
    %v1652 = vunpack.c.l.s4 1983009808
    %v1653 = vunpack.c.0.s8 %v1652
    %v1654 = vlaneseq
    %v1655 = vshrl.u32 %v1654, 7
    %v1656 = vsub.s32 %v1653, %v1655
    %v1657 = vrot.slane %v1650, %v1656
    %v1658 = vcombine.low %v1646, %v1647
    %v1660 = vunpack.c.l.s4 1983009808
    %v1661 = vunpack.c.0.s8 %v1660
    %v1662 = vlaneseq
    %v1663 = vshrl.u32 %v1662, 7
    %v1664 = vsub.s32 %v1661, %v1663
    %v1665 = vrot.slane %v1658, %v1664
    %v1666 = vcombine.low %v1638, %v1645
    %v1668 = vunpack.c.l.s4 1983009808
    %v1669 = vunpack.c.0.s8 %v1668
    %v1670 = vlaneseq
    %v1671 = vshrl.u32 %v1670, 7
    %v1672 = vsub.s32 %v1669, %v1671
    %v1673 = vrot.slane %v1666, %v1672
    %v1674 = vcombine.low %v1648, %v1649
    %v1676 = vunpack.c.l.s4 1983009808
    %v1677 = vunpack.c.0.s8 %v1676
    %v1678 = vlaneseq
    %v1679 = vshrl.u32 %v1678, 7
    %v1680 = vsub.s32 %v1677, %v1679
    %v1681 = vrot.slane %v1674, %v1680
    %v1682 = vcombine.low %v1657, %v1665
    %v1683 = vcombine.high %v1657, %v1665
    %v1685 = vunpack.c.l.s4 1934713408
    %v1686 = vunpack.c.0.s8 %v1685
    %v1687 = vlaneseq
    %v1688 = vshrl.u32 %v1687, 7
    %v1689 = vsub.s32 %v1686, %v1688
    %v1690 = vrot.slane %v1682, %v1689
    %v1692 = vunpack.c.l.s4 1934713408
    %v1693 = vunpack.c.0.s8 %v1692
    %v1694 = vlaneseq
    %v1695 = vshrl.u32 %v1694, 7
    %v1696 = vsub.s32 %v1693, %v1695
    %v1697 = vrot.slane %v1683, %v1696
    %v1698 = vcombine.low %v1673, %v1681
    %v1699 = vcombine.high %v1673, %v1681
    %v1701 = vunpack.c.l.s4 1934713408
    %v1702 = vunpack.c.0.s8 %v1701
    %v1703 = vlaneseq
    %v1704 = vshrl.u32 %v1703, 7
    %v1705 = vsub.s32 %v1702, %v1704
    %v1706 = vrot.slane %v1698, %v1705
    %v1708 = vunpack.c.l.s4 1934713408
    %v1709 = vunpack.c.0.s8 %v1708
    %v1710 = vlaneseq
    %v1711 = vshrl.u32 %v1710, 7
    %v1712 = vsub.s32 %v1709, %v1711
    %v1713 = vrot.slane %v1699, %v1712
    %v1714 = vcombine.low %v1690, %v1706
    %v1715 = vcombine.high %v1690, %v1706
    %v1716 = vcombine.low %v1697, %v1713
    %v1717 = vcombine.high %v1697, %v1713
    %1718 = vrot.lane.b32.xlu0 %v185, 64
    %v1719 = vpop.permute.xlu0 %1718
    %1720 = vrot.lane.b32.xlu0 %v1426, 64
    %v1721 = vpop.permute.xlu0 %1720
    %1722 = vrot.lane.b32.xlu0 %v1429, 64
    %v1723 = vpop.permute.xlu0 %1722
    %1724 = vrot.lane.b32.xlu0 %v1432, 64
    %v1725 = vpop.permute.xlu0 %1724
    %v1730 = vcombine.low %v1719, %v1723
    %v1731 = vcombine.high %v1719, %v1723
    %v1733 = vunpack.c.l.s4 1983009808
    %v1734 = vunpack.c.0.s8 %v1733
    %v1735 = vlaneseq
    %v1736 = vshrl.u32 %v1735, 7
    %v1737 = vsub.s32 %v1734, %v1736
    %v1738 = vrot.slane %v1730, %v1737
    %v1740 = vunpack.c.l.s4 1983009808
    %v1741 = vunpack.c.0.s8 %v1740
    %v1742 = vlaneseq
    %v1743 = vshrl.u32 %v1742, 7
    %v1744 = vsub.s32 %v1741, %v1743
    %v1745 = vrot.slane %v1731, %v1744
    %v1746 = vcombine.low %v1721, %v1725
    %v1747 = vcombine.high %v1721, %v1725
    %v1749 = vunpack.c.l.s4 1983009808
    %v1750 = vunpack.c.0.s8 %v1749
    %v1751 = vlaneseq
    %v1752 = vshrl.u32 %v1751, 7
    %v1753 = vsub.s32 %v1750, %v1752
    %v1754 = vrot.slane %v1746, %v1753
    %v1756 = vunpack.c.l.s4 1983009808
    %v1757 = vunpack.c.0.s8 %v1756
    %v1758 = vlaneseq
    %v1759 = vshrl.u32 %v1758, 7
    %v1760 = vsub.s32 %v1757, %v1759
    %v1761 = vrot.slane %v1747, %v1760
    %v1762 = vcombine.low %v1738, %v1754
    %v1763 = vcombine.high %v1738, %v1754
    %v1765 = vunpack.c.l.s4 1934713408
    %v1766 = vunpack.c.0.s8 %v1765
    %v1767 = vlaneseq
    %v1768 = vshrl.u32 %v1767, 7
    %v1769 = vsub.s32 %v1766, %v1768
    %v1770 = vrot.slane %v1762, %v1769
    %v1772 = vunpack.c.l.s4 1934713408
    %v1773 = vunpack.c.0.s8 %v1772
    %v1774 = vlaneseq
    %v1775 = vshrl.u32 %v1774, 7
    %v1776 = vsub.s32 %v1773, %v1775
    %v1777 = vrot.slane %v1763, %v1776
    %v1778 = vcombine.low %v1745, %v1761
    %v1779 = vcombine.high %v1745, %v1761
    %v1781 = vunpack.c.l.s4 1934713408
    %v1782 = vunpack.c.0.s8 %v1781
    %v1783 = vlaneseq
    %v1784 = vshrl.u32 %v1783, 7
    %v1785 = vsub.s32 %v1782, %v1784
    %v1786 = vrot.slane %v1778, %v1785
    %v1788 = vunpack.c.l.s4 1934713408
    %v1789 = vunpack.c.0.s8 %v1788
    %v1790 = vlaneseq
    %v1791 = vshrl.u32 %v1790, 7
    %v1792 = vsub.s32 %v1789, %v1791
    %v1793 = vrot.slane %v1779, %v1792
    %v1794 = vcombine.high %v1770, 0.0
    %v1795 = vcombine.high %v1777, 0.0
    %v1796 = vcombine.high %v1786, 0.0
    %v1797 = vcombine.high %v1793, 0.0
    %v1798 = vcombine.low %v1770, %v1777
    %v1800 = vunpack.c.l.s4 1983009808
    %v1801 = vunpack.c.0.s8 %v1800
    %v1802 = vlaneseq
    %v1803 = vshrl.u32 %v1802, 7
    %v1804 = vsub.s32 %v1801, %v1803
    %v1805 = vrot.slane %v1798, %v1804
    %v1806 = vcombine.low %v1794, %v1795
    %v1808 = vunpack.c.l.s4 1983009808
    %v1809 = vunpack.c.0.s8 %v1808
    %v1810 = vlaneseq
    %v1811 = vshrl.u32 %v1810, 7
    %v1812 = vsub.s32 %v1809, %v1811
    %v1813 = vrot.slane %v1806, %v1812
    %v1814 = vcombine.low %v1786, %v1793
    %v1816 = vunpack.c.l.s4 1983009808
    %v1817 = vunpack.c.0.s8 %v1816
    %v1818 = vlaneseq
    %v1819 = vshrl.u32 %v1818, 7
    %v1820 = vsub.s32 %v1817, %v1819
    %v1821 = vrot.slane %v1814, %v1820
    %v1822 = vcombine.low %v1796, %v1797
    %v1824 = vunpack.c.l.s4 1983009808
    %v1825 = vunpack.c.0.s8 %v1824
    %v1826 = vlaneseq
    %v1827 = vshrl.u32 %v1826, 7
    %v1828 = vsub.s32 %v1825, %v1827
    %v1829 = vrot.slane %v1822, %v1828
    %v1830 = vcombine.low %v1805, %v1813
    %v1831 = vcombine.high %v1805, %v1813
    %v1833 = vunpack.c.l.s4 1934713408
    %v1834 = vunpack.c.0.s8 %v1833
    %v1835 = vlaneseq
    %v1836 = vshrl.u32 %v1835, 7
    %v1837 = vsub.s32 %v1834, %v1836
    %v1838 = vrot.slane %v1830, %v1837
    %v1840 = vunpack.c.l.s4 1934713408
    %v1841 = vunpack.c.0.s8 %v1840
    %v1842 = vlaneseq
    %v1843 = vshrl.u32 %v1842, 7
    %v1844 = vsub.s32 %v1841, %v1843
    %v1845 = vrot.slane %v1831, %v1844
    %v1846 = vcombine.low %v1821, %v1829
    %v1847 = vcombine.high %v1821, %v1829
    %v1849 = vunpack.c.l.s4 1934713408
    %v1850 = vunpack.c.0.s8 %v1849
    %v1851 = vlaneseq
    %v1852 = vshrl.u32 %v1851, 7
    %v1853 = vsub.s32 %v1850, %v1852
    %v1854 = vrot.slane %v1846, %v1853
    %v1856 = vunpack.c.l.s4 1934713408
    %v1857 = vunpack.c.0.s8 %v1856
    %v1858 = vlaneseq
    %v1859 = vshrl.u32 %v1858, 7
    %v1860 = vsub.s32 %v1857, %v1859
    %v1861 = vrot.slane %v1847, %v1860
    %v1862 = vcombine.low %v1838, %v1854
    %v1863 = vcombine.high %v1838, %v1854
    %v1864 = vcombine.low %v1845, %v1861
    %v1865 = vcombine.high %v1845, %v1861
    %v1867 = vsel %vm630, %v1566, 0
    %v1870 = vsel %vm630, %v1714, 0
    %1872 = vmatprep.subr.mxu0 0.0
    %1873 = vmatpush1.xpose.msra.mxu0 %v1870
    %1874 = vmatprep.subr.mxu0 0.0
    %1875 = vmatpush1.xpose.msra.mxu0 0.0
    %1876 = vmatprep.subr.mxu0 0.0
    %1877 = vmatpush1.xpose.msra.mxu0 0.0
    %1878 = vmatprep.subr.mxu0 0.0
    %1879 = vmatpush1.xpose.msra.mxu0 0.0
    %1880 = vmatprep.subr.mxu0 0.0
    %1881 = vmatpush1.xpose.msra.mxu0 0.0
    %1882 = vmatprep.subr.mxu0 0.0
    %1883 = vmatpush1.xpose.msra.mxu0 0.0
    %1884 = vmatprep.subr.mxu0 0.0
    %1885 = vmatpush1.xpose.msra.mxu0 0.0
    %1886 = vmatprep.subr.mxu0 0.0
    %1887 = vmatpush1.xpose.msra.mxu0 0.0
    %1888 = vmatprep.subr.mxu0 0.0
    %1889 = vmatpush1.xpose.msra.mxu0 0.0
    %1890 = vmatprep.subr.mxu0 0.0
    %1891 = vmatpush1.xpose.msra.mxu0 0.0
    %1892 = vmatprep.subr.mxu0 0.0
    %1893 = vmatpush1.xpose.msra.mxu0 0.0
    %1894 = vmatprep.subr.mxu0 0.0
    %1895 = vmatpush1.xpose.msra.mxu0 0.0
    %1896 = vmatprep.subr.mxu0 0.0
    %1897 = vmatpush1.xpose.msra.mxu0 0.0
    %1898 = vmatprep.subr.mxu0 0.0
    %1899 = vmatpush1.xpose.msra.mxu0 0.0
    %1900 = vmatprep.subr.mxu0 0.0
    %1901 = vmatpush1.xpose.msra.mxu0 0.0
    %1902 = vmatprep.subr.mxu0 0.0
    %1903 = vmatpush1.xpose.msra.mxu0 0.0
    %1904 = vmatprep.subr.mxu0 0.0
    %1905 = vmatpush1.xpose.msra.mxu0 0.0
    %1906 = vmatprep.subr.mxu0 0.0
    %1907 = vmatpush1.xpose.msra.mxu0 0.0
    %1908 = vmatprep.subr.mxu0 0.0
    %1909 = vmatpush1.xpose.msra.mxu0 0.0
    %1910 = vmatprep.subr.mxu0 0.0
    %1911 = vmatpush1.xpose.msra.mxu0 0.0
    %1912 = vmatprep.subr.mxu0 0.0
    %1913 = vmatpush1.xpose.msra.mxu0 0.0
    %1914 = vmatprep.subr.mxu0 0.0
    %1915 = vmatpush1.xpose.msra.mxu0 0.0
    %1916 = vmatprep.subr.mxu0 0.0
    %1917 = vmatpush1.xpose.msra.mxu0 0.0
    %1918 = vmatprep.subr.mxu0 0.0
    %1919 = vmatpush1.xpose.msra.mxu0 0.0
    %1920 = vmatprep.subr.mxu0 0.0
    %1921 = vmatpush1.xpose.msra.mxu0 0.0
    %1922 = vmatprep.subr.mxu0 0.0
    %1923 = vmatpush1.xpose.msra.mxu0 0.0
    %1924 = vmatprep.subr.mxu0 0.0
    %1925 = vmatpush1.xpose.msra.mxu0 0.0
    %1926 = vmatprep.subr.mxu0 0.0
    %1927 = vmatpush1.xpose.msra.mxu0 0.0
    %1928 = vmatprep.subr.mxu0 0.0
    %1929 = vmatpush1.xpose.msra.mxu0 0.0
    %1930 = vmatprep.subr.mxu0 0.0
    %1931 = vmatpush1.xpose.msra.mxu0 0.0
    %1932 = vmatprep.subr.mxu0 0.0
    %1933 = vmatpush1.xpose.msra.mxu0 0.0
    %1934 = vmatprep.subr.mxu0 0.0
    %1935 = vmatpush1.xpose.msra.mxu0 0.0
    %1936 = vmatprep.mubr.f32.mxu0 0.0
    %1937 = vmatmul.mubr.f32.gmra.mrb[0].mxu0 %v1867
    %v1938 = vpop.f32.mrb[0].mxu0
    %v1939 = vadd.f32 0.0, %v1938
    %v1940 = vpop.f32.mrb[0].mxu0
    %1941 = vdwg.mxu0
    %v1943 = vsel %vm630, %v1567, 0
    %v1946 = vsel %vm630, %v1715, 0
    %1948 = vmatprep.subr.mxu0 0.0
    %1949 = vmatpush1.xpose.msra.mxu0 %v1946
    %1950 = vmatprep.subr.mxu0 0.0
    %1951 = vmatpush1.xpose.msra.mxu0 0.0
    %1952 = vmatprep.subr.mxu0 0.0
    %1953 = vmatpush1.xpose.msra.mxu0 0.0
    %1954 = vmatprep.subr.mxu0 0.0
    %1955 = vmatpush1.xpose.msra.mxu0 0.0
    %1956 = vmatprep.subr.mxu0 0.0
    %1957 = vmatpush1.xpose.msra.mxu0 0.0
    %1958 = vmatprep.subr.mxu0 0.0
    %1959 = vmatpush1.xpose.msra.mxu0 0.0
    %1960 = vmatprep.subr.mxu0 0.0
    %1961 = vmatpush1.xpose.msra.mxu0 0.0
    %1962 = vmatprep.subr.mxu0 0.0
    %1963 = vmatpush1.xpose.msra.mxu0 0.0
    %1964 = vmatprep.subr.mxu0 0.0
    %1965 = vmatpush1.xpose.msra.mxu0 0.0
    %1966 = vmatprep.subr.mxu0 0.0
    %1967 = vmatpush1.xpose.msra.mxu0 0.0
    %1968 = vmatprep.subr.mxu0 0.0
    %1969 = vmatpush1.xpose.msra.mxu0 0.0
    %1970 = vmatprep.subr.mxu0 0.0
    %1971 = vmatpush1.xpose.msra.mxu0 0.0
    %1972 = vmatprep.subr.mxu0 0.0
    %1973 = vmatpush1.xpose.msra.mxu0 0.0
    %1974 = vmatprep.subr.mxu0 0.0
    %1975 = vmatpush1.xpose.msra.mxu0 0.0
    %1976 = vmatprep.subr.mxu0 0.0
    %1977 = vmatpush1.xpose.msra.mxu0 0.0
    %1978 = vmatprep.subr.mxu0 0.0
    %1979 = vmatpush1.xpose.msra.mxu0 0.0
    %1980 = vmatprep.subr.mxu0 0.0
    %1981 = vmatpush1.xpose.msra.mxu0 0.0
    %1982 = vmatprep.subr.mxu0 0.0
    %1983 = vmatpush1.xpose.msra.mxu0 0.0
    %1984 = vmatprep.subr.mxu0 0.0
    %1985 = vmatpush1.xpose.msra.mxu0 0.0
    %1986 = vmatprep.subr.mxu0 0.0
    %1987 = vmatpush1.xpose.msra.mxu0 0.0
    %1988 = vmatprep.subr.mxu0 0.0
    %1989 = vmatpush1.xpose.msra.mxu0 0.0
    %1990 = vmatprep.subr.mxu0 0.0
    %1991 = vmatpush1.xpose.msra.mxu0 0.0
    %1992 = vmatprep.subr.mxu0 0.0
    %1993 = vmatpush1.xpose.msra.mxu0 0.0
    %1994 = vmatprep.subr.mxu0 0.0
    %1995 = vmatpush1.xpose.msra.mxu0 0.0
    %1996 = vmatprep.subr.mxu0 0.0
    %1997 = vmatpush1.xpose.msra.mxu0 0.0
    %1998 = vmatprep.subr.mxu0 0.0
    %1999 = vmatpush1.xpose.msra.mxu0 0.0
    %2000 = vmatprep.subr.mxu0 0.0
    %2001 = vmatpush1.xpose.msra.mxu0 0.0
    %2002 = vmatprep.subr.mxu0 0.0
    %2003 = vmatpush1.xpose.msra.mxu0 0.0
    %2004 = vmatprep.subr.mxu0 0.0
    %2005 = vmatpush1.xpose.msra.mxu0 0.0
    %2006 = vmatprep.subr.mxu0 0.0
    %2007 = vmatpush1.xpose.msra.mxu0 0.0
    %2008 = vmatprep.subr.mxu0 0.0
    %2009 = vmatpush1.xpose.msra.mxu0 0.0
    %2010 = vmatprep.subr.mxu0 0.0
    %2011 = vmatpush1.xpose.msra.mxu0 0.0
    %2012 = vmatprep.mubr.f32.mxu0 0.0
    %2013 = vmatmul.mubr.f32.gmra.mrb[0].mxu0 %v1943
    %v2014 = vpop.f32.mrb[0].mxu0
    %v2015 = vadd.f32 0.0, %v2014
    %v2016 = vpop.f32.mrb[0].mxu0
    %2017 = vdwg.mxu0
    %v2019 = vsel %vm630, %v1568, 0
    %v2022 = vsel %vm630, %v1716, 0
    %2024 = vmatprep.subr.mxu0 0.0
    %2025 = vmatpush1.xpose.msra.mxu0 %v2022
    %2026 = vmatprep.subr.mxu0 0.0
    %2027 = vmatpush1.xpose.msra.mxu0 0.0
    %2028 = vmatprep.subr.mxu0 0.0
    %2029 = vmatpush1.xpose.msra.mxu0 0.0
    %2030 = vmatprep.subr.mxu0 0.0
    %2031 = vmatpush1.xpose.msra.mxu0 0.0
    %2032 = vmatprep.subr.mxu0 0.0
    %2033 = vmatpush1.xpose.msra.mxu0 0.0
    %2034 = vmatprep.subr.mxu0 0.0
    %2035 = vmatpush1.xpose.msra.mxu0 0.0
    %2036 = vmatprep.subr.mxu0 0.0
    %2037 = vmatpush1.xpose.msra.mxu0 0.0
    %2038 = vmatprep.subr.mxu0 0.0
    %2039 = vmatpush1.xpose.msra.mxu0 0.0
    %2040 = vmatprep.subr.mxu0 0.0
    %2041 = vmatpush1.xpose.msra.mxu0 0.0
    %2042 = vmatprep.subr.mxu0 0.0
    %2043 = vmatpush1.xpose.msra.mxu0 0.0
    %2044 = vmatprep.subr.mxu0 0.0
    %2045 = vmatpush1.xpose.msra.mxu0 0.0
    %2046 = vmatprep.subr.mxu0 0.0
    %2047 = vmatpush1.xpose.msra.mxu0 0.0
    %2048 = vmatprep.subr.mxu0 0.0
    %2049 = vmatpush1.xpose.msra.mxu0 0.0
    %2050 = vmatprep.subr.mxu0 0.0
    %2051 = vmatpush1.xpose.msra.mxu0 0.0
    %2052 = vmatprep.subr.mxu0 0.0
    %2053 = vmatpush1.xpose.msra.mxu0 0.0
    %2054 = vmatprep.subr.mxu0 0.0
    %2055 = vmatpush1.xpose.msra.mxu0 0.0
    %2056 = vmatprep.subr.mxu0 0.0
    %2057 = vmatpush1.xpose.msra.mxu0 0.0
    %2058 = vmatprep.subr.mxu0 0.0
    %2059 = vmatpush1.xpose.msra.mxu0 0.0
    %2060 = vmatprep.subr.mxu0 0.0
    %2061 = vmatpush1.xpose.msra.mxu0 0.0
    %2062 = vmatprep.subr.mxu0 0.0
    %2063 = vmatpush1.xpose.msra.mxu0 0.0
    %2064 = vmatprep.subr.mxu0 0.0
    %2065 = vmatpush1.xpose.msra.mxu0 0.0
    %2066 = vmatprep.subr.mxu0 0.0
    %2067 = vmatpush1.xpose.msra.mxu0 0.0
    %2068 = vmatprep.subr.mxu0 0.0
    %2069 = vmatpush1.xpose.msra.mxu0 0.0
    %2070 = vmatprep.subr.mxu0 0.0
    %2071 = vmatpush1.xpose.msra.mxu0 0.0
    %2072 = vmatprep.subr.mxu0 0.0
    %2073 = vmatpush1.xpose.msra.mxu0 0.0
    %2074 = vmatprep.subr.mxu0 0.0
    %2075 = vmatpush1.xpose.msra.mxu0 0.0
    %2076 = vmatprep.subr.mxu0 0.0
    %2077 = vmatpush1.xpose.msra.mxu0 0.0
    %2078 = vmatprep.subr.mxu0 0.0
    %2079 = vmatpush1.xpose.msra.mxu0 0.0
    %2080 = vmatprep.subr.mxu0 0.0
    %2081 = vmatpush1.xpose.msra.mxu0 0.0
    %2082 = vmatprep.subr.mxu0 0.0
    %2083 = vmatpush1.xpose.msra.mxu0 0.0
    %2084 = vmatprep.subr.mxu0 0.0
    %2085 = vmatpush1.xpose.msra.mxu0 0.0
    %2086 = vmatprep.subr.mxu0 0.0
    %2087 = vmatpush1.xpose.msra.mxu0 0.0
    %2088 = vmatprep.mubr.f32.mxu0 0.0
    %2089 = vmatmul.mubr.f32.gmra.mrb[0].mxu0 %v2019
    %v2090 = vpop.f32.mrb[0].mxu0
    %v2091 = vadd.f32 0.0, %v2090
    %v2092 = vpop.f32.mrb[0].mxu0
    %2093 = vdwg.mxu0
    %v2095 = vsel %vm630, %v1569, 0
    %v2098 = vsel %vm630, %v1717, 0
    %2100 = vmatprep.subr.mxu0 0.0
    %2101 = vmatpush1.xpose.msra.mxu0 %v2098
    %2102 = vmatprep.subr.mxu0 0.0
    %2103 = vmatpush1.xpose.msra.mxu0 0.0
    %2104 = vmatprep.subr.mxu0 0.0
    %2105 = vmatpush1.xpose.msra.mxu0 0.0
    %2106 = vmatprep.subr.mxu0 0.0
    %2107 = vmatpush1.xpose.msra.mxu0 0.0
    %2108 = vmatprep.subr.mxu0 0.0
    %2109 = vmatpush1.xpose.msra.mxu0 0.0
    %2110 = vmatprep.subr.mxu0 0.0
    %2111 = vmatpush1.xpose.msra.mxu0 0.0
    %2112 = vmatprep.subr.mxu0 0.0
    %2113 = vmatpush1.xpose.msra.mxu0 0.0
    %2114 = vmatprep.subr.mxu0 0.0
    %2115 = vmatpush1.xpose.msra.mxu0 0.0
    %2116 = vmatprep.subr.mxu0 0.0
    %2117 = vmatpush1.xpose.msra.mxu0 0.0
    %2118 = vmatprep.subr.mxu0 0.0
    %2119 = vmatpush1.xpose.msra.mxu0 0.0
    %2120 = vmatprep.subr.mxu0 0.0
    %2121 = vmatpush1.xpose.msra.mxu0 0.0
    %2122 = vmatprep.subr.mxu0 0.0
    %2123 = vmatpush1.xpose.msra.mxu0 0.0
    %2124 = vmatprep.subr.mxu0 0.0
    %2125 = vmatpush1.xpose.msra.mxu0 0.0
    %2126 = vmatprep.subr.mxu0 0.0
    %2127 = vmatpush1.xpose.msra.mxu0 0.0
    %2128 = vmatprep.subr.mxu0 0.0
    %2129 = vmatpush1.xpose.msra.mxu0 0.0
    %2130 = vmatprep.subr.mxu0 0.0
    %2131 = vmatpush1.xpose.msra.mxu0 0.0
    %2132 = vmatprep.subr.mxu0 0.0
    %2133 = vmatpush1.xpose.msra.mxu0 0.0
    %2134 = vmatprep.subr.mxu0 0.0
    %2135 = vmatpush1.xpose.msra.mxu0 0.0
    %2136 = vmatprep.subr.mxu0 0.0
    %2137 = vmatpush1.xpose.msra.mxu0 0.0
    %2138 = vmatprep.subr.mxu0 0.0
    %2139 = vmatpush1.xpose.msra.mxu0 0.0
    %2140 = vmatprep.subr.mxu0 0.0
    %2141 = vmatpush1.xpose.msra.mxu0 0.0
    %2142 = vmatprep.subr.mxu0 0.0
    %2143 = vmatpush1.xpose.msra.mxu0 0.0
    %2144 = vmatprep.subr.mxu0 0.0
    %2145 = vmatpush1.xpose.msra.mxu0 0.0
    %2146 = vmatprep.subr.mxu0 0.0
    %2147 = vmatpush1.xpose.msra.mxu0 0.0
    %2148 = vmatprep.subr.mxu0 0.0
    %2149 = vmatpush1.xpose.msra.mxu0 0.0
    %2150 = vmatprep.subr.mxu0 0.0
    %2151 = vmatpush1.xpose.msra.mxu0 0.0
    %2152 = vmatprep.subr.mxu0 0.0
    %2153 = vmatpush1.xpose.msra.mxu0 0.0
    %2154 = vmatprep.subr.mxu0 0.0
    %2155 = vmatpush1.xpose.msra.mxu0 0.0
    %2156 = vmatprep.subr.mxu0 0.0
    %2157 = vmatpush1.xpose.msra.mxu0 0.0
    %2158 = vmatprep.subr.mxu0 0.0
    %2159 = vmatpush1.xpose.msra.mxu0 0.0
    %2160 = vmatprep.subr.mxu0 0.0
    %2161 = vmatpush1.xpose.msra.mxu0 0.0
    %2162 = vmatprep.subr.mxu0 0.0
    %2163 = vmatpush1.xpose.msra.mxu0 0.0
    %2164 = vmatprep.mubr.f32.mxu0 0.0
    %2165 = vmatmul.mubr.f32.gmra.mrb[0].mxu0 %v2095
    %v2166 = vpop.f32.mrb[0].mxu0
    %v2167 = vadd.f32 0.0, %v2166
    %v2168 = vpop.f32.mrb[0].mxu0
    %2169 = vdwg.mxu0
    %v2170 = vsel %vm630, %v1939, -inf
    %2171 = vmax.xlane.f32.xlu0 %v2170
    %v2172 = vpop.xlane.xlu0 %2171
    %v2173 = vsel %vm630, %v2015, -inf
    %2174 = vmax.xlane.f32.xlu0 %v2173
    %v2175 = vpop.xlane.xlu0 %2174
    %v2176 = vsel %vm630, %v2091, -inf
    %2177 = vmax.xlane.f32.xlu0 %v2176
    %v2178 = vpop.xlane.xlu0 %2177
    %v2179 = vsel %vm630, %v2167, -inf
    %2180 = vmax.xlane.f32.xlu0 %v2179
    %v2181 = vpop.xlane.xlu0 %2180
    %v2182 = vsub.f32 %v1939, %v2172
    %v2183 = vsub.f32 %v2015, %v2175
    %v2184 = vsub.f32 %v2091, %v2178
    %v2185 = vsub.f32 %v2167, %v2181
    %v2186 = vmul.f32 %v2182, 1.442695
    %v2187 = vpow.pop %v2186
    %v2188 = vmul.f32 %v2183, 1.442695
    %v2189 = vpow.pop %v2188
    %v2190 = vmul.f32 %v2184, 1.442695
    %v2191 = vpow.pop %v2190
    %v2192 = vmul.f32 %v2185, 1.442695
    %v2193 = vpow.pop %v2192
    %v2194 = vsel %vm630, %v2187, 0.0
    %2195 = vadd.xlane.f32.xlu0 %v2194
    %v2196 = vpop.xlane.xlu0 %2195
    %v2197 = vsel %vm630, %v2189, 0.0
    %2198 = vadd.xlane.f32.xlu0 %v2197
    %v2199 = vpop.xlane.xlu0 %2198
    %v2200 = vsel %vm630, %v2191, 0.0
    %2201 = vadd.xlane.f32.xlu0 %v2200
    %v2202 = vpop.xlane.xlu0 %2201
    %v2203 = vsel %vm630, %v2193, 0.0
    %2204 = vadd.xlane.f32.xlu0 %v2203
    %v2205 = vpop.xlane.xlu0 %2204
    %v2206 = vrcp.pop %v2196
    %v2207 = vrcp.pop %v2199
    %v2208 = vrcp.pop %v2202
    %v2209 = vrcp.pop %v2205
    %v2210 = vmul.f32 %v2187, %v2206
    %v2211 = vmul.f32 %v2189, %v2207
    %v2212 = vmul.f32 %v2191, %v2208
    %v2213 = vmul.f32 %v2193, %v2209
    %v2215 = vsel %vm630, %v2210, 0
    %2217 = vmatprep.subr.mxu0 0.0
    %2218 = vmatpush1.msra.mxu0 %v1862
    %2219 = vmatprep.subr.mxu0 0.0
    %2220 = vmatpush1.msra.mxu0 0.0
    %2221 = vmatprep.subr.mxu0 0.0
    %2222 = vmatpush1.msra.mxu0 0.0
    %2223 = vmatprep.subr.mxu0 0.0
    %2224 = vmatpush1.msra.mxu0 0.0
    %2225 = vmatprep.subr.mxu0 0.0
    %2226 = vmatpush1.msra.mxu0 0.0
    %2227 = vmatprep.subr.mxu0 0.0
    %2228 = vmatpush1.msra.mxu0 0.0
    %2229 = vmatprep.subr.mxu0 0.0
    %2230 = vmatpush1.msra.mxu0 0.0
    %2231 = vmatprep.subr.mxu0 0.0
    %2232 = vmatpush1.msra.mxu0 0.0
    %2233 = vmatprep.subr.mxu0 0.0
    %2234 = vmatpush1.msra.mxu0 0.0
    %2235 = vmatprep.subr.mxu0 0.0
    %2236 = vmatpush1.msra.mxu0 0.0
    %2237 = vmatprep.subr.mxu0 0.0
    %2238 = vmatpush1.msra.mxu0 0.0
    %2239 = vmatprep.subr.mxu0 0.0
    %2240 = vmatpush1.msra.mxu0 0.0
    %2241 = vmatprep.subr.mxu0 0.0
    %2242 = vmatpush1.msra.mxu0 0.0
    %2243 = vmatprep.subr.mxu0 0.0
    %2244 = vmatpush1.msra.mxu0 0.0
    %2245 = vmatprep.subr.mxu0 0.0
    %2246 = vmatpush1.msra.mxu0 0.0
    %2247 = vmatprep.subr.mxu0 0.0
    %2248 = vmatpush1.msra.mxu0 0.0
    %2249 = vmatprep.subr.mxu0 0.0
    %2250 = vmatpush1.msra.mxu0 0.0
    %2251 = vmatprep.subr.mxu0 0.0
    %2252 = vmatpush1.msra.mxu0 0.0
    %2253 = vmatprep.subr.mxu0 0.0
    %2254 = vmatpush1.msra.mxu0 0.0
    %2255 = vmatprep.subr.mxu0 0.0
    %2256 = vmatpush1.msra.mxu0 0.0
    %2257 = vmatprep.subr.mxu0 0.0
    %2258 = vmatpush1.msra.mxu0 0.0
    %2259 = vmatprep.subr.mxu0 0.0
    %2260 = vmatpush1.msra.mxu0 0.0
    %2261 = vmatprep.subr.mxu0 0.0
    %2262 = vmatpush1.msra.mxu0 0.0
    %2263 = vmatprep.subr.mxu0 0.0
    %2264 = vmatpush1.msra.mxu0 0.0
    %2265 = vmatprep.subr.mxu0 0.0
    %2266 = vmatpush1.msra.mxu0 0.0
    %2267 = vmatprep.subr.mxu0 0.0
    %2268 = vmatpush1.msra.mxu0 0.0
    %2269 = vmatprep.subr.mxu0 0.0
    %2270 = vmatpush1.msra.mxu0 0.0
    %2271 = vmatprep.subr.mxu0 0.0
    %2272 = vmatpush1.msra.mxu0 0.0
    %2273 = vmatprep.subr.mxu0 0.0
    %2274 = vmatpush1.msra.mxu0 0.0
    %2275 = vmatprep.subr.mxu0 0.0
    %2276 = vmatpush1.msra.mxu0 0.0
    %2277 = vmatprep.subr.mxu0 0.0
    %2278 = vmatpush1.msra.mxu0 0.0
    %2279 = vmatprep.subr.mxu0 0.0
    %2280 = vmatpush1.msra.mxu0 0.0
    %2281 = vmatprep.mubr.f32.mxu0 0.0
    %2282 = vmatmul.mubr.f32.gmra.mrb[0].mxu0 %v2215
    %v2283 = vpop.f32.mrb[0].mxu0
    %v2284 = vadd.f32 0.0, %v2283
    %v2285 = vpop.f32.mrb[0].mxu0
    %2286 = vdwg.mxu0
    %v2288 = vsel %vm630, %v2211, 0
    %2290 = vmatprep.subr.mxu0 0.0
    %2291 = vmatpush1.msra.mxu0 %v1863
    %2292 = vmatprep.subr.mxu0 0.0
    %2293 = vmatpush1.msra.mxu0 0.0
    %2294 = vmatprep.subr.mxu0 0.0
    %2295 = vmatpush1.msra.mxu0 0.0
    %2296 = vmatprep.subr.mxu0 0.0
    %2297 = vmatpush1.msra.mxu0 0.0
    %2298 = vmatprep.subr.mxu0 0.0
    %2299 = vmatpush1.msra.mxu0 0.0
    %2300 = vmatprep.subr.mxu0 0.0
    %2301 = vmatpush1.msra.mxu0 0.0
    %2302 = vmatprep.subr.mxu0 0.0
    %2303 = vmatpush1.msra.mxu0 0.0
    %2304 = vmatprep.subr.mxu0 0.0
    %2305 = vmatpush1.msra.mxu0 0.0
    %2306 = vmatprep.subr.mxu0 0.0
    %2307 = vmatpush1.msra.mxu0 0.0
    %2308 = vmatprep.subr.mxu0 0.0
    %2309 = vmatpush1.msra.mxu0 0.0
    %2310 = vmatprep.subr.mxu0 0.0
    %2311 = vmatpush1.msra.mxu0 0.0
    %2312 = vmatprep.subr.mxu0 0.0
    %2313 = vmatpush1.msra.mxu0 0.0
    %2314 = vmatprep.subr.mxu0 0.0
    %2315 = vmatpush1.msra.mxu0 0.0
    %2316 = vmatprep.subr.mxu0 0.0
    %2317 = vmatpush1.msra.mxu0 0.0
    %2318 = vmatprep.subr.mxu0 0.0
    %2319 = vmatpush1.msra.mxu0 0.0
    %2320 = vmatprep.subr.mxu0 0.0
    %2321 = vmatpush1.msra.mxu0 0.0
    %2322 = vmatprep.subr.mxu0 0.0
    %2323 = vmatpush1.msra.mxu0 0.0
    %2324 = vmatprep.subr.mxu0 0.0
    %2325 = vmatpush1.msra.mxu0 0.0
    %2326 = vmatprep.subr.mxu0 0.0
    %2327 = vmatpush1.msra.mxu0 0.0
    %2328 = vmatprep.subr.mxu0 0.0
    %2329 = vmatpush1.msra.mxu0 0.0
    %2330 = vmatprep.subr.mxu0 0.0
    %2331 = vmatpush1.msra.mxu0 0.0
    %2332 = vmatprep.subr.mxu0 0.0
    %2333 = vmatpush1.msra.mxu0 0.0
    %2334 = vmatprep.subr.mxu0 0.0
    %2335 = vmatpush1.msra.mxu0 0.0
    %2336 = vmatprep.subr.mxu0 0.0
    %2337 = vmatpush1.msra.mxu0 0.0
    %2338 = vmatprep.subr.mxu0 0.0
    %2339 = vmatpush1.msra.mxu0 0.0
    %2340 = vmatprep.subr.mxu0 0.0
    %2341 = vmatpush1.msra.mxu0 0.0
    %2342 = vmatprep.subr.mxu0 0.0
    %2343 = vmatpush1.msra.mxu0 0.0
    %2344 = vmatprep.subr.mxu0 0.0
    %2345 = vmatpush1.msra.mxu0 0.0
    %2346 = vmatprep.subr.mxu0 0.0
    %2347 = vmatpush1.msra.mxu0 0.0
    %2348 = vmatprep.subr.mxu0 0.0
    %2349 = vmatpush1.msra.mxu0 0.0
    %2350 = vmatprep.subr.mxu0 0.0
    %2351 = vmatpush1.msra.mxu0 0.0
    %2352 = vmatprep.subr.mxu0 0.0
    %2353 = vmatpush1.msra.mxu0 0.0
    %2354 = vmatprep.mubr.f32.mxu0 0.0
    %2355 = vmatmul.mubr.f32.gmra.mrb[0].mxu0 %v2288
    %v2356 = vpop.f32.mrb[0].mxu0
    %v2357 = vadd.f32 0.0, %v2356
    %v2358 = vpop.f32.mrb[0].mxu0
    %2359 = vdwg.mxu0
    %v2361 = vsel %vm630, %v2212, 0
    %2363 = vmatprep.subr.mxu0 0.0
    %2364 = vmatpush1.msra.mxu0 %v1864
    %2365 = vmatprep.subr.mxu0 0.0
    %2366 = vmatpush1.msra.mxu0 0.0
    %2367 = vmatprep.subr.mxu0 0.0
    %2368 = vmatpush1.msra.mxu0 0.0
    %2369 = vmatprep.subr.mxu0 0.0
    %2370 = vmatpush1.msra.mxu0 0.0
    %2371 = vmatprep.subr.mxu0 0.0
    %2372 = vmatpush1.msra.mxu0 0.0
    %2373 = vmatprep.subr.mxu0 0.0
    %2374 = vmatpush1.msra.mxu0 0.0
    %2375 = vmatprep.subr.mxu0 0.0
    %2376 = vmatpush1.msra.mxu0 0.0
    %2377 = vmatprep.subr.mxu0 0.0
    %2378 = vmatpush1.msra.mxu0 0.0
    %2379 = vmatprep.subr.mxu0 0.0
    %2380 = vmatpush1.msra.mxu0 0.0
    %2381 = vmatprep.subr.mxu0 0.0
    %2382 = vmatpush1.msra.mxu0 0.0
    %2383 = vmatprep.subr.mxu0 0.0
    %2384 = vmatpush1.msra.mxu0 0.0
    %2385 = vmatprep.subr.mxu0 0.0
    %2386 = vmatpush1.msra.mxu0 0.0
    %2387 = vmatprep.subr.mxu0 0.0
    %2388 = vmatpush1.msra.mxu0 0.0
    %2389 = vmatprep.subr.mxu0 0.0
    %2390 = vmatpush1.msra.mxu0 0.0
    %2391 = vmatprep.subr.mxu0 0.0
    %2392 = vmatpush1.msra.mxu0 0.0
    %2393 = vmatprep.subr.mxu0 0.0
    %2394 = vmatpush1.msra.mxu0 0.0
    %2395 = vmatprep.subr.mxu0 0.0
    %2396 = vmatpush1.msra.mxu0 0.0
    %2397 = vmatprep.subr.mxu0 0.0
    %2398 = vmatpush1.msra.mxu0 0.0
    %2399 = vmatprep.subr.mxu0 0.0
    %2400 = vmatpush1.msra.mxu0 0.0
    %2401 = vmatprep.subr.mxu0 0.0
    %2402 = vmatpush1.msra.mxu0 0.0
    %2403 = vmatprep.subr.mxu0 0.0
    %2404 = vmatpush1.msra.mxu0 0.0
    %2405 = vmatprep.subr.mxu0 0.0
    %2406 = vmatpush1.msra.mxu0 0.0
    %2407 = vmatprep.subr.mxu0 0.0
    %2408 = vmatpush1.msra.mxu0 0.0
    %2409 = vmatprep.subr.mxu0 0.0
    %2410 = vmatpush1.msra.mxu0 0.0
    %2411 = vmatprep.subr.mxu0 0.0
    %2412 = vmatpush1.msra.mxu0 0.0
    %2413 = vmatprep.subr.mxu0 0.0
    %2414 = vmatpush1.msra.mxu0 0.0
    %2415 = vmatprep.subr.mxu0 0.0
    %2416 = vmatpush1.msra.mxu0 0.0
    %2417 = vmatprep.subr.mxu0 0.0
    %2418 = vmatpush1.msra.mxu0 0.0
    %2419 = vmatprep.subr.mxu0 0.0
    %2420 = vmatpush1.msra.mxu0 0.0
    %2421 = vmatprep.subr.mxu0 0.0
    %2422 = vmatpush1.msra.mxu0 0.0
    %2423 = vmatprep.subr.mxu0 0.0
    %2424 = vmatpush1.msra.mxu0 0.0
    %2425 = vmatprep.subr.mxu0 0.0
    %2426 = vmatpush1.msra.mxu0 0.0
    %2427 = vmatprep.mubr.f32.mxu0 0.0
    %2428 = vmatmul.mubr.f32.gmra.mrb[0].mxu0 %v2361
    %v2429 = vpop.f32.mrb[0].mxu0
    %v2430 = vadd.f32 0.0, %v2429
    %v2431 = vpop.f32.mrb[0].mxu0
    %2432 = vdwg.mxu0
    %v2434 = vsel %vm630, %v2213, 0
    %2436 = vmatprep.subr.mxu0 0.0
    %2437 = vmatpush1.msra.mxu0 %v1865
    %2438 = vmatprep.subr.mxu0 0.0
    %2439 = vmatpush1.msra.mxu0 0.0
    %2440 = vmatprep.subr.mxu0 0.0
    %2441 = vmatpush1.msra.mxu0 0.0
    %2442 = vmatprep.subr.mxu0 0.0
    %2443 = vmatpush1.msra.mxu0 0.0
    %2444 = vmatprep.subr.mxu0 0.0
    %2445 = vmatpush1.msra.mxu0 0.0
    %2446 = vmatprep.subr.mxu0 0.0
    %2447 = vmatpush1.msra.mxu0 0.0
    %2448 = vmatprep.subr.mxu0 0.0
    %2449 = vmatpush1.msra.mxu0 0.0
    %2450 = vmatprep.subr.mxu0 0.0
    %2451 = vmatpush1.msra.mxu0 0.0
    %2452 = vmatprep.subr.mxu0 0.0
    %2453 = vmatpush1.msra.mxu0 0.0
    %2454 = vmatprep.subr.mxu0 0.0
    %2455 = vmatpush1.msra.mxu0 0.0
    %2456 = vmatprep.subr.mxu0 0.0
    %2457 = vmatpush1.msra.mxu0 0.0
    %2458 = vmatprep.subr.mxu0 0.0
    %2459 = vmatpush1.msra.mxu0 0.0
    %2460 = vmatprep.subr.mxu0 0.0
    %2461 = vmatpush1.msra.mxu0 0.0
    %2462 = vmatprep.subr.mxu0 0.0
    %2463 = vmatpush1.msra.mxu0 0.0
    %2464 = vmatprep.subr.mxu0 0.0
    %2465 = vmatpush1.msra.mxu0 0.0
    %2466 = vmatprep.subr.mxu0 0.0
    %2467 = vmatpush1.msra.mxu0 0.0
    %2468 = vmatprep.subr.mxu0 0.0
    %2469 = vmatpush1.msra.mxu0 0.0
    %2470 = vmatprep.subr.mxu0 0.0
    %2471 = vmatpush1.msra.mxu0 0.0
    %2472 = vmatprep.subr.mxu0 0.0
    %2473 = vmatpush1.msra.mxu0 0.0
    %2474 = vmatprep.subr.mxu0 0.0
    %2475 = vmatpush1.msra.mxu0 0.0
    %2476 = vmatprep.subr.mxu0 0.0
    %2477 = vmatpush1.msra.mxu0 0.0
    %2478 = vmatprep.subr.mxu0 0.0
    %2479 = vmatpush1.msra.mxu0 0.0
    %2480 = vmatprep.subr.mxu0 0.0
    %2481 = vmatpush1.msra.mxu0 0.0
    %2482 = vmatprep.subr.mxu0 0.0
    %2483 = vmatpush1.msra.mxu0 0.0
    %2484 = vmatprep.subr.mxu0 0.0
    %2485 = vmatpush1.msra.mxu0 0.0
    %2486 = vmatprep.subr.mxu0 0.0
    %2487 = vmatpush1.msra.mxu0 0.0
    %2488 = vmatprep.subr.mxu0 0.0
    %2489 = vmatpush1.msra.mxu0 0.0
    %2490 = vmatprep.subr.mxu0 0.0
    %2491 = vmatpush1.msra.mxu0 0.0
    %2492 = vmatprep.subr.mxu0 0.0
    %2493 = vmatpush1.msra.mxu0 0.0
    %2494 = vmatprep.subr.mxu0 0.0
    %2495 = vmatpush1.msra.mxu0 0.0
    %2496 = vmatprep.subr.mxu0 0.0
    %2497 = vmatpush1.msra.mxu0 0.0
    %2498 = vmatprep.subr.mxu0 0.0
    %2499 = vmatpush1.msra.mxu0 0.0
    %2500 = vmatprep.mubr.f32.mxu0 0.0
    %2501 = vmatmul.mubr.f32.gmra.mrb[0].mxu0 %v2434
    %v2502 = vpop.f32.mrb[0].mxu0
    %v2503 = vadd.f32 0.0, %v2502
    %v2504 = vpop.f32.mrb[0].mxu0
    %2505 = vdwg.mxu0
    %v2506 = vcombine.low %v2284, %v2430
    %v2507 = vcombine.high %v2284, %v2430
    %v2509 = vunpack.c.l.s4 1983009808
    %v2510 = vunpack.c.0.s8 %v2509
    %v2511 = vlaneseq
    %v2512 = vshrl.u32 %v2511, 7
    %v2513 = vsub.s32 %v2510, %v2512
    %v2514 = vrot.slane %v2506, %v2513
    %v2516 = vunpack.c.l.s4 1983009808
    %v2517 = vunpack.c.0.s8 %v2516
    %v2518 = vlaneseq
    %v2519 = vshrl.u32 %v2518, 7
    %v2520 = vsub.s32 %v2517, %v2519
    %v2521 = vrot.slane %v2507, %v2520
    %v2522 = vcombine.low %v2357, %v2503
    %v2523 = vcombine.high %v2357, %v2503
    %v2525 = vunpack.c.l.s4 1983009808
    %v2526 = vunpack.c.0.s8 %v2525
    %v2527 = vlaneseq
    %v2528 = vshrl.u32 %v2527, 7
    %v2529 = vsub.s32 %v2526, %v2528
    %v2530 = vrot.slane %v2522, %v2529
    %v2532 = vunpack.c.l.s4 1983009808
    %v2533 = vunpack.c.0.s8 %v2532
    %v2534 = vlaneseq
    %v2535 = vshrl.u32 %v2534, 7
    %v2536 = vsub.s32 %v2533, %v2535
    %v2537 = vrot.slane %v2523, %v2536
    %v2538 = vcombine.low %v2514, %v2530
    %v2539 = vcombine.high %v2514, %v2530
    %v2541 = vunpack.c.l.s4 1934713408
    %v2542 = vunpack.c.0.s8 %v2541
    %v2543 = vlaneseq
    %v2544 = vshrl.u32 %v2543, 7
    %v2545 = vsub.s32 %v2542, %v2544
    %v2546 = vrot.slane %v2538, %v2545
    %v2548 = vunpack.c.l.s4 1934713408
    %v2549 = vunpack.c.0.s8 %v2548
    %v2550 = vlaneseq
    %v2551 = vshrl.u32 %v2550, 7
    %v2552 = vsub.s32 %v2549, %v2551
    %v2553 = vrot.slane %v2539, %v2552
    %v2554 = vcombine.low %v2521, %v2537
    %v2555 = vcombine.high %v2521, %v2537
    %v2557 = vunpack.c.l.s4 1934713408
    %v2558 = vunpack.c.0.s8 %v2557
    %v2559 = vlaneseq
    %v2560 = vshrl.u32 %v2559, 7
    %v2561 = vsub.s32 %v2558, %v2560
    %v2562 = vrot.slane %v2554, %v2561
    %v2564 = vunpack.c.l.s4 1934713408
    %v2565 = vunpack.c.0.s8 %v2564
    %v2566 = vlaneseq
    %v2567 = vshrl.u32 %v2566, 7
    %v2568 = vsub.s32 %v2565, %v2567
    %v2569 = vrot.slane %v2555, %v2568
    %v2570 = vcombine.high %v2546, 0.0
    %v2571 = vcombine.high %v2553, 0.0
    %v2572 = vcombine.high %v2562, 0.0
    %v2573 = vcombine.high %v2569, 0.0
    %v2574 = vcombine.low %v2546, %v2553
    %v2576 = vunpack.c.l.s4 1983009808
    %v2577 = vunpack.c.0.s8 %v2576
    %v2578 = vlaneseq
    %v2579 = vshrl.u32 %v2578, 7
    %v2580 = vsub.s32 %v2577, %v2579
    %v2581 = vrot.slane %v2574, %v2580
    %v2582 = vcombine.low %v2570, %v2571
    %v2584 = vunpack.c.l.s4 1983009808
    %v2585 = vunpack.c.0.s8 %v2584
    %v2586 = vlaneseq
    %v2587 = vshrl.u32 %v2586, 7
    %v2588 = vsub.s32 %v2585, %v2587
    %v2589 = vrot.slane %v2582, %v2588
    %v2590 = vcombine.low %v2562, %v2569
    %v2592 = vunpack.c.l.s4 1983009808
    %v2593 = vunpack.c.0.s8 %v2592
    %v2594 = vlaneseq
    %v2595 = vshrl.u32 %v2594, 7
    %v2596 = vsub.s32 %v2593, %v2595
    %v2597 = vrot.slane %v2590, %v2596
    %v2598 = vcombine.low %v2572, %v2573
    %v2600 = vunpack.c.l.s4 1983009808
    %v2601 = vunpack.c.0.s8 %v2600
    %v2602 = vlaneseq
    %v2603 = vshrl.u32 %v2602, 7
    %v2604 = vsub.s32 %v2601, %v2603
    %v2605 = vrot.slane %v2598, %v2604
    %v2606 = vcombine.low %v2581, %v2589
    %v2607 = vcombine.high %v2581, %v2589
    %v2609 = vunpack.c.l.s4 1934713408
    %v2610 = vunpack.c.0.s8 %v2609
    %v2611 = vlaneseq
    %v2612 = vshrl.u32 %v2611, 7
    %v2613 = vsub.s32 %v2610, %v2612
    %v2614 = vrot.slane %v2606, %v2613
    %v2616 = vunpack.c.l.s4 1934713408
    %v2617 = vunpack.c.0.s8 %v2616
    %v2618 = vlaneseq
    %v2619 = vshrl.u32 %v2618, 7
    %v2620 = vsub.s32 %v2617, %v2619
    %v2621 = vrot.slane %v2607, %v2620
    %v2622 = vcombine.low %v2597, %v2605
    %v2623 = vcombine.high %v2597, %v2605
    %v2625 = vunpack.c.l.s4 1934713408
    %v2626 = vunpack.c.0.s8 %v2625
    %v2627 = vlaneseq
    %v2628 = vshrl.u32 %v2627, 7
    %v2629 = vsub.s32 %v2626, %v2628
    %v2630 = vrot.slane %v2622, %v2629
    %v2632 = vunpack.c.l.s4 1934713408
    %v2633 = vunpack.c.0.s8 %v2632
    %v2634 = vlaneseq
    %v2635 = vshrl.u32 %v2634, 7
    %v2636 = vsub.s32 %v2633, %v2635
    %v2637 = vrot.slane %v2623, %v2636
    %v2638 = vcombine.low %v2614, %v2630
    %v2639 = vcombine.high %v2614, %v2630
    %v2640 = vcombine.low %v2621, %v2637
    %v2641 = vcombine.high %v2621, %v2637
    %2643 = vrot.lane.b32.xlu0 %v2639, 8
    %v2644 = vpop.permute.xlu0 %2643
    %2647 = vrot.lane.b32.xlu0 %v2640, 16
    %v2648 = vpop.permute.xlu0 %2647
    %2651 = vrot.lane.b32.xlu0 %v2641, 24
    %v2652 = vpop.permute.xlu0 %2651
    %v2654 = vsel %vm630, %v2638, %v2644
    %v2655 = vsel %vm1420, %v2654, %v2648
    %v2656 = vsel %vm1422, %v2655, %v2652
    %v2658 = vlaneseq
    %v2659 = vshrl.u32 %v2658, 7
    %v2660 = vsub.s32 0, %v2659
    %v2661 = vrot.slane %v97, %v2660
    %v2664 = vsel %vm106, %v1423, 0
    %v2667 = vsel %vm106, %v2656, 0
    %2669 = vmatprep.subr.mxu0 0.0
    %2670 = vmatpush1.msra.mxu0 %v93
    %2671 = vmatprep.subr.mxu0 0.0
    %2672 = vmatpush1.msra.mxu0 %v94
    %2673 = vmatprep.subr.mxu0 0.0
    %2674 = vmatpush1.msra.mxu0 %v95
    %2675 = vmatprep.subr.mxu0 0.0
    %2676 = vmatpush1.msra.mxu0 %v96
    %2677 = vmatprep.subr.mxu0 0.0
    %2678 = vmatpush1.msra.mxu0 0.0
    %2679 = vmatprep.subr.mxu0 0.0
    %2680 = vmatpush1.msra.mxu0 0.0
    %2681 = vmatprep.subr.mxu0 0.0
    %2682 = vmatpush1.msra.mxu0 0.0
    %2683 = vmatprep.subr.mxu0 0.0
    %2684 = vmatpush1.msra.mxu0 0.0
    %2685 = vmatprep.subr.mxu0 0.0
    %2686 = vmatpush1.msra.mxu0 0.0
    %2687 = vmatprep.subr.mxu0 0.0
    %2688 = vmatpush1.msra.mxu0 0.0
    %2689 = vmatprep.subr.mxu0 0.0
    %2690 = vmatpush1.msra.mxu0 0.0
    %2691 = vmatprep.subr.mxu0 0.0
    %2692 = vmatpush1.msra.mxu0 0.0
    %2693 = vmatprep.subr.mxu0 0.0
    %2694 = vmatpush1.msra.mxu0 0.0
    %2695 = vmatprep.subr.mxu0 0.0
    %2696 = vmatpush1.msra.mxu0 0.0
    %2697 = vmatprep.subr.mxu0 0.0
    %2698 = vmatpush1.msra.mxu0 0.0
    %2699 = vmatprep.subr.mxu0 0.0
    %2700 = vmatpush1.msra.mxu0 0.0
    %2701 = vmatprep.subr.mxu0 0.0
    %2702 = vmatpush1.msra.mxu0 0.0
    %2703 = vmatprep.subr.mxu0 0.0
    %2704 = vmatpush1.msra.mxu0 0.0
    %2705 = vmatprep.subr.mxu0 0.0
    %2706 = vmatpush1.msra.mxu0 0.0
    %2707 = vmatprep.subr.mxu0 0.0
    %2708 = vmatpush1.msra.mxu0 0.0
    %2709 = vmatprep.subr.mxu0 0.0
    %2710 = vmatpush1.msra.mxu0 0.0
    %2711 = vmatprep.subr.mxu0 0.0
    %2712 = vmatpush1.msra.mxu0 0.0
    %2713 = vmatprep.subr.mxu0 0.0
    %2714 = vmatpush1.msra.mxu0 0.0
    %2715 = vmatprep.subr.mxu0 0.0
    %2716 = vmatpush1.msra.mxu0 0.0
    %2717 = vmatprep.subr.mxu0 0.0
    %2718 = vmatpush1.msra.mxu0 0.0
    %2719 = vmatprep.subr.mxu0 0.0
    %2720 = vmatpush1.msra.mxu0 0.0
    %2721 = vmatprep.subr.mxu0 0.0
    %2722 = vmatpush1.msra.mxu0 0.0
    %2723 = vmatprep.subr.mxu0 0.0
    %2724 = vmatpush1.msra.mxu0 0.0
    %2725 = vmatprep.subr.mxu0 0.0
    %2726 = vmatpush1.msra.mxu0 0.0
    %2727 = vmatprep.subr.mxu0 0.0
    %2728 = vmatpush1.msra.mxu0 0.0
    %2729 = vmatprep.subr.mxu0 0.0
    %2730 = vmatpush1.msra.mxu0 0.0
    %2731 = vmatprep.subr.mxu0 0.0
    %2732 = vmatpush1.msra.mxu0 0.0
    %2733 = vmatprep.mubr.f32.mxu0 0.0
    %2734 = vmatmul.mubr.f32.gmra.mrb[0].mxu0 %v2664
    %v2735 = vpop.f32.mrb[0].mxu0
    %v2736 = vadd.f32 %v2661, %v2735
    %v2737 = vpop.f32.mrb[0].mxu0
    %2738 = vmatprep.mubr.f32.mxu0 0.0
    %2739 = vmatmul.mubr.f32.gmra.mrb[0].mxu0 %v2667
    %v2740 = vpop.f32.mrb[0].mxu0
    %v2741 = vadd.f32 %v2661, %v2740
    %v2742 = vpop.f32.mrb[0].mxu0
    %2743 = vdwg.mxu0
    %v2745 = vsel %vm106, %v2736, 0
    %v2748 = vsel %vm106, %v2741, 0
    %2750 = vmatprep.subr.mxu0 0.0
    %2751 = vmatpush1.msra.mxu0 %v88
    %2752 = vmatprep.subr.mxu0 0.0
    %2753 = vmatpush1.msra.mxu0 %v89
    %2754 = vmatprep.subr.mxu0 0.0
    %2755 = vmatpush1.msra.mxu0 %v90
    %2756 = vmatprep.subr.mxu0 0.0
    %2757 = vmatpush1.msra.mxu0 %v91
    %2758 = vmatprep.subr.mxu0 0.0
    %2759 = vmatpush1.msra.mxu0 0.0
    %2760 = vmatprep.subr.mxu0 0.0
    %2761 = vmatpush1.msra.mxu0 0.0
    %2762 = vmatprep.subr.mxu0 0.0
    %2763 = vmatpush1.msra.mxu0 0.0
    %2764 = vmatprep.subr.mxu0 0.0
    %2765 = vmatpush1.msra.mxu0 0.0
    %2766 = vmatprep.subr.mxu0 0.0
    %2767 = vmatpush1.msra.mxu0 0.0
    %2768 = vmatprep.subr.mxu0 0.0
    %2769 = vmatpush1.msra.mxu0 0.0
    %2770 = vmatprep.subr.mxu0 0.0
    %2771 = vmatpush1.msra.mxu0 0.0
    %2772 = vmatprep.subr.mxu0 0.0
    %2773 = vmatpush1.msra.mxu0 0.0
    %2774 = vmatprep.subr.mxu0 0.0
    %2775 = vmatpush1.msra.mxu0 0.0
    %2776 = vmatprep.subr.mxu0 0.0
    %2777 = vmatpush1.msra.mxu0 0.0
    %2778 = vmatprep.subr.mxu0 0.0
    %2779 = vmatpush1.msra.mxu0 0.0
    %2780 = vmatprep.subr.mxu0 0.0
    %2781 = vmatpush1.msra.mxu0 0.0
    %2782 = vmatprep.subr.mxu0 0.0
    %2783 = vmatpush1.msra.mxu0 0.0
    %2784 = vmatprep.subr.mxu0 0.0
    %2785 = vmatpush1.msra.mxu0 0.0
    %2786 = vmatprep.subr.mxu0 0.0
    %2787 = vmatpush1.msra.mxu0 0.0
    %2788 = vmatprep.subr.mxu0 0.0
    %2789 = vmatpush1.msra.mxu0 0.0
    %2790 = vmatprep.subr.mxu0 0.0
    %2791 = vmatpush1.msra.mxu0 0.0
    %2792 = vmatprep.subr.mxu0 0.0
    %2793 = vmatpush1.msra.mxu0 0.0
    %2794 = vmatprep.subr.mxu0 0.0
    %2795 = vmatpush1.msra.mxu0 0.0
    %2796 = vmatprep.subr.mxu0 0.0
    %2797 = vmatpush1.msra.mxu0 0.0
    %2798 = vmatprep.subr.mxu0 0.0
    %2799 = vmatpush1.msra.mxu0 0.0
    %2800 = vmatprep.subr.mxu0 0.0
    %2801 = vmatpush1.msra.mxu0 0.0
    %2802 = vmatprep.subr.mxu0 0.0
    %2803 = vmatpush1.msra.mxu0 0.0
    %2804 = vmatprep.subr.mxu0 0.0
    %2805 = vmatpush1.msra.mxu0 0.0
    %2806 = vmatprep.subr.mxu0 0.0
    %2807 = vmatpush1.msra.mxu0 0.0
    %2808 = vmatprep.subr.mxu0 0.0
    %2809 = vmatpush1.msra.mxu0 0.0
    %2810 = vmatprep.subr.mxu0 0.0
    %2811 = vmatpush1.msra.mxu0 0.0
    %2812 = vmatprep.subr.mxu0 0.0
    %2813 = vmatpush1.msra.mxu0 0.0
    %2814 = vmatprep.mubr.f32.mxu0 0.0
    %2815 = vmatmul.mubr.f32.gmra.mrb[0].mxu0 %v2745
    %v2816 = vpop.f32.mrb[0].mxu0
    %v2817 = vadd.f32 %v104, %v2816
    %v2818 = vpop.f32.mrb[0].mxu0
    %2819 = vmatprep.mubr.f32.mxu0 0.0
    %2820 = vmatmul.mubr.f32.gmra.mrb[0].mxu0 %v2748
    %v2821 = vpop.f32.mrb[0].mxu0
    %v2822 = vadd.f32 %v104, %v2821
    %v2823 = vpop.f32.mrb[0].mxu0
    %2824 = vdwg.mxu0
    %2826 = vrot.lane.b32.xlu0 %v2817, 120
    %v2827 = vpop.permute.xlu0 %2826
    %2829 = vrot.lane.b32.xlu0 %v2817, 112
    %v2830 = vpop.permute.xlu0 %2829
    %2832 = vrot.lane.b32.xlu0 %v2817, 104
    %v2833 = vpop.permute.xlu0 %2832
    %v2835 = vcombine.low %v2817, %v2830
    %v2836 = vcombine.high %v2817, %v2830
    %v2838 = vunpack.c.l.s4 1983009808
    %v2839 = vunpack.c.0.s8 %v2838
    %v2840 = vlaneseq
    %v2841 = vshrl.u32 %v2840, 7
    %v2842 = vsub.s32 %v2839, %v2841
    %v2843 = vrot.slane %v2835, %v2842
    %v2845 = vunpack.c.l.s4 1983009808
    %v2846 = vunpack.c.0.s8 %v2845
    %v2847 = vlaneseq
    %v2848 = vshrl.u32 %v2847, 7
    %v2849 = vsub.s32 %v2846, %v2848
    %v2850 = vrot.slane %v2836, %v2849
    %v2851 = vcombine.low %v2827, %v2833
    %v2852 = vcombine.high %v2827, %v2833
    %v2854 = vunpack.c.l.s4 1983009808
    %v2855 = vunpack.c.0.s8 %v2854
    %v2856 = vlaneseq
    %v2857 = vshrl.u32 %v2856, 7
    %v2858 = vsub.s32 %v2855, %v2857
    %v2859 = vrot.slane %v2851, %v2858
    %v2861 = vunpack.c.l.s4 1983009808
    %v2862 = vunpack.c.0.s8 %v2861
    %v2863 = vlaneseq
    %v2864 = vshrl.u32 %v2863, 7
    %v2865 = vsub.s32 %v2862, %v2864
    %v2866 = vrot.slane %v2852, %v2865
    %v2867 = vcombine.low %v2843, %v2859
    %v2868 = vcombine.high %v2843, %v2859
    %v2870 = vunpack.c.l.s4 1934713408
    %v2871 = vunpack.c.0.s8 %v2870
    %v2872 = vlaneseq
    %v2873 = vshrl.u32 %v2872, 7
    %v2874 = vsub.s32 %v2871, %v2873
    %v2875 = vrot.slane %v2867, %v2874
    %v2877 = vunpack.c.l.s4 1934713408
    %v2878 = vunpack.c.0.s8 %v2877
    %v2879 = vlaneseq
    %v2880 = vshrl.u32 %v2879, 7
    %v2881 = vsub.s32 %v2878, %v2880
    %v2882 = vrot.slane %v2868, %v2881
    %v2883 = vcombine.low %v2850, %v2866
    %v2884 = vcombine.high %v2850, %v2866
    %v2886 = vunpack.c.l.s4 1934713408
    %v2887 = vunpack.c.0.s8 %v2886
    %v2888 = vlaneseq
    %v2889 = vshrl.u32 %v2888, 7
    %v2890 = vsub.s32 %v2887, %v2889
    %v2891 = vrot.slane %v2883, %v2890
    %v2893 = vunpack.c.l.s4 1934713408
    %v2894 = vunpack.c.0.s8 %v2893
    %v2895 = vlaneseq
    %v2896 = vshrl.u32 %v2895, 7
    %v2897 = vsub.s32 %v2894, %v2896
    %v2898 = vrot.slane %v2884, %v2897
    %v2899 = vcombine.high %v2875, 0.0
    %v2900 = vcombine.high %v2882, 0.0
    %v2901 = vcombine.high %v2891, 0.0
    %v2902 = vcombine.high %v2898, 0.0
    %v2903 = vcombine.low %v2875, %v2882
    %v2905 = vunpack.c.l.s4 1983009808
    %v2906 = vunpack.c.0.s8 %v2905
    %v2907 = vlaneseq
    %v2908 = vshrl.u32 %v2907, 7
    %v2909 = vsub.s32 %v2906, %v2908
    %v2910 = vrot.slane %v2903, %v2909
    %v2911 = vcombine.low %v2899, %v2900
    %v2913 = vunpack.c.l.s4 1983009808
    %v2914 = vunpack.c.0.s8 %v2913
    %v2915 = vlaneseq
    %v2916 = vshrl.u32 %v2915, 7
    %v2917 = vsub.s32 %v2914, %v2916
    %v2918 = vrot.slane %v2911, %v2917
    %v2919 = vcombine.low %v2891, %v2898
    %v2921 = vunpack.c.l.s4 1983009808
    %v2922 = vunpack.c.0.s8 %v2921
    %v2923 = vlaneseq
    %v2924 = vshrl.u32 %v2923, 7
    %v2925 = vsub.s32 %v2922, %v2924
    %v2926 = vrot.slane %v2919, %v2925
    %v2927 = vcombine.low %v2901, %v2902
    %v2929 = vunpack.c.l.s4 1983009808
    %v2930 = vunpack.c.0.s8 %v2929
    %v2931 = vlaneseq
    %v2932 = vshrl.u32 %v2931, 7
    %v2933 = vsub.s32 %v2930, %v2932
    %v2934 = vrot.slane %v2927, %v2933
    %v2935 = vcombine.low %v2910, %v2918
    %v2936 = vcombine.high %v2910, %v2918
    %v2938 = vunpack.c.l.s4 1934713408
    %v2939 = vunpack.c.0.s8 %v2938
    %v2940 = vlaneseq
    %v2941 = vshrl.u32 %v2940, 7
    %v2942 = vsub.s32 %v2939, %v2941
    %v2943 = vrot.slane %v2935, %v2942
    %v2945 = vunpack.c.l.s4 1934713408
    %v2946 = vunpack.c.0.s8 %v2945
    %v2947 = vlaneseq
    %v2948 = vshrl.u32 %v2947, 7
    %v2949 = vsub.s32 %v2946, %v2948
    %v2950 = vrot.slane %v2936, %v2949
    %v2951 = vcombine.low %v2926, %v2934
    %v2952 = vcombine.high %v2926, %v2934
    %v2954 = vunpack.c.l.s4 1934713408
    %v2955 = vunpack.c.0.s8 %v2954
    %v2956 = vlaneseq
    %v2957 = vshrl.u32 %v2956, 7
    %v2958 = vsub.s32 %v2955, %v2957
    %v2959 = vrot.slane %v2951, %v2958
    %v2961 = vunpack.c.l.s4 1934713408
    %v2962 = vunpack.c.0.s8 %v2961
    %v2963 = vlaneseq
    %v2964 = vshrl.u32 %v2963, 7
    %v2965 = vsub.s32 %v2962, %v2964
    %v2966 = vrot.slane %v2952, %v2965
    %v2967 = vcombine.low %v2943, %v2959
    %v2968 = vcombine.high %v2943, %v2959
    %v2969 = vcombine.low %v2950, %v2966
    %v2970 = vcombine.high %v2950, %v2966
    %2971 = vrot.lane.b32.xlu0 %v2817, 96
    %v2972 = vpop.permute.xlu0 %2971
    %2973 = vrot.lane.b32.xlu0 %v2827, 96
    %v2974 = vpop.permute.xlu0 %2973
    %2975 = vrot.lane.b32.xlu0 %v2830, 96
    %v2976 = vpop.permute.xlu0 %2975
    %2977 = vrot.lane.b32.xlu0 %v2833, 96
    %v2978 = vpop.permute.xlu0 %2977
    %v2983 = vcombine.low %v2972, %v2976
    %v2984 = vcombine.high %v2972, %v2976
    %v2986 = vunpack.c.l.s4 1983009808
    %v2987 = vunpack.c.0.s8 %v2986
    %v2988 = vlaneseq
    %v2989 = vshrl.u32 %v2988, 7
    %v2990 = vsub.s32 %v2987, %v2989
    %v2991 = vrot.slane %v2983, %v2990
    %v2993 = vunpack.c.l.s4 1983009808
    %v2994 = vunpack.c.0.s8 %v2993
    %v2995 = vlaneseq
    %v2996 = vshrl.u32 %v2995, 7
    %v2997 = vsub.s32 %v2994, %v2996
    %v2998 = vrot.slane %v2984, %v2997
    %v2999 = vcombine.low %v2974, %v2978
    %v3000 = vcombine.high %v2974, %v2978
    %v3002 = vunpack.c.l.s4 1983009808
    %v3003 = vunpack.c.0.s8 %v3002
    %v3004 = vlaneseq
    %v3005 = vshrl.u32 %v3004, 7
    %v3006 = vsub.s32 %v3003, %v3005
    %v3007 = vrot.slane %v2999, %v3006
    %v3009 = vunpack.c.l.s4 1983009808
    %v3010 = vunpack.c.0.s8 %v3009
    %v3011 = vlaneseq
    %v3012 = vshrl.u32 %v3011, 7
    %v3013 = vsub.s32 %v3010, %v3012
    %v3014 = vrot.slane %v3000, %v3013
    %v3015 = vcombine.low %v2991, %v3007
    %v3016 = vcombine.high %v2991, %v3007
    %v3018 = vunpack.c.l.s4 1934713408
    %v3019 = vunpack.c.0.s8 %v3018
    %v3020 = vlaneseq
    %v3021 = vshrl.u32 %v3020, 7
    %v3022 = vsub.s32 %v3019, %v3021
    %v3023 = vrot.slane %v3015, %v3022
    %v3025 = vunpack.c.l.s4 1934713408
    %v3026 = vunpack.c.0.s8 %v3025
    %v3027 = vlaneseq
    %v3028 = vshrl.u32 %v3027, 7
    %v3029 = vsub.s32 %v3026, %v3028
    %v3030 = vrot.slane %v3016, %v3029
    %v3031 = vcombine.low %v2998, %v3014
    %v3032 = vcombine.high %v2998, %v3014
    %v3034 = vunpack.c.l.s4 1934713408
    %v3035 = vunpack.c.0.s8 %v3034
    %v3036 = vlaneseq
    %v3037 = vshrl.u32 %v3036, 7
    %v3038 = vsub.s32 %v3035, %v3037
    %v3039 = vrot.slane %v3031, %v3038
    %v3041 = vunpack.c.l.s4 1934713408
    %v3042 = vunpack.c.0.s8 %v3041
    %v3043 = vlaneseq
    %v3044 = vshrl.u32 %v3043, 7
    %v3045 = vsub.s32 %v3042, %v3044
    %v3046 = vrot.slane %v3032, %v3045
    %v3047 = vcombine.high %v3023, 0.0
    %v3048 = vcombine.high %v3030, 0.0
    %v3049 = vcombine.high %v3039, 0.0
    %v3050 = vcombine.high %v3046, 0.0
    %v3051 = vcombine.low %v3023, %v3030
    %v3053 = vunpack.c.l.s4 1983009808
    %v3054 = vunpack.c.0.s8 %v3053
    %v3055 = vlaneseq
    %v3056 = vshrl.u32 %v3055, 7
    %v3057 = vsub.s32 %v3054, %v3056
    %v3058 = vrot.slane %v3051, %v3057
    %v3059 = vcombine.low %v3047, %v3048
    %v3061 = vunpack.c.l.s4 1983009808
    %v3062 = vunpack.c.0.s8 %v3061
    %v3063 = vlaneseq
    %v3064 = vshrl.u32 %v3063, 7
    %v3065 = vsub.s32 %v3062, %v3064
    %v3066 = vrot.slane %v3059, %v3065
    %v3067 = vcombine.low %v3039, %v3046
    %v3069 = vunpack.c.l.s4 1983009808
    %v3070 = vunpack.c.0.s8 %v3069
    %v3071 = vlaneseq
    %v3072 = vshrl.u32 %v3071, 7
    %v3073 = vsub.s32 %v3070, %v3072
    %v3074 = vrot.slane %v3067, %v3073
    %v3075 = vcombine.low %v3049, %v3050
    %v3077 = vunpack.c.l.s4 1983009808
    %v3078 = vunpack.c.0.s8 %v3077
    %v3079 = vlaneseq
    %v3080 = vshrl.u32 %v3079, 7
    %v3081 = vsub.s32 %v3078, %v3080
    %v3082 = vrot.slane %v3075, %v3081
    %v3083 = vcombine.low %v3058, %v3066
    %v3084 = vcombine.high %v3058, %v3066
    %v3086 = vunpack.c.l.s4 1934713408
    %v3087 = vunpack.c.0.s8 %v3086
    %v3088 = vlaneseq
    %v3089 = vshrl.u32 %v3088, 7
    %v3090 = vsub.s32 %v3087, %v3089
    %v3091 = vrot.slane %v3083, %v3090
    %v3093 = vunpack.c.l.s4 1934713408
    %v3094 = vunpack.c.0.s8 %v3093
    %v3095 = vlaneseq
    %v3096 = vshrl.u32 %v3095, 7
    %v3097 = vsub.s32 %v3094, %v3096
    %v3098 = vrot.slane %v3084, %v3097
    %v3099 = vcombine.low %v3074, %v3082
    %v3100 = vcombine.high %v3074, %v3082
    %v3102 = vunpack.c.l.s4 1934713408
    %v3103 = vunpack.c.0.s8 %v3102
    %v3104 = vlaneseq
    %v3105 = vshrl.u32 %v3104, 7
    %v3106 = vsub.s32 %v3103, %v3105
    %v3107 = vrot.slane %v3099, %v3106
    %v3109 = vunpack.c.l.s4 1934713408
    %v3110 = vunpack.c.0.s8 %v3109
    %v3111 = vlaneseq
    %v3112 = vshrl.u32 %v3111, 7
    %v3113 = vsub.s32 %v3110, %v3112
    %v3114 = vrot.slane %v3100, %v3113
    %v3115 = vcombine.low %v3091, %v3107
    %v3116 = vcombine.high %v3091, %v3107
    %v3117 = vcombine.low %v3098, %v3114
    %v3118 = vcombine.high %v3098, %v3114
    %3119 = vrot.lane.b32.xlu0 %v2817, 64
    %v3120 = vpop.permute.xlu0 %3119
    %3121 = vrot.lane.b32.xlu0 %v2827, 64
    %v3122 = vpop.permute.xlu0 %3121
    %3123 = vrot.lane.b32.xlu0 %v2830, 64
    %v3124 = vpop.permute.xlu0 %3123
    %3125 = vrot.lane.b32.xlu0 %v2833, 64
    %v3126 = vpop.permute.xlu0 %3125
    %v3131 = vcombine.low %v3120, %v3124
    %v3132 = vcombine.high %v3120, %v3124
    %v3134 = vunpack.c.l.s4 1983009808
    %v3135 = vunpack.c.0.s8 %v3134
    %v3136 = vlaneseq
    %v3137 = vshrl.u32 %v3136, 7
    %v3138 = vsub.s32 %v3135, %v3137
    %v3139 = vrot.slane %v3131, %v3138
    %v3141 = vunpack.c.l.s4 1983009808
    %v3142 = vunpack.c.0.s8 %v3141
    %v3143 = vlaneseq
    %v3144 = vshrl.u32 %v3143, 7
    %v3145 = vsub.s32 %v3142, %v3144
    %v3146 = vrot.slane %v3132, %v3145
    %v3147 = vcombine.low %v3122, %v3126
    %v3148 = vcombine.high %v3122, %v3126
    %v3150 = vunpack.c.l.s4 1983009808
    %v3151 = vunpack.c.0.s8 %v3150
    %v3152 = vlaneseq
    %v3153 = vshrl.u32 %v3152, 7
    %v3154 = vsub.s32 %v3151, %v3153
    %v3155 = vrot.slane %v3147, %v3154
    %v3157 = vunpack.c.l.s4 1983009808
    %v3158 = vunpack.c.0.s8 %v3157
    %v3159 = vlaneseq
    %v3160 = vshrl.u32 %v3159, 7
    %v3161 = vsub.s32 %v3158, %v3160
    %v3162 = vrot.slane %v3148, %v3161
    %v3163 = vcombine.low %v3139, %v3155
    %v3164 = vcombine.high %v3139, %v3155
    %v3166 = vunpack.c.l.s4 1934713408
    %v3167 = vunpack.c.0.s8 %v3166
    %v3168 = vlaneseq
    %v3169 = vshrl.u32 %v3168, 7
    %v3170 = vsub.s32 %v3167, %v3169
    %v3171 = vrot.slane %v3163, %v3170
    %v3173 = vunpack.c.l.s4 1934713408
    %v3174 = vunpack.c.0.s8 %v3173
    %v3175 = vlaneseq
    %v3176 = vshrl.u32 %v3175, 7
    %v3177 = vsub.s32 %v3174, %v3176
    %v3178 = vrot.slane %v3164, %v3177
    %v3179 = vcombine.low %v3146, %v3162
    %v3180 = vcombine.high %v3146, %v3162
    %v3182 = vunpack.c.l.s4 1934713408
    %v3183 = vunpack.c.0.s8 %v3182
    %v3184 = vlaneseq
    %v3185 = vshrl.u32 %v3184, 7
    %v3186 = vsub.s32 %v3183, %v3185
    %v3187 = vrot.slane %v3179, %v3186
    %v3189 = vunpack.c.l.s4 1934713408
    %v3190 = vunpack.c.0.s8 %v3189
    %v3191 = vlaneseq
    %v3192 = vshrl.u32 %v3191, 7
    %v3193 = vsub.s32 %v3190, %v3192
    %v3194 = vrot.slane %v3180, %v3193
    %v3195 = vcombine.high %v3171, 0.0
    %v3196 = vcombine.high %v3178, 0.0
    %v3197 = vcombine.high %v3187, 0.0
    %v3198 = vcombine.high %v3194, 0.0
    %v3199 = vcombine.low %v3171, %v3178
    %v3201 = vunpack.c.l.s4 1983009808
    %v3202 = vunpack.c.0.s8 %v3201
    %v3203 = vlaneseq
    %v3204 = vshrl.u32 %v3203, 7
    %v3205 = vsub.s32 %v3202, %v3204
    %v3206 = vrot.slane %v3199, %v3205
    %v3207 = vcombine.low %v3195, %v3196
    %v3209 = vunpack.c.l.s4 1983009808
    %v3210 = vunpack.c.0.s8 %v3209
    %v3211 = vlaneseq
    %v3212 = vshrl.u32 %v3211, 7
    %v3213 = vsub.s32 %v3210, %v3212
    %v3214 = vrot.slane %v3207, %v3213
    %v3215 = vcombine.low %v3187, %v3194
    %v3217 = vunpack.c.l.s4 1983009808
    %v3218 = vunpack.c.0.s8 %v3217
    %v3219 = vlaneseq
    %v3220 = vshrl.u32 %v3219, 7
    %v3221 = vsub.s32 %v3218, %v3220
    %v3222 = vrot.slane %v3215, %v3221
    %v3223 = vcombine.low %v3197, %v3198
    %v3225 = vunpack.c.l.s4 1983009808
    %v3226 = vunpack.c.0.s8 %v3225
    %v3227 = vlaneseq
    %v3228 = vshrl.u32 %v3227, 7
    %v3229 = vsub.s32 %v3226, %v3228
    %v3230 = vrot.slane %v3223, %v3229
    %v3231 = vcombine.low %v3206, %v3214
    %v3232 = vcombine.high %v3206, %v3214
    %v3234 = vunpack.c.l.s4 1934713408
    %v3235 = vunpack.c.0.s8 %v3234
    %v3236 = vlaneseq
    %v3237 = vshrl.u32 %v3236, 7
    %v3238 = vsub.s32 %v3235, %v3237
    %v3239 = vrot.slane %v3231, %v3238
    %v3241 = vunpack.c.l.s4 1934713408
    %v3242 = vunpack.c.0.s8 %v3241
    %v3243 = vlaneseq
    %v3244 = vshrl.u32 %v3243, 7
    %v3245 = vsub.s32 %v3242, %v3244
    %v3246 = vrot.slane %v3232, %v3245
    %v3247 = vcombine.low %v3222, %v3230
    %v3248 = vcombine.high %v3222, %v3230
    %v3250 = vunpack.c.l.s4 1934713408
    %v3251 = vunpack.c.0.s8 %v3250
    %v3252 = vlaneseq
    %v3253 = vshrl.u32 %v3252, 7
    %v3254 = vsub.s32 %v3251, %v3253
    %v3255 = vrot.slane %v3247, %v3254
    %v3257 = vunpack.c.l.s4 1934713408
    %v3258 = vunpack.c.0.s8 %v3257
    %v3259 = vlaneseq
    %v3260 = vshrl.u32 %v3259, 7
    %v3261 = vsub.s32 %v3258, %v3260
    %v3262 = vrot.slane %v3248, %v3261
    %v3263 = vcombine.low %v3239, %v3255
    %v3264 = vcombine.high %v3239, %v3255
    %v3265 = vcombine.low %v3246, %v3262
    %v3266 = vcombine.high %v3246, %v3262
    %v3268 = vsel %vm630, %v2967, 0
    %v3271 = vsel %vm630, %v3115, 0
    %3273 = vmatprep.subr.mxu0 0.0
    %3274 = vmatpush1.xpose.msra.mxu0 %v3271
    %3275 = vmatprep.subr.mxu0 0.0
    %3276 = vmatpush1.xpose.msra.mxu0 0.0
    %3277 = vmatprep.subr.mxu0 0.0
    %3278 = vmatpush1.xpose.msra.mxu0 0.0
    %3279 = vmatprep.subr.mxu0 0.0
    %3280 = vmatpush1.xpose.msra.mxu0 0.0
    %3281 = vmatprep.subr.mxu0 0.0
    %3282 = vmatpush1.xpose.msra.mxu0 0.0
    %3283 = vmatprep.subr.mxu0 0.0
    %3284 = vmatpush1.xpose.msra.mxu0 0.0
    %3285 = vmatprep.subr.mxu0 0.0
    %3286 = vmatpush1.xpose.msra.mxu0 0.0
    %3287 = vmatprep.subr.mxu0 0.0
    %3288 = vmatpush1.xpose.msra.mxu0 0.0
    %3289 = vmatprep.subr.mxu0 0.0
    %3290 = vmatpush1.xpose.msra.mxu0 0.0
    %3291 = vmatprep.subr.mxu0 0.0
    %3292 = vmatpush1.xpose.msra.mxu0 0.0
    %3293 = vmatprep.subr.mxu0 0.0
    %3294 = vmatpush1.xpose.msra.mxu0 0.0
    %3295 = vmatprep.subr.mxu0 0.0
    %3296 = vmatpush1.xpose.msra.mxu0 0.0
    %3297 = vmatprep.subr.mxu0 0.0
    %3298 = vmatpush1.xpose.msra.mxu0 0.0
    %3299 = vmatprep.subr.mxu0 0.0
    %3300 = vmatpush1.xpose.msra.mxu0 0.0
    %3301 = vmatprep.subr.mxu0 0.0
    %3302 = vmatpush1.xpose.msra.mxu0 0.0
    %3303 = vmatprep.subr.mxu0 0.0
    %3304 = vmatpush1.xpose.msra.mxu0 0.0
    %3305 = vmatprep.subr.mxu0 0.0
    %3306 = vmatpush1.xpose.msra.mxu0 0.0
    %3307 = vmatprep.subr.mxu0 0.0
    %3308 = vmatpush1.xpose.msra.mxu0 0.0
    %3309 = vmatprep.subr.mxu0 0.0
    %3310 = vmatpush1.xpose.msra.mxu0 0.0
    %3311 = vmatprep.subr.mxu0 0.0
    %3312 = vmatpush1.xpose.msra.mxu0 0.0
    %3313 = vmatprep.subr.mxu0 0.0
    %3314 = vmatpush1.xpose.msra.mxu0 0.0
    %3315 = vmatprep.subr.mxu0 0.0
    %3316 = vmatpush1.xpose.msra.mxu0 0.0
    %3317 = vmatprep.subr.mxu0 0.0
    %3318 = vmatpush1.xpose.msra.mxu0 0.0
    %3319 = vmatprep.subr.mxu0 0.0
    %3320 = vmatpush1.xpose.msra.mxu0 0.0
    %3321 = vmatprep.subr.mxu0 0.0
    %3322 = vmatpush1.xpose.msra.mxu0 0.0
    %3323 = vmatprep.subr.mxu0 0.0
    %3324 = vmatpush1.xpose.msra.mxu0 0.0
    %3325 = vmatprep.subr.mxu0 0.0
    %3326 = vmatpush1.xpose.msra.mxu0 0.0
    %3327 = vmatprep.subr.mxu0 0.0
    %3328 = vmatpush1.xpose.msra.mxu0 0.0
    %3329 = vmatprep.subr.mxu0 0.0
    %3330 = vmatpush1.xpose.msra.mxu0 0.0
    %3331 = vmatprep.subr.mxu0 0.0
    %3332 = vmatpush1.xpose.msra.mxu0 0.0
    %3333 = vmatprep.subr.mxu0 0.0
    %3334 = vmatpush1.xpose.msra.mxu0 0.0
    %3335 = vmatprep.subr.mxu0 0.0
    %3336 = vmatpush1.xpose.msra.mxu0 0.0
    %3337 = vmatprep.mubr.f32.mxu0 0.0
    %3338 = vmatmul.mubr.f32.gmra.mrb[0].mxu0 %v3268
    %v3339 = vpop.f32.mrb[0].mxu0
    %v3340 = vadd.f32 0.0, %v3339
    %v3341 = vpop.f32.mrb[0].mxu0
    %3342 = vdwg.mxu0
    %v3344 = vsel %vm630, %v2968, 0
    %v3347 = vsel %vm630, %v3116, 0
    %3349 = vmatprep.subr.mxu0 0.0
    %3350 = vmatpush1.xpose.msra.mxu0 %v3347
    %3351 = vmatprep.subr.mxu0 0.0
    %3352 = vmatpush1.xpose.msra.mxu0 0.0
    %3353 = vmatprep.subr.mxu0 0.0
    %3354 = vmatpush1.xpose.msra.mxu0 0.0
    %3355 = vmatprep.subr.mxu0 0.0
    %3356 = vmatpush1.xpose.msra.mxu0 0.0
    %3357 = vmatprep.subr.mxu0 0.0
    %3358 = vmatpush1.xpose.msra.mxu0 0.0
    %3359 = vmatprep.subr.mxu0 0.0
    %3360 = vmatpush1.xpose.msra.mxu0 0.0
    %3361 = vmatprep.subr.mxu0 0.0
    %3362 = vmatpush1.xpose.msra.mxu0 0.0
    %3363 = vmatprep.subr.mxu0 0.0
    %3364 = vmatpush1.xpose.msra.mxu0 0.0
    %3365 = vmatprep.subr.mxu0 0.0
    %3366 = vmatpush1.xpose.msra.mxu0 0.0
    %3367 = vmatprep.subr.mxu0 0.0
    %3368 = vmatpush1.xpose.msra.mxu0 0.0
    %3369 = vmatprep.subr.mxu0 0.0
    %3370 = vmatpush1.xpose.msra.mxu0 0.0
    %3371 = vmatprep.subr.mxu0 0.0
    %3372 = vmatpush1.xpose.msra.mxu0 0.0
    %3373 = vmatprep.subr.mxu0 0.0
    %3374 = vmatpush1.xpose.msra.mxu0 0.0
    %3375 = vmatprep.subr.mxu0 0.0
    %3376 = vmatpush1.xpose.msra.mxu0 0.0
    %3377 = vmatprep.subr.mxu0 0.0
    %3378 = vmatpush1.xpose.msra.mxu0 0.0
    %3379 = vmatprep.subr.mxu0 0.0
    %3380 = vmatpush1.xpose.msra.mxu0 0.0
    %3381 = vmatprep.subr.mxu0 0.0
    %3382 = vmatpush1.xpose.msra.mxu0 0.0
    %3383 = vmatprep.subr.mxu0 0.0
    %3384 = vmatpush1.xpose.msra.mxu0 0.0
    %3385 = vmatprep.subr.mxu0 0.0
    %3386 = vmatpush1.xpose.msra.mxu0 0.0
    %3387 = vmatprep.subr.mxu0 0.0
    %3388 = vmatpush1.xpose.msra.mxu0 0.0
    %3389 = vmatprep.subr.mxu0 0.0
    %3390 = vmatpush1.xpose.msra.mxu0 0.0
    %3391 = vmatprep.subr.mxu0 0.0
    %3392 = vmatpush1.xpose.msra.mxu0 0.0
    %3393 = vmatprep.subr.mxu0 0.0
    %3394 = vmatpush1.xpose.msra.mxu0 0.0
    %3395 = vmatprep.subr.mxu0 0.0
    %3396 = vmatpush1.xpose.msra.mxu0 0.0
    %3397 = vmatprep.subr.mxu0 0.0
    %3398 = vmatpush1.xpose.msra.mxu0 0.0
    %3399 = vmatprep.subr.mxu0 0.0
    %3400 = vmatpush1.xpose.msra.mxu0 0.0
    %3401 = vmatprep.subr.mxu0 0.0
    %3402 = vmatpush1.xpose.msra.mxu0 0.0
    %3403 = vmatprep.subr.mxu0 0.0
    %3404 = vmatpush1.xpose.msra.mxu0 0.0
    %3405 = vmatprep.subr.mxu0 0.0
    %3406 = vmatpush1.xpose.msra.mxu0 0.0
    %3407 = vmatprep.subr.mxu0 0.0
    %3408 = vmatpush1.xpose.msra.mxu0 0.0
    %3409 = vmatprep.subr.mxu0 0.0
    %3410 = vmatpush1.xpose.msra.mxu0 0.0
    %3411 = vmatprep.subr.mxu0 0.0
    %3412 = vmatpush1.xpose.msra.mxu0 0.0
    %3413 = vmatprep.mubr.f32.mxu0 0.0
    %3414 = vmatmul.mubr.f32.gmra.mrb[0].mxu0 %v3344
    %v3415 = vpop.f32.mrb[0].mxu0
    %v3416 = vadd.f32 0.0, %v3415
    %v3417 = vpop.f32.mrb[0].mxu0
    %3418 = vdwg.mxu0
    %v3420 = vsel %vm630, %v2969, 0
    %v3423 = vsel %vm630, %v3117, 0
    %3425 = vmatprep.subr.mxu0 0.0
    %3426 = vmatpush1.xpose.msra.mxu0 %v3423
    %3427 = vmatprep.subr.mxu0 0.0
    %3428 = vmatpush1.xpose.msra.mxu0 0.0
    %3429 = vmatprep.subr.mxu0 0.0
    %3430 = vmatpush1.xpose.msra.mxu0 0.0
    %3431 = vmatprep.subr.mxu0 0.0
    %3432 = vmatpush1.xpose.msra.mxu0 0.0
    %3433 = vmatprep.subr.mxu0 0.0
    %3434 = vmatpush1.xpose.msra.mxu0 0.0
    %3435 = vmatprep.subr.mxu0 0.0
    %3436 = vmatpush1.xpose.msra.mxu0 0.0
    %3437 = vmatprep.subr.mxu0 0.0
    %3438 = vmatpush1.xpose.msra.mxu0 0.0
    %3439 = vmatprep.subr.mxu0 0.0
    %3440 = vmatpush1.xpose.msra.mxu0 0.0
    %3441 = vmatprep.subr.mxu0 0.0
    %3442 = vmatpush1.xpose.msra.mxu0 0.0
    %3443 = vmatprep.subr.mxu0 0.0
    %3444 = vmatpush1.xpose.msra.mxu0 0.0
    %3445 = vmatprep.subr.mxu0 0.0
    %3446 = vmatpush1.xpose.msra.mxu0 0.0
    %3447 = vmatprep.subr.mxu0 0.0
    %3448 = vmatpush1.xpose.msra.mxu0 0.0
    %3449 = vmatprep.subr.mxu0 0.0
    %3450 = vmatpush1.xpose.msra.mxu0 0.0
    %3451 = vmatprep.subr.mxu0 0.0
    %3452 = vmatpush1.xpose.msra.mxu0 0.0
    %3453 = vmatprep.subr.mxu0 0.0
    %3454 = vmatpush1.xpose.msra.mxu0 0.0
    %3455 = vmatprep.subr.mxu0 0.0
    %3456 = vmatpush1.xpose.msra.mxu0 0.0
    %3457 = vmatprep.subr.mxu0 0.0
    %3458 = vmatpush1.xpose.msra.mxu0 0.0
    %3459 = vmatprep.subr.mxu0 0.0
    %3460 = vmatpush1.xpose.msra.mxu0 0.0
    %3461 = vmatprep.subr.mxu0 0.0
    %3462 = vmatpush1.xpose.msra.mxu0 0.0
    %3463 = vmatprep.subr.mxu0 0.0
    %3464 = vmatpush1.xpose.msra.mxu0 0.0
    %3465 = vmatprep.subr.mxu0 0.0
    %3466 = vmatpush1.xpose.msra.mxu0 0.0
    %3467 = vmatprep.subr.mxu0 0.0
    %3468 = vmatpush1.xpose.msra.mxu0 0.0
    %3469 = vmatprep.subr.mxu0 0.0
    %3470 = vmatpush1.xpose.msra.mxu0 0.0
    %3471 = vmatprep.subr.mxu0 0.0
    %3472 = vmatpush1.xpose.msra.mxu0 0.0
    %3473 = vmatprep.subr.mxu0 0.0
    %3474 = vmatpush1.xpose.msra.mxu0 0.0
    %3475 = vmatprep.subr.mxu0 0.0
    %3476 = vmatpush1.xpose.msra.mxu0 0.0
    %3477 = vmatprep.subr.mxu0 0.0
    %3478 = vmatpush1.xpose.msra.mxu0 0.0
    %3479 = vmatprep.subr.mxu0 0.0
    %3480 = vmatpush1.xpose.msra.mxu0 0.0
    %3481 = vmatprep.subr.mxu0 0.0
    %3482 = vmatpush1.xpose.msra.mxu0 0.0
    %3483 = vmatprep.subr.mxu0 0.0
    %3484 = vmatpush1.xpose.msra.mxu0 0.0
    %3485 = vmatprep.subr.mxu0 0.0
    %3486 = vmatpush1.xpose.msra.mxu0 0.0
    %3487 = vmatprep.subr.mxu0 0.0
    %3488 = vmatpush1.xpose.msra.mxu0 0.0
    %3489 = vmatprep.mubr.f32.mxu0 0.0
    %3490 = vmatmul.mubr.f32.gmra.mrb[0].mxu0 %v3420
    %v3491 = vpop.f32.mrb[0].mxu0
    %v3492 = vadd.f32 0.0, %v3491
    %v3493 = vpop.f32.mrb[0].mxu0
    %3494 = vdwg.mxu0
    %v3496 = vsel %vm630, %v2970, 0
    %v3499 = vsel %vm630, %v3118, 0
    %3501 = vmatprep.subr.mxu0 0.0
    %3502 = vmatpush1.xpose.msra.mxu0 %v3499
    %3503 = vmatprep.subr.mxu0 0.0
    %3504 = vmatpush1.xpose.msra.mxu0 0.0
    %3505 = vmatprep.subr.mxu0 0.0
    %3506 = vmatpush1.xpose.msra.mxu0 0.0
    %3507 = vmatprep.subr.mxu0 0.0
    %3508 = vmatpush1.xpose.msra.mxu0 0.0
    %3509 = vmatprep.subr.mxu0 0.0
    %3510 = vmatpush1.xpose.msra.mxu0 0.0
    %3511 = vmatprep.subr.mxu0 0.0
    %3512 = vmatpush1.xpose.msra.mxu0 0.0
    %3513 = vmatprep.subr.mxu0 0.0
    %3514 = vmatpush1.xpose.msra.mxu0 0.0
    %3515 = vmatprep.subr.mxu0 0.0
    %3516 = vmatpush1.xpose.msra.mxu0 0.0
    %3517 = vmatprep.subr.mxu0 0.0
    %3518 = vmatpush1.xpose.msra.mxu0 0.0
    %3519 = vmatprep.subr.mxu0 0.0
    %3520 = vmatpush1.xpose.msra.mxu0 0.0
    %3521 = vmatprep.subr.mxu0 0.0
    %3522 = vmatpush1.xpose.msra.mxu0 0.0
    %3523 = vmatprep.subr.mxu0 0.0
    %3524 = vmatpush1.xpose.msra.mxu0 0.0
    %3525 = vmatprep.subr.mxu0 0.0
    %3526 = vmatpush1.xpose.msra.mxu0 0.0
    %3527 = vmatprep.subr.mxu0 0.0
    %3528 = vmatpush1.xpose.msra.mxu0 0.0
    %3529 = vmatprep.subr.mxu0 0.0
    %3530 = vmatpush1.xpose.msra.mxu0 0.0
    %3531 = vmatprep.subr.mxu0 0.0
    %3532 = vmatpush1.xpose.msra.mxu0 0.0
    %3533 = vmatprep.subr.mxu0 0.0
    %3534 = vmatpush1.xpose.msra.mxu0 0.0
    %3535 = vmatprep.subr.mxu0 0.0
    %3536 = vmatpush1.xpose.msra.mxu0 0.0
    %3537 = vmatprep.subr.mxu0 0.0
    %3538 = vmatpush1.xpose.msra.mxu0 0.0
    %3539 = vmatprep.subr.mxu0 0.0
    %3540 = vmatpush1.xpose.msra.mxu0 0.0
    %3541 = vmatprep.subr.mxu0 0.0
    %3542 = vmatpush1.xpose.msra.mxu0 0.0
    %3543 = vmatprep.subr.mxu0 0.0
    %3544 = vmatpush1.xpose.msra.mxu0 0.0
    %3545 = vmatprep.subr.mxu0 0.0
    %3546 = vmatpush1.xpose.msra.mxu0 0.0
    %3547 = vmatprep.subr.mxu0 0.0
    %3548 = vmatpush1.xpose.msra.mxu0 0.0
    %3549 = vmatprep.subr.mxu0 0.0
    %3550 = vmatpush1.xpose.msra.mxu0 0.0
    %3551 = vmatprep.subr.mxu0 0.0
    %3552 = vmatpush1.xpose.msra.mxu0 0.0
    %3553 = vmatprep.subr.mxu0 0.0
    %3554 = vmatpush1.xpose.msra.mxu0 0.0
    %3555 = vmatprep.subr.mxu0 0.0
    %3556 = vmatpush1.xpose.msra.mxu0 0.0
    %3557 = vmatprep.subr.mxu0 0.0
    %3558 = vmatpush1.xpose.msra.mxu0 0.0
    %3559 = vmatprep.subr.mxu0 0.0
    %3560 = vmatpush1.xpose.msra.mxu0 0.0
    %3561 = vmatprep.subr.mxu0 0.0
    %3562 = vmatpush1.xpose.msra.mxu0 0.0
    %3563 = vmatprep.subr.mxu0 0.0
    %3564 = vmatpush1.xpose.msra.mxu0 0.0
    %3565 = vmatprep.mubr.f32.mxu0 0.0
    %3566 = vmatmul.mubr.f32.gmra.mrb[0].mxu0 %v3496
    %v3567 = vpop.f32.mrb[0].mxu0
    %v3568 = vadd.f32 0.0, %v3567
    %v3569 = vpop.f32.mrb[0].mxu0
    %3570 = vdwg.mxu0
    %v3571 = vsel %vm630, %v3340, -inf
    %3572 = vmax.xlane.f32.xlu0 %v3571
    %v3573 = vpop.xlane.xlu0 %3572
    %v3574 = vsel %vm630, %v3416, -inf
    %3575 = vmax.xlane.f32.xlu0 %v3574
    %v3576 = vpop.xlane.xlu0 %3575
    %v3577 = vsel %vm630, %v3492, -inf
    %3578 = vmax.xlane.f32.xlu0 %v3577
    %v3579 = vpop.xlane.xlu0 %3578
    %v3580 = vsel %vm630, %v3568, -inf
    %3581 = vmax.xlane.f32.xlu0 %v3580
    %v3582 = vpop.xlane.xlu0 %3581
    %v3583 = vsub.f32 %v3340, %v3573
    %v3584 = vsub.f32 %v3416, %v3576
    %v3585 = vsub.f32 %v3492, %v3579
    %v3586 = vsub.f32 %v3568, %v3582
    %v3587 = vmul.f32 %v3583, 1.442695
    %v3588 = vpow.pop %v3587
    %v3589 = vmul.f32 %v3584, 1.442695
    %v3590 = vpow.pop %v3589
    %v3591 = vmul.f32 %v3585, 1.442695
    %v3592 = vpow.pop %v3591
    %v3593 = vmul.f32 %v3586, 1.442695
    %v3594 = vpow.pop %v3593
    %v3595 = vsel %vm630, %v3588, 0.0
    %3596 = vadd.xlane.f32.xlu0 %v3595
    %v3597 = vpop.xlane.xlu0 %3596
    %v3598 = vsel %vm630, %v3590, 0.0
    %3599 = vadd.xlane.f32.xlu0 %v3598
    %v3600 = vpop.xlane.xlu0 %3599
    %v3601 = vsel %vm630, %v3592, 0.0
    %3602 = vadd.xlane.f32.xlu0 %v3601
    %v3603 = vpop.xlane.xlu0 %3602
    %v3604 = vsel %vm630, %v3594, 0.0
    %3605 = vadd.xlane.f32.xlu0 %v3604
    %v3606 = vpop.xlane.xlu0 %3605
    %v3607 = vrcp.pop %v3597
    %v3608 = vrcp.pop %v3600
    %v3609 = vrcp.pop %v3603
    %v3610 = vrcp.pop %v3606
    %v3611 = vmul.f32 %v3588, %v3607
    %v3612 = vmul.f32 %v3590, %v3608
    %v3613 = vmul.f32 %v3592, %v3609
    %v3614 = vmul.f32 %v3594, %v3610
    %v3616 = vsel %vm630, %v3611, 0
    %3618 = vmatprep.subr.mxu0 0.0
    %3619 = vmatpush1.msra.mxu0 %v3263
    %3620 = vmatprep.subr.mxu0 0.0
    %3621 = vmatpush1.msra.mxu0 0.0
    %3622 = vmatprep.subr.mxu0 0.0
    %3623 = vmatpush1.msra.mxu0 0.0
    %3624 = vmatprep.subr.mxu0 0.0
    %3625 = vmatpush1.msra.mxu0 0.0
    %3626 = vmatprep.subr.mxu0 0.0
    %3627 = vmatpush1.msra.mxu0 0.0
    %3628 = vmatprep.subr.mxu0 0.0
    %3629 = vmatpush1.msra.mxu0 0.0
    %3630 = vmatprep.subr.mxu0 0.0
    %3631 = vmatpush1.msra.mxu0 0.0
    %3632 = vmatprep.subr.mxu0 0.0
    %3633 = vmatpush1.msra.mxu0 0.0
    %3634 = vmatprep.subr.mxu0 0.0
    %3635 = vmatpush1.msra.mxu0 0.0
    %3636 = vmatprep.subr.mxu0 0.0
    %3637 = vmatpush1.msra.mxu0 0.0
    %3638 = vmatprep.subr.mxu0 0.0
    %3639 = vmatpush1.msra.mxu0 0.0
    %3640 = vmatprep.subr.mxu0 0.0
    %3641 = vmatpush1.msra.mxu0 0.0
    %3642 = vmatprep.subr.mxu0 0.0
    %3643 = vmatpush1.msra.mxu0 0.0
    %3644 = vmatprep.subr.mxu0 0.0
    %3645 = vmatpush1.msra.mxu0 0.0
    %3646 = vmatprep.subr.mxu0 0.0
    %3647 = vmatpush1.msra.mxu0 0.0
    %3648 = vmatprep.subr.mxu0 0.0
    %3649 = vmatpush1.msra.mxu0 0.0
    %3650 = vmatprep.subr.mxu0 0.0
    %3651 = vmatpush1.msra.mxu0 0.0
    %3652 = vmatprep.subr.mxu0 0.0
    %3653 = vmatpush1.msra.mxu0 0.0
    %3654 = vmatprep.subr.mxu0 0.0
    %3655 = vmatpush1.msra.mxu0 0.0
    %3656 = vmatprep.subr.mxu0 0.0
    %3657 = vmatpush1.msra.mxu0 0.0
    %3658 = vmatprep.subr.mxu0 0.0
    %3659 = vmatpush1.msra.mxu0 0.0
    %3660 = vmatprep.subr.mxu0 0.0
    %3661 = vmatpush1.msra.mxu0 0.0
    %3662 = vmatprep.subr.mxu0 0.0
    %3663 = vmatpush1.msra.mxu0 0.0
    %3664 = vmatprep.subr.mxu0 0.0
    %3665 = vmatpush1.msra.mxu0 0.0
    %3666 = vmatprep.subr.mxu0 0.0
    %3667 = vmatpush1.msra.mxu0 0.0
    %3668 = vmatprep.subr.mxu0 0.0
    %3669 = vmatpush1.msra.mxu0 0.0
    %3670 = vmatprep.subr.mxu0 0.0
    %3671 = vmatpush1.msra.mxu0 0.0
    %3672 = vmatprep.subr.mxu0 0.0
    %3673 = vmatpush1.msra.mxu0 0.0
    %3674 = vmatprep.subr.mxu0 0.0
    %3675 = vmatpush1.msra.mxu0 0.0
    %3676 = vmatprep.subr.mxu0 0.0
    %3677 = vmatpush1.msra.mxu0 0.0
    %3678 = vmatprep.subr.mxu0 0.0
    %3679 = vmatpush1.msra.mxu0 0.0
    %3680 = vmatprep.subr.mxu0 0.0
    %3681 = vmatpush1.msra.mxu0 0.0
    %3682 = vmatprep.mubr.f32.mxu0 0.0
    %3683 = vmatmul.mubr.f32.gmra.mrb[0].mxu0 %v3616
    %v3684 = vpop.f32.mrb[0].mxu0
    %v3685 = vadd.f32 0.0, %v3684
    %v3686 = vpop.f32.mrb[0].mxu0
    %3687 = vdwg.mxu0
    %v3689 = vsel %vm630, %v3612, 0
    %3691 = vmatprep.subr.mxu0 0.0
    %3692 = vmatpush1.msra.mxu0 %v3264
    %3693 = vmatprep.subr.mxu0 0.0
    %3694 = vmatpush1.msra.mxu0 0.0
    %3695 = vmatprep.subr.mxu0 0.0
    %3696 = vmatpush1.msra.mxu0 0.0
    %3697 = vmatprep.subr.mxu0 0.0
    %3698 = vmatpush1.msra.mxu0 0.0
    %3699 = vmatprep.subr.mxu0 0.0
    %3700 = vmatpush1.msra.mxu0 0.0
    %3701 = vmatprep.subr.mxu0 0.0
    %3702 = vmatpush1.msra.mxu0 0.0
    %3703 = vmatprep.subr.mxu0 0.0
    %3704 = vmatpush1.msra.mxu0 0.0
    %3705 = vmatprep.subr.mxu0 0.0
    %3706 = vmatpush1.msra.mxu0 0.0
    %3707 = vmatprep.subr.mxu0 0.0
    %3708 = vmatpush1.msra.mxu0 0.0
    %3709 = vmatprep.subr.mxu0 0.0
    %3710 = vmatpush1.msra.mxu0 0.0
    %3711 = vmatprep.subr.mxu0 0.0
    %3712 = vmatpush1.msra.mxu0 0.0
    %3713 = vmatprep.subr.mxu0 0.0
    %3714 = vmatpush1.msra.mxu0 0.0
    %3715 = vmatprep.subr.mxu0 0.0
    %3716 = vmatpush1.msra.mxu0 0.0
    %3717 = vmatprep.subr.mxu0 0.0
    %3718 = vmatpush1.msra.mxu0 0.0
    %3719 = vmatprep.subr.mxu0 0.0
    %3720 = vmatpush1.msra.mxu0 0.0
    %3721 = vmatprep.subr.mxu0 0.0
    %3722 = vmatpush1.msra.mxu0 0.0
    %3723 = vmatprep.subr.mxu0 0.0
    %3724 = vmatpush1.msra.mxu0 0.0
    %3725 = vmatprep.subr.mxu0 0.0
    %3726 = vmatpush1.msra.mxu0 0.0
    %3727 = vmatprep.subr.mxu0 0.0
    %3728 = vmatpush1.msra.mxu0 0.0
    %3729 = vmatprep.subr.mxu0 0.0
    %3730 = vmatpush1.msra.mxu0 0.0
    %3731 = vmatprep.subr.mxu0 0.0
    %3732 = vmatpush1.msra.mxu0 0.0
    %3733 = vmatprep.subr.mxu0 0.0
    %3734 = vmatpush1.msra.mxu0 0.0
    %3735 = vmatprep.subr.mxu0 0.0
    %3736 = vmatpush1.msra.mxu0 0.0
    %3737 = vmatprep.subr.mxu0 0.0
    %3738 = vmatpush1.msra.mxu0 0.0
    %3739 = vmatprep.subr.mxu0 0.0
    %3740 = vmatpush1.msra.mxu0 0.0
    %3741 = vmatprep.subr.mxu0 0.0
    %3742 = vmatpush1.msra.mxu0 0.0
    %3743 = vmatprep.subr.mxu0 0.0
    %3744 = vmatpush1.msra.mxu0 0.0
    %3745 = vmatprep.subr.mxu0 0.0
    %3746 = vmatpush1.msra.mxu0 0.0
    %3747 = vmatprep.subr.mxu0 0.0
    %3748 = vmatpush1.msra.mxu0 0.0
    %3749 = vmatprep.subr.mxu0 0.0
    %3750 = vmatpush1.msra.mxu0 0.0
    %3751 = vmatprep.subr.mxu0 0.0
    %3752 = vmatpush1.msra.mxu0 0.0
    %3753 = vmatprep.subr.mxu0 0.0
    %3754 = vmatpush1.msra.mxu0 0.0
    %3755 = vmatprep.mubr.f32.mxu0 0.0
    %3756 = vmatmul.mubr.f32.gmra.mrb[0].mxu0 %v3689
    %v3757 = vpop.f32.mrb[0].mxu0
    %v3758 = vadd.f32 0.0, %v3757
    %v3759 = vpop.f32.mrb[0].mxu0
    %3760 = vdwg.mxu0
    %v3762 = vsel %vm630, %v3613, 0
    %3764 = vmatprep.subr.mxu0 0.0
    %3765 = vmatpush1.msra.mxu0 %v3265
    %3766 = vmatprep.subr.mxu0 0.0
    %3767 = vmatpush1.msra.mxu0 0.0
    %3768 = vmatprep.subr.mxu0 0.0
    %3769 = vmatpush1.msra.mxu0 0.0
    %3770 = vmatprep.subr.mxu0 0.0
    %3771 = vmatpush1.msra.mxu0 0.0
    %3772 = vmatprep.subr.mxu0 0.0
    %3773 = vmatpush1.msra.mxu0 0.0
    %3774 = vmatprep.subr.mxu0 0.0
    %3775 = vmatpush1.msra.mxu0 0.0
    %3776 = vmatprep.subr.mxu0 0.0
    %3777 = vmatpush1.msra.mxu0 0.0
    %3778 = vmatprep.subr.mxu0 0.0
    %3779 = vmatpush1.msra.mxu0 0.0
    %3780 = vmatprep.subr.mxu0 0.0
    %3781 = vmatpush1.msra.mxu0 0.0
    %3782 = vmatprep.subr.mxu0 0.0
    %3783 = vmatpush1.msra.mxu0 0.0
    %3784 = vmatprep.subr.mxu0 0.0
    %3785 = vmatpush1.msra.mxu0 0.0
    %3786 = vmatprep.subr.mxu0 0.0
    %3787 = vmatpush1.msra.mxu0 0.0
    %3788 = vmatprep.subr.mxu0 0.0
    %3789 = vmatpush1.msra.mxu0 0.0
    %3790 = vmatprep.subr.mxu0 0.0
    %3791 = vmatpush1.msra.mxu0 0.0
    %3792 = vmatprep.subr.mxu0 0.0
    %3793 = vmatpush1.msra.mxu0 0.0
    %3794 = vmatprep.subr.mxu0 0.0
    %3795 = vmatpush1.msra.mxu0 0.0
    %3796 = vmatprep.subr.mxu0 0.0
    %3797 = vmatpush1.msra.mxu0 0.0
    %3798 = vmatprep.subr.mxu0 0.0
    %3799 = vmatpush1.msra.mxu0 0.0
    %3800 = vmatprep.subr.mxu0 0.0
    %3801 = vmatpush1.msra.mxu0 0.0
    %3802 = vmatprep.subr.mxu0 0.0
    %3803 = vmatpush1.msra.mxu0 0.0
    %3804 = vmatprep.subr.mxu0 0.0
    %3805 = vmatpush1.msra.mxu0 0.0
    %3806 = vmatprep.subr.mxu0 0.0
    %3807 = vmatpush1.msra.mxu0 0.0
    %3808 = vmatprep.subr.mxu0 0.0
    %3809 = vmatpush1.msra.mxu0 0.0
    %3810 = vmatprep.subr.mxu0 0.0
    %3811 = vmatpush1.msra.mxu0 0.0
    %3812 = vmatprep.subr.mxu0 0.0
    %3813 = vmatpush1.msra.mxu0 0.0
    %3814 = vmatprep.subr.mxu0 0.0
    %3815 = vmatpush1.msra.mxu0 0.0
    %3816 = vmatprep.subr.mxu0 0.0
    %3817 = vmatpush1.msra.mxu0 0.0
    %3818 = vmatprep.subr.mxu0 0.0
    %3819 = vmatpush1.msra.mxu0 0.0
    %3820 = vmatprep.subr.mxu0 0.0
    %3821 = vmatpush1.msra.mxu0 0.0
    %3822 = vmatprep.subr.mxu0 0.0
    %3823 = vmatpush1.msra.mxu0 0.0
    %3824 = vmatprep.subr.mxu0 0.0
    %3825 = vmatpush1.msra.mxu0 0.0
    %3826 = vmatprep.subr.mxu0 0.0
    %3827 = vmatpush1.msra.mxu0 0.0
    %3828 = vmatprep.mubr.f32.mxu0 0.0
    %3829 = vmatmul.mubr.f32.gmra.mrb[0].mxu0 %v3762
    %v3830 = vpop.f32.mrb[0].mxu0
    %v3831 = vadd.f32 0.0, %v3830
    %v3832 = vpop.f32.mrb[0].mxu0
    %3833 = vdwg.mxu0
    %v3835 = vsel %vm630, %v3614, 0
    %3837 = vmatprep.subr.mxu0 0.0
    %3838 = vmatpush1.msra.mxu0 %v3266
    %3839 = vmatprep.subr.mxu0 0.0
    %3840 = vmatpush1.msra.mxu0 0.0
    %3841 = vmatprep.subr.mxu0 0.0
    %3842 = vmatpush1.msra.mxu0 0.0
    %3843 = vmatprep.subr.mxu0 0.0
    %3844 = vmatpush1.msra.mxu0 0.0
    %3845 = vmatprep.subr.mxu0 0.0
    %3846 = vmatpush1.msra.mxu0 0.0
    %3847 = vmatprep.subr.mxu0 0.0
    %3848 = vmatpush1.msra.mxu0 0.0
    %3849 = vmatprep.subr.mxu0 0.0
    %3850 = vmatpush1.msra.mxu0 0.0
    %3851 = vmatprep.subr.mxu0 0.0
    %3852 = vmatpush1.msra.mxu0 0.0
    %3853 = vmatprep.subr.mxu0 0.0
    %3854 = vmatpush1.msra.mxu0 0.0
    %3855 = vmatprep.subr.mxu0 0.0
    %3856 = vmatpush1.msra.mxu0 0.0
    %3857 = vmatprep.subr.mxu0 0.0
    %3858 = vmatpush1.msra.mxu0 0.0
    %3859 = vmatprep.subr.mxu0 0.0
    %3860 = vmatpush1.msra.mxu0 0.0
    %3861 = vmatprep.subr.mxu0 0.0
    %3862 = vmatpush1.msra.mxu0 0.0
    %3863 = vmatprep.subr.mxu0 0.0
    %3864 = vmatpush1.msra.mxu0 0.0
    %3865 = vmatprep.subr.mxu0 0.0
    %3866 = vmatpush1.msra.mxu0 0.0
    %3867 = vmatprep.subr.mxu0 0.0
    %3868 = vmatpush1.msra.mxu0 0.0
    %3869 = vmatprep.subr.mxu0 0.0
    %3870 = vmatpush1.msra.mxu0 0.0
    %3871 = vmatprep.subr.mxu0 0.0
    %3872 = vmatpush1.msra.mxu0 0.0
    %3873 = vmatprep.subr.mxu0 0.0
    %3874 = vmatpush1.msra.mxu0 0.0
    %3875 = vmatprep.subr.mxu0 0.0
    %3876 = vmatpush1.msra.mxu0 0.0
    %3877 = vmatprep.subr.mxu0 0.0
    %3878 = vmatpush1.msra.mxu0 0.0
    %3879 = vmatprep.subr.mxu0 0.0
    %3880 = vmatpush1.msra.mxu0 0.0
    %3881 = vmatprep.subr.mxu0 0.0
    %3882 = vmatpush1.msra.mxu0 0.0
    %3883 = vmatprep.subr.mxu0 0.0
    %3884 = vmatpush1.msra.mxu0 0.0
    %3885 = vmatprep.subr.mxu0 0.0
    %3886 = vmatpush1.msra.mxu0 0.0
    %3887 = vmatprep.subr.mxu0 0.0
    %3888 = vmatpush1.msra.mxu0 0.0
    %3889 = vmatprep.subr.mxu0 0.0
    %3890 = vmatpush1.msra.mxu0 0.0
    %3891 = vmatprep.subr.mxu0 0.0
    %3892 = vmatpush1.msra.mxu0 0.0
    %3893 = vmatprep.subr.mxu0 0.0
    %3894 = vmatpush1.msra.mxu0 0.0
    %3895 = vmatprep.subr.mxu0 0.0
    %3896 = vmatpush1.msra.mxu0 0.0
    %3897 = vmatprep.subr.mxu0 0.0
    %3898 = vmatpush1.msra.mxu0 0.0
    %3899 = vmatprep.subr.mxu0 0.0
    %3900 = vmatpush1.msra.mxu0 0.0
    %3901 = vmatprep.mubr.f32.mxu0 0.0
    %3902 = vmatmul.mubr.f32.gmra.mrb[0].mxu0 %v3835
    %v3903 = vpop.f32.mrb[0].mxu0
    %v3904 = vadd.f32 0.0, %v3903
    %v3905 = vpop.f32.mrb[0].mxu0
    %3906 = vdwg.mxu0
    %v3907 = vcombine.low %v3685, %v3831
    %v3908 = vcombine.high %v3685, %v3831
    %v3910 = vunpack.c.l.s4 1983009808
    %v3911 = vunpack.c.0.s8 %v3910
    %v3912 = vlaneseq
    %v3913 = vshrl.u32 %v3912, 7
    %v3914 = vsub.s32 %v3911, %v3913
    %v3915 = vrot.slane %v3907, %v3914
    %v3917 = vunpack.c.l.s4 1983009808
    %v3918 = vunpack.c.0.s8 %v3917
    %v3919 = vlaneseq
    %v3920 = vshrl.u32 %v3919, 7
    %v3921 = vsub.s32 %v3918, %v3920
    %v3922 = vrot.slane %v3908, %v3921
    %v3923 = vcombine.low %v3758, %v3904
    %v3924 = vcombine.high %v3758, %v3904
    %v3926 = vunpack.c.l.s4 1983009808
    %v3927 = vunpack.c.0.s8 %v3926
    %v3928 = vlaneseq
    %v3929 = vshrl.u32 %v3928, 7
    %v3930 = vsub.s32 %v3927, %v3929
    %v3931 = vrot.slane %v3923, %v3930
    %v3933 = vunpack.c.l.s4 1983009808
    %v3934 = vunpack.c.0.s8 %v3933
    %v3935 = vlaneseq
    %v3936 = vshrl.u32 %v3935, 7
    %v3937 = vsub.s32 %v3934, %v3936
    %v3938 = vrot.slane %v3924, %v3937
    %v3939 = vcombine.low %v3915, %v3931
    %v3940 = vcombine.high %v3915, %v3931
    %v3942 = vunpack.c.l.s4 1934713408
    %v3943 = vunpack.c.0.s8 %v3942
    %v3944 = vlaneseq
    %v3945 = vshrl.u32 %v3944, 7
    %v3946 = vsub.s32 %v3943, %v3945
    %v3947 = vrot.slane %v3939, %v3946
    %v3949 = vunpack.c.l.s4 1934713408
    %v3950 = vunpack.c.0.s8 %v3949
    %v3951 = vlaneseq
    %v3952 = vshrl.u32 %v3951, 7
    %v3953 = vsub.s32 %v3950, %v3952
    %v3954 = vrot.slane %v3940, %v3953
    %v3955 = vcombine.low %v3922, %v3938
    %v3956 = vcombine.high %v3922, %v3938
    %v3958 = vunpack.c.l.s4 1934713408
    %v3959 = vunpack.c.0.s8 %v3958
    %v3960 = vlaneseq
    %v3961 = vshrl.u32 %v3960, 7
    %v3962 = vsub.s32 %v3959, %v3961
    %v3963 = vrot.slane %v3955, %v3962
    %v3965 = vunpack.c.l.s4 1934713408
    %v3966 = vunpack.c.0.s8 %v3965
    %v3967 = vlaneseq
    %v3968 = vshrl.u32 %v3967, 7
    %v3969 = vsub.s32 %v3966, %v3968
    %v3970 = vrot.slane %v3956, %v3969
    %v3971 = vcombine.high %v3947, 0.0
    %v3972 = vcombine.high %v3954, 0.0
    %v3973 = vcombine.high %v3963, 0.0
    %v3974 = vcombine.high %v3970, 0.0
    %v3975 = vcombine.low %v3947, %v3954
    %v3977 = vunpack.c.l.s4 1983009808
    %v3978 = vunpack.c.0.s8 %v3977
    %v3979 = vlaneseq
    %v3980 = vshrl.u32 %v3979, 7
    %v3981 = vsub.s32 %v3978, %v3980
    %v3982 = vrot.slane %v3975, %v3981
    %v3983 = vcombine.low %v3971, %v3972
    %v3985 = vunpack.c.l.s4 1983009808
    %v3986 = vunpack.c.0.s8 %v3985
    %v3987 = vlaneseq
    %v3988 = vshrl.u32 %v3987, 7
    %v3989 = vsub.s32 %v3986, %v3988
    %v3990 = vrot.slane %v3983, %v3989
    %v3991 = vcombine.low %v3963, %v3970
    %v3993 = vunpack.c.l.s4 1983009808
    %v3994 = vunpack.c.0.s8 %v3993
    %v3995 = vlaneseq
    %v3996 = vshrl.u32 %v3995, 7
    %v3997 = vsub.s32 %v3994, %v3996
    %v3998 = vrot.slane %v3991, %v3997
    %v3999 = vcombine.low %v3973, %v3974
    %v4001 = vunpack.c.l.s4 1983009808
    %v4002 = vunpack.c.0.s8 %v4001
    %v4003 = vlaneseq
    %v4004 = vshrl.u32 %v4003, 7
    %v4005 = vsub.s32 %v4002, %v4004
    %v4006 = vrot.slane %v3999, %v4005
    %v4007 = vcombine.low %v3982, %v3990
    %v4008 = vcombine.high %v3982, %v3990
    %v4010 = vunpack.c.l.s4 1934713408
    %v4011 = vunpack.c.0.s8 %v4010
    %v4012 = vlaneseq
    %v4013 = vshrl.u32 %v4012, 7
    %v4014 = vsub.s32 %v4011, %v4013
    %v4015 = vrot.slane %v4007, %v4014
    %v4017 = vunpack.c.l.s4 1934713408
    %v4018 = vunpack.c.0.s8 %v4017
    %v4019 = vlaneseq
    %v4020 = vshrl.u32 %v4019, 7
    %v4021 = vsub.s32 %v4018, %v4020
    %v4022 = vrot.slane %v4008, %v4021
    %v4023 = vcombine.low %v3998, %v4006
    %v4024 = vcombine.high %v3998, %v4006
    %v4026 = vunpack.c.l.s4 1934713408
    %v4027 = vunpack.c.0.s8 %v4026
    %v4028 = vlaneseq
    %v4029 = vshrl.u32 %v4028, 7
    %v4030 = vsub.s32 %v4027, %v4029
    %v4031 = vrot.slane %v4023, %v4030
    %v4033 = vunpack.c.l.s4 1934713408
    %v4034 = vunpack.c.0.s8 %v4033
    %v4035 = vlaneseq
    %v4036 = vshrl.u32 %v4035, 7
    %v4037 = vsub.s32 %v4034, %v4036
    %v4038 = vrot.slane %v4024, %v4037
    %v4039 = vcombine.low %v4015, %v4031
    %v4040 = vcombine.high %v4015, %v4031
    %v4041 = vcombine.low %v4022, %v4038
    %v4042 = vcombine.high %v4022, %v4038
    %4044 = vrot.lane.b32.xlu0 %v4040, 8
    %v4045 = vpop.permute.xlu0 %4044
    %4048 = vrot.lane.b32.xlu0 %v4041, 16
    %v4049 = vpop.permute.xlu0 %4048
    %4052 = vrot.lane.b32.xlu0 %v4042, 24
    %v4053 = vpop.permute.xlu0 %4052
    %v4055 = vsel %vm630, %v4039, %v4045
    %v4056 = vsel %vm1420, %v4055, %v4049
    %v4057 = vsel %vm1422, %v4056, %v4053
    %4059 = vrot.lane.b32.xlu0 %v2822, 120
    %v4060 = vpop.permute.xlu0 %4059
    %4062 = vrot.lane.b32.xlu0 %v2822, 112
    %v4063 = vpop.permute.xlu0 %4062
    %4065 = vrot.lane.b32.xlu0 %v2822, 104
    %v4066 = vpop.permute.xlu0 %4065
    %v4068 = vcombine.low %v2822, %v4063
    %v4069 = vcombine.high %v2822, %v4063
    %v4071 = vunpack.c.l.s4 1983009808
    %v4072 = vunpack.c.0.s8 %v4071
    %v4073 = vlaneseq
    %v4074 = vshrl.u32 %v4073, 7
    %v4075 = vsub.s32 %v4072, %v4074
    %v4076 = vrot.slane %v4068, %v4075
    %v4078 = vunpack.c.l.s4 1983009808
    %v4079 = vunpack.c.0.s8 %v4078
    %v4080 = vlaneseq
    %v4081 = vshrl.u32 %v4080, 7
    %v4082 = vsub.s32 %v4079, %v4081
    %v4083 = vrot.slane %v4069, %v4082
    %v4084 = vcombine.low %v4060, %v4066
    %v4085 = vcombine.high %v4060, %v4066
    %v4087 = vunpack.c.l.s4 1983009808
    %v4088 = vunpack.c.0.s8 %v4087
    %v4089 = vlaneseq
    %v4090 = vshrl.u32 %v4089, 7
    %v4091 = vsub.s32 %v4088, %v4090
    %v4092 = vrot.slane %v4084, %v4091
    %v4094 = vunpack.c.l.s4 1983009808
    %v4095 = vunpack.c.0.s8 %v4094
    %v4096 = vlaneseq
    %v4097 = vshrl.u32 %v4096, 7
    %v4098 = vsub.s32 %v4095, %v4097
    %v4099 = vrot.slane %v4085, %v4098
    %v4100 = vcombine.low %v4076, %v4092
    %v4101 = vcombine.high %v4076, %v4092
    %v4103 = vunpack.c.l.s4 1934713408
    %v4104 = vunpack.c.0.s8 %v4103
    %v4105 = vlaneseq
    %v4106 = vshrl.u32 %v4105, 7
    %v4107 = vsub.s32 %v4104, %v4106
    %v4108 = vrot.slane %v4100, %v4107
    %v4110 = vunpack.c.l.s4 1934713408
    %v4111 = vunpack.c.0.s8 %v4110
    %v4112 = vlaneseq
    %v4113 = vshrl.u32 %v4112, 7
    %v4114 = vsub.s32 %v4111, %v4113
    %v4115 = vrot.slane %v4101, %v4114
    %v4116 = vcombine.low %v4083, %v4099
    %v4117 = vcombine.high %v4083, %v4099
    %v4119 = vunpack.c.l.s4 1934713408
    %v4120 = vunpack.c.0.s8 %v4119
    %v4121 = vlaneseq
    %v4122 = vshrl.u32 %v4121, 7
    %v4123 = vsub.s32 %v4120, %v4122
    %v4124 = vrot.slane %v4116, %v4123
    %v4126 = vunpack.c.l.s4 1934713408
    %v4127 = vunpack.c.0.s8 %v4126
    %v4128 = vlaneseq
    %v4129 = vshrl.u32 %v4128, 7
    %v4130 = vsub.s32 %v4127, %v4129
    %v4131 = vrot.slane %v4117, %v4130
    %v4132 = vcombine.high %v4108, 0.0
    %v4133 = vcombine.high %v4115, 0.0
    %v4134 = vcombine.high %v4124, 0.0
    %v4135 = vcombine.high %v4131, 0.0
    %v4136 = vcombine.low %v4108, %v4115
    %v4138 = vunpack.c.l.s4 1983009808
    %v4139 = vunpack.c.0.s8 %v4138
    %v4140 = vlaneseq
    %v4141 = vshrl.u32 %v4140, 7
    %v4142 = vsub.s32 %v4139, %v4141
    %v4143 = vrot.slane %v4136, %v4142
    %v4144 = vcombine.low %v4132, %v4133
    %v4146 = vunpack.c.l.s4 1983009808
    %v4147 = vunpack.c.0.s8 %v4146
    %v4148 = vlaneseq
    %v4149 = vshrl.u32 %v4148, 7
    %v4150 = vsub.s32 %v4147, %v4149
    %v4151 = vrot.slane %v4144, %v4150
    %v4152 = vcombine.low %v4124, %v4131
    %v4154 = vunpack.c.l.s4 1983009808
    %v4155 = vunpack.c.0.s8 %v4154
    %v4156 = vlaneseq
    %v4157 = vshrl.u32 %v4156, 7
    %v4158 = vsub.s32 %v4155, %v4157
    %v4159 = vrot.slane %v4152, %v4158
    %v4160 = vcombine.low %v4134, %v4135
    %v4162 = vunpack.c.l.s4 1983009808
    %v4163 = vunpack.c.0.s8 %v4162
    %v4164 = vlaneseq
    %v4165 = vshrl.u32 %v4164, 7
    %v4166 = vsub.s32 %v4163, %v4165
    %v4167 = vrot.slane %v4160, %v4166
    %v4168 = vcombine.low %v4143, %v4151
    %v4169 = vcombine.high %v4143, %v4151
    %v4171 = vunpack.c.l.s4 1934713408
    %v4172 = vunpack.c.0.s8 %v4171
    %v4173 = vlaneseq
    %v4174 = vshrl.u32 %v4173, 7
    %v4175 = vsub.s32 %v4172, %v4174
    %v4176 = vrot.slane %v4168, %v4175
    %v4178 = vunpack.c.l.s4 1934713408
    %v4179 = vunpack.c.0.s8 %v4178
    %v4180 = vlaneseq
    %v4181 = vshrl.u32 %v4180, 7
    %v4182 = vsub.s32 %v4179, %v4181
    %v4183 = vrot.slane %v4169, %v4182
    %v4184 = vcombine.low %v4159, %v4167
    %v4185 = vcombine.high %v4159, %v4167
    %v4187 = vunpack.c.l.s4 1934713408
    %v4188 = vunpack.c.0.s8 %v4187
    %v4189 = vlaneseq
    %v4190 = vshrl.u32 %v4189, 7
    %v4191 = vsub.s32 %v4188, %v4190
    %v4192 = vrot.slane %v4184, %v4191
    %v4194 = vunpack.c.l.s4 1934713408
    %v4195 = vunpack.c.0.s8 %v4194
    %v4196 = vlaneseq
    %v4197 = vshrl.u32 %v4196, 7
    %v4198 = vsub.s32 %v4195, %v4197
    %v4199 = vrot.slane %v4185, %v4198
    %v4200 = vcombine.low %v4176, %v4192
    %v4201 = vcombine.high %v4176, %v4192
    %v4202 = vcombine.low %v4183, %v4199
    %v4203 = vcombine.high %v4183, %v4199
    %4204 = vrot.lane.b32.xlu0 %v2822, 96
    %v4205 = vpop.permute.xlu0 %4204
    %4206 = vrot.lane.b32.xlu0 %v4060, 96
    %v4207 = vpop.permute.xlu0 %4206
    %4208 = vrot.lane.b32.xlu0 %v4063, 96
    %v4209 = vpop.permute.xlu0 %4208
    %4210 = vrot.lane.b32.xlu0 %v4066, 96
    %v4211 = vpop.permute.xlu0 %4210
    %v4216 = vcombine.low %v4205, %v4209
    %v4217 = vcombine.high %v4205, %v4209
    %v4219 = vunpack.c.l.s4 1983009808
    %v4220 = vunpack.c.0.s8 %v4219
    %v4221 = vlaneseq
    %v4222 = vshrl.u32 %v4221, 7
    %v4223 = vsub.s32 %v4220, %v4222
    %v4224 = vrot.slane %v4216, %v4223
    %v4226 = vunpack.c.l.s4 1983009808
    %v4227 = vunpack.c.0.s8 %v4226
    %v4228 = vlaneseq
    %v4229 = vshrl.u32 %v4228, 7
    %v4230 = vsub.s32 %v4227, %v4229
    %v4231 = vrot.slane %v4217, %v4230
    %v4232 = vcombine.low %v4207, %v4211
    %v4233 = vcombine.high %v4207, %v4211
    %v4235 = vunpack.c.l.s4 1983009808
    %v4236 = vunpack.c.0.s8 %v4235
    %v4237 = vlaneseq
    %v4238 = vshrl.u32 %v4237, 7
    %v4239 = vsub.s32 %v4236, %v4238
    %v4240 = vrot.slane %v4232, %v4239
    %v4242 = vunpack.c.l.s4 1983009808
    %v4243 = vunpack.c.0.s8 %v4242
    %v4244 = vlaneseq
    %v4245 = vshrl.u32 %v4244, 7
    %v4246 = vsub.s32 %v4243, %v4245
    %v4247 = vrot.slane %v4233, %v4246
    %v4248 = vcombine.low %v4224, %v4240
    %v4249 = vcombine.high %v4224, %v4240
    %v4251 = vunpack.c.l.s4 1934713408
    %v4252 = vunpack.c.0.s8 %v4251
    %v4253 = vlaneseq
    %v4254 = vshrl.u32 %v4253, 7
    %v4255 = vsub.s32 %v4252, %v4254
    %v4256 = vrot.slane %v4248, %v4255
    %v4258 = vunpack.c.l.s4 1934713408
    %v4259 = vunpack.c.0.s8 %v4258
    %v4260 = vlaneseq
    %v4261 = vshrl.u32 %v4260, 7
    %v4262 = vsub.s32 %v4259, %v4261
    %v4263 = vrot.slane %v4249, %v4262
    %v4264 = vcombine.low %v4231, %v4247
    %v4265 = vcombine.high %v4231, %v4247
    %v4267 = vunpack.c.l.s4 1934713408
    %v4268 = vunpack.c.0.s8 %v4267
    %v4269 = vlaneseq
    %v4270 = vshrl.u32 %v4269, 7
    %v4271 = vsub.s32 %v4268, %v4270
    %v4272 = vrot.slane %v4264, %v4271
    %v4274 = vunpack.c.l.s4 1934713408
    %v4275 = vunpack.c.0.s8 %v4274
    %v4276 = vlaneseq
    %v4277 = vshrl.u32 %v4276, 7
    %v4278 = vsub.s32 %v4275, %v4277
    %v4279 = vrot.slane %v4265, %v4278
    %v4280 = vcombine.high %v4256, 0.0
    %v4281 = vcombine.high %v4263, 0.0
    %v4282 = vcombine.high %v4272, 0.0
    %v4283 = vcombine.high %v4279, 0.0
    %v4284 = vcombine.low %v4256, %v4263
    %v4286 = vunpack.c.l.s4 1983009808
    %v4287 = vunpack.c.0.s8 %v4286
    %v4288 = vlaneseq
    %v4289 = vshrl.u32 %v4288, 7
    %v4290 = vsub.s32 %v4287, %v4289
    %v4291 = vrot.slane %v4284, %v4290
    %v4292 = vcombine.low %v4280, %v4281
    %v4294 = vunpack.c.l.s4 1983009808
    %v4295 = vunpack.c.0.s8 %v4294
    %v4296 = vlaneseq
    %v4297 = vshrl.u32 %v4296, 7
    %v4298 = vsub.s32 %v4295, %v4297
    %v4299 = vrot.slane %v4292, %v4298
    %v4300 = vcombine.low %v4272, %v4279
    %v4302 = vunpack.c.l.s4 1983009808
    %v4303 = vunpack.c.0.s8 %v4302
    %v4304 = vlaneseq
    %v4305 = vshrl.u32 %v4304, 7
    %v4306 = vsub.s32 %v4303, %v4305
    %v4307 = vrot.slane %v4300, %v4306
    %v4308 = vcombine.low %v4282, %v4283
    %v4310 = vunpack.c.l.s4 1983009808
    %v4311 = vunpack.c.0.s8 %v4310
    %v4312 = vlaneseq
    %v4313 = vshrl.u32 %v4312, 7
    %v4314 = vsub.s32 %v4311, %v4313
    %v4315 = vrot.slane %v4308, %v4314
    %v4316 = vcombine.low %v4291, %v4299
    %v4317 = vcombine.high %v4291, %v4299
    %v4319 = vunpack.c.l.s4 1934713408
    %v4320 = vunpack.c.0.s8 %v4319
    %v4321 = vlaneseq
    %v4322 = vshrl.u32 %v4321, 7
    %v4323 = vsub.s32 %v4320, %v4322
    %v4324 = vrot.slane %v4316, %v4323
    %v4326 = vunpack.c.l.s4 1934713408
    %v4327 = vunpack.c.0.s8 %v4326
    %v4328 = vlaneseq
    %v4329 = vshrl.u32 %v4328, 7
    %v4330 = vsub.s32 %v4327, %v4329
    %v4331 = vrot.slane %v4317, %v4330
    %v4332 = vcombine.low %v4307, %v4315
    %v4333 = vcombine.high %v4307, %v4315
    %v4335 = vunpack.c.l.s4 1934713408
    %v4336 = vunpack.c.0.s8 %v4335
    %v4337 = vlaneseq
    %v4338 = vshrl.u32 %v4337, 7
    %v4339 = vsub.s32 %v4336, %v4338
    %v4340 = vrot.slane %v4332, %v4339
    %v4342 = vunpack.c.l.s4 1934713408
    %v4343 = vunpack.c.0.s8 %v4342
    %v4344 = vlaneseq
    %v4345 = vshrl.u32 %v4344, 7
    %v4346 = vsub.s32 %v4343, %v4345
    %v4347 = vrot.slane %v4333, %v4346
    %v4348 = vcombine.low %v4324, %v4340
    %v4349 = vcombine.high %v4324, %v4340
    %v4350 = vcombine.low %v4331, %v4347
    %v4351 = vcombine.high %v4331, %v4347
    %4352 = vrot.lane.b32.xlu0 %v2822, 64
    %v4353 = vpop.permute.xlu0 %4352
    %4354 = vrot.lane.b32.xlu0 %v4060, 64
    %v4355 = vpop.permute.xlu0 %4354
    %4356 = vrot.lane.b32.xlu0 %v4063, 64
    %v4357 = vpop.permute.xlu0 %4356
    %4358 = vrot.lane.b32.xlu0 %v4066, 64
    %v4359 = vpop.permute.xlu0 %4358
    %v4364 = vcombine.low %v4353, %v4357
    %v4365 = vcombine.high %v4353, %v4357
    %v4367 = vunpack.c.l.s4 1983009808
    %v4368 = vunpack.c.0.s8 %v4367
    %v4369 = vlaneseq
    %v4370 = vshrl.u32 %v4369, 7
    %v4371 = vsub.s32 %v4368, %v4370
    %v4372 = vrot.slane %v4364, %v4371
    %v4374 = vunpack.c.l.s4 1983009808
    %v4375 = vunpack.c.0.s8 %v4374
    %v4376 = vlaneseq
    %v4377 = vshrl.u32 %v4376, 7
    %v4378 = vsub.s32 %v4375, %v4377
    %v4379 = vrot.slane %v4365, %v4378
    %v4380 = vcombine.low %v4355, %v4359
    %v4381 = vcombine.high %v4355, %v4359
    %v4383 = vunpack.c.l.s4 1983009808
    %v4384 = vunpack.c.0.s8 %v4383
    %v4385 = vlaneseq
    %v4386 = vshrl.u32 %v4385, 7
    %v4387 = vsub.s32 %v4384, %v4386
    %v4388 = vrot.slane %v4380, %v4387
    %v4390 = vunpack.c.l.s4 1983009808
    %v4391 = vunpack.c.0.s8 %v4390
    %v4392 = vlaneseq
    %v4393 = vshrl.u32 %v4392, 7
    %v4394 = vsub.s32 %v4391, %v4393
    %v4395 = vrot.slane %v4381, %v4394
    %v4396 = vcombine.low %v4372, %v4388
    %v4397 = vcombine.high %v4372, %v4388
    %v4399 = vunpack.c.l.s4 1934713408
    %v4400 = vunpack.c.0.s8 %v4399
    %v4401 = vlaneseq
    %v4402 = vshrl.u32 %v4401, 7
    %v4403 = vsub.s32 %v4400, %v4402
    %v4404 = vrot.slane %v4396, %v4403
    %v4406 = vunpack.c.l.s4 1934713408
    %v4407 = vunpack.c.0.s8 %v4406
    %v4408 = vlaneseq
    %v4409 = vshrl.u32 %v4408, 7
    %v4410 = vsub.s32 %v4407, %v4409
    %v4411 = vrot.slane %v4397, %v4410
    %v4412 = vcombine.low %v4379, %v4395
    %v4413 = vcombine.high %v4379, %v4395
    %v4415 = vunpack.c.l.s4 1934713408
    %v4416 = vunpack.c.0.s8 %v4415
    %v4417 = vlaneseq
    %v4418 = vshrl.u32 %v4417, 7
    %v4419 = vsub.s32 %v4416, %v4418
    %v4420 = vrot.slane %v4412, %v4419
    %v4422 = vunpack.c.l.s4 1934713408
    %v4423 = vunpack.c.0.s8 %v4422
    %v4424 = vlaneseq
    %v4425 = vshrl.u32 %v4424, 7
    %v4426 = vsub.s32 %v4423, %v4425
    %v4427 = vrot.slane %v4413, %v4426
    %v4428 = vcombine.high %v4404, 0.0
    %v4429 = vcombine.high %v4411, 0.0
    %v4430 = vcombine.high %v4420, 0.0
    %v4431 = vcombine.high %v4427, 0.0
    %v4432 = vcombine.low %v4404, %v4411
    %v4434 = vunpack.c.l.s4 1983009808
    %v4435 = vunpack.c.0.s8 %v4434
    %v4436 = vlaneseq
    %v4437 = vshrl.u32 %v4436, 7
    %v4438 = vsub.s32 %v4435, %v4437
    %v4439 = vrot.slane %v4432, %v4438
    %v4440 = vcombine.low %v4428, %v4429
    %v4442 = vunpack.c.l.s4 1983009808
    %v4443 = vunpack.c.0.s8 %v4442
    %v4444 = vlaneseq
    %v4445 = vshrl.u32 %v4444, 7
    %v4446 = vsub.s32 %v4443, %v4445
    %v4447 = vrot.slane %v4440, %v4446
    %v4448 = vcombine.low %v4420, %v4427
    %v4450 = vunpack.c.l.s4 1983009808
    %v4451 = vunpack.c.0.s8 %v4450
    %v4452 = vlaneseq
    %v4453 = vshrl.u32 %v4452, 7
    %v4454 = vsub.s32 %v4451, %v4453
    %v4455 = vrot.slane %v4448, %v4454
    %v4456 = vcombine.low %v4430, %v4431
    %v4458 = vunpack.c.l.s4 1983009808
    %v4459 = vunpack.c.0.s8 %v4458
    %v4460 = vlaneseq
    %v4461 = vshrl.u32 %v4460, 7
    %v4462 = vsub.s32 %v4459, %v4461
    %v4463 = vrot.slane %v4456, %v4462
    %v4464 = vcombine.low %v4439, %v4447
    %v4465 = vcombine.high %v4439, %v4447
    %v4467 = vunpack.c.l.s4 1934713408
    %v4468 = vunpack.c.0.s8 %v4467
    %v4469 = vlaneseq
    %v4470 = vshrl.u32 %v4469, 7
    %v4471 = vsub.s32 %v4468, %v4470
    %v4472 = vrot.slane %v4464, %v4471
    %v4474 = vunpack.c.l.s4 1934713408
    %v4475 = vunpack.c.0.s8 %v4474
    %v4476 = vlaneseq
    %v4477 = vshrl.u32 %v4476, 7
    %v4478 = vsub.s32 %v4475, %v4477
    %v4479 = vrot.slane %v4465, %v4478
    %v4480 = vcombine.low %v4455, %v4463
    %v4481 = vcombine.high %v4455, %v4463
    %v4483 = vunpack.c.l.s4 1934713408
    %v4484 = vunpack.c.0.s8 %v4483
    %v4485 = vlaneseq
    %v4486 = vshrl.u32 %v4485, 7
    %v4487 = vsub.s32 %v4484, %v4486
    %v4488 = vrot.slane %v4480, %v4487
    %v4490 = vunpack.c.l.s4 1934713408
    %v4491 = vunpack.c.0.s8 %v4490
    %v4492 = vlaneseq
    %v4493 = vshrl.u32 %v4492, 7
    %v4494 = vsub.s32 %v4491, %v4493
    %v4495 = vrot.slane %v4481, %v4494
    %v4496 = vcombine.low %v4472, %v4488
    %v4497 = vcombine.high %v4472, %v4488
    %v4498 = vcombine.low %v4479, %v4495
    %v4499 = vcombine.high %v4479, %v4495
    %v4501 = vsel %vm630, %v4200, 0
    %v4504 = vsel %vm630, %v4348, 0
    %4506 = vmatprep.subr.mxu0 0.0
    %4507 = vmatpush1.xpose.msra.mxu0 %v4504
    %4508 = vmatprep.subr.mxu0 0.0
    %4509 = vmatpush1.xpose.msra.mxu0 0.0
    %4510 = vmatprep.subr.mxu0 0.0
    %4511 = vmatpush1.xpose.msra.mxu0 0.0
    %4512 = vmatprep.subr.mxu0 0.0
    %4513 = vmatpush1.xpose.msra.mxu0 0.0
    %4514 = vmatprep.subr.mxu0 0.0
    %4515 = vmatpush1.xpose.msra.mxu0 0.0
    %4516 = vmatprep.subr.mxu0 0.0
    %4517 = vmatpush1.xpose.msra.mxu0 0.0
    %4518 = vmatprep.subr.mxu0 0.0
    %4519 = vmatpush1.xpose.msra.mxu0 0.0
    %4520 = vmatprep.subr.mxu0 0.0
    %4521 = vmatpush1.xpose.msra.mxu0 0.0
    %4522 = vmatprep.subr.mxu0 0.0
    %4523 = vmatpush1.xpose.msra.mxu0 0.0
    %4524 = vmatprep.subr.mxu0 0.0
    %4525 = vmatpush1.xpose.msra.mxu0 0.0
    %4526 = vmatprep.subr.mxu0 0.0
    %4527 = vmatpush1.xpose.msra.mxu0 0.0
    %4528 = vmatprep.subr.mxu0 0.0
    %4529 = vmatpush1.xpose.msra.mxu0 0.0
    %4530 = vmatprep.subr.mxu0 0.0
    %4531 = vmatpush1.xpose.msra.mxu0 0.0
    %4532 = vmatprep.subr.mxu0 0.0
    %4533 = vmatpush1.xpose.msra.mxu0 0.0
    %4534 = vmatprep.subr.mxu0 0.0
    %4535 = vmatpush1.xpose.msra.mxu0 0.0
    %4536 = vmatprep.subr.mxu0 0.0
    %4537 = vmatpush1.xpose.msra.mxu0 0.0
    %4538 = vmatprep.subr.mxu0 0.0
    %4539 = vmatpush1.xpose.msra.mxu0 0.0
    %4540 = vmatprep.subr.mxu0 0.0
    %4541 = vmatpush1.xpose.msra.mxu0 0.0
    %4542 = vmatprep.subr.mxu0 0.0
    %4543 = vmatpush1.xpose.msra.mxu0 0.0
    %4544 = vmatprep.subr.mxu0 0.0
    %4545 = vmatpush1.xpose.msra.mxu0 0.0
    %4546 = vmatprep.subr.mxu0 0.0
    %4547 = vmatpush1.xpose.msra.mxu0 0.0
    %4548 = vmatprep.subr.mxu0 0.0
    %4549 = vmatpush1.xpose.msra.mxu0 0.0
    %4550 = vmatprep.subr.mxu0 0.0
    %4551 = vmatpush1.xpose.msra.mxu0 0.0
    %4552 = vmatprep.subr.mxu0 0.0
    %4553 = vmatpush1.xpose.msra.mxu0 0.0
    %4554 = vmatprep.subr.mxu0 0.0
    %4555 = vmatpush1.xpose.msra.mxu0 0.0
    %4556 = vmatprep.subr.mxu0 0.0
    %4557 = vmatpush1.xpose.msra.mxu0 0.0
    %4558 = vmatprep.subr.mxu0 0.0
    %4559 = vmatpush1.xpose.msra.mxu0 0.0
    %4560 = vmatprep.subr.mxu0 0.0
    %4561 = vmatpush1.xpose.msra.mxu0 0.0
    %4562 = vmatprep.subr.mxu0 0.0
    %4563 = vmatpush1.xpose.msra.mxu0 0.0
    %4564 = vmatprep.subr.mxu0 0.0
    %4565 = vmatpush1.xpose.msra.mxu0 0.0
    %4566 = vmatprep.subr.mxu0 0.0
    %4567 = vmatpush1.xpose.msra.mxu0 0.0
    %4568 = vmatprep.subr.mxu0 0.0
    %4569 = vmatpush1.xpose.msra.mxu0 0.0
    %4570 = vmatprep.mubr.f32.mxu0 0.0
    %4571 = vmatmul.mubr.f32.gmra.mrb[0].mxu0 %v4501
    %v4572 = vpop.f32.mrb[0].mxu0
    %v4573 = vadd.f32 0.0, %v4572
    %v4574 = vpop.f32.mrb[0].mxu0
    %4575 = vdwg.mxu0
    %v4577 = vsel %vm630, %v4201, 0
    %v4580 = vsel %vm630, %v4349, 0
    %4582 = vmatprep.subr.mxu0 0.0
    %4583 = vmatpush1.xpose.msra.mxu0 %v4580
    %4584 = vmatprep.subr.mxu0 0.0
    %4585 = vmatpush1.xpose.msra.mxu0 0.0
    %4586 = vmatprep.subr.mxu0 0.0
    %4587 = vmatpush1.xpose.msra.mxu0 0.0
    %4588 = vmatprep.subr.mxu0 0.0
    %4589 = vmatpush1.xpose.msra.mxu0 0.0
    %4590 = vmatprep.subr.mxu0 0.0
    %4591 = vmatpush1.xpose.msra.mxu0 0.0
    %4592 = vmatprep.subr.mxu0 0.0
    %4593 = vmatpush1.xpose.msra.mxu0 0.0
    %4594 = vmatprep.subr.mxu0 0.0
    %4595 = vmatpush1.xpose.msra.mxu0 0.0
    %4596 = vmatprep.subr.mxu0 0.0
    %4597 = vmatpush1.xpose.msra.mxu0 0.0
    %4598 = vmatprep.subr.mxu0 0.0
    %4599 = vmatpush1.xpose.msra.mxu0 0.0
    %4600 = vmatprep.subr.mxu0 0.0
    %4601 = vmatpush1.xpose.msra.mxu0 0.0
    %4602 = vmatprep.subr.mxu0 0.0
    %4603 = vmatpush1.xpose.msra.mxu0 0.0
    %4604 = vmatprep.subr.mxu0 0.0
    %4605 = vmatpush1.xpose.msra.mxu0 0.0
    %4606 = vmatprep.subr.mxu0 0.0
    %4607 = vmatpush1.xpose.msra.mxu0 0.0
    %4608 = vmatprep.subr.mxu0 0.0
    %4609 = vmatpush1.xpose.msra.mxu0 0.0
    %4610 = vmatprep.subr.mxu0 0.0
    %4611 = vmatpush1.xpose.msra.mxu0 0.0
    %4612 = vmatprep.subr.mxu0 0.0
    %4613 = vmatpush1.xpose.msra.mxu0 0.0
    %4614 = vmatprep.subr.mxu0 0.0
    %4615 = vmatpush1.xpose.msra.mxu0 0.0
    %4616 = vmatprep.subr.mxu0 0.0
    %4617 = vmatpush1.xpose.msra.mxu0 0.0
    %4618 = vmatprep.subr.mxu0 0.0
    %4619 = vmatpush1.xpose.msra.mxu0 0.0
    %4620 = vmatprep.subr.mxu0 0.0
    %4621 = vmatpush1.xpose.msra.mxu0 0.0
    %4622 = vmatprep.subr.mxu0 0.0
    %4623 = vmatpush1.xpose.msra.mxu0 0.0
    %4624 = vmatprep.subr.mxu0 0.0
    %4625 = vmatpush1.xpose.msra.mxu0 0.0
    %4626 = vmatprep.subr.mxu0 0.0
    %4627 = vmatpush1.xpose.msra.mxu0 0.0
    %4628 = vmatprep.subr.mxu0 0.0
    %4629 = vmatpush1.xpose.msra.mxu0 0.0
    %4630 = vmatprep.subr.mxu0 0.0
    %4631 = vmatpush1.xpose.msra.mxu0 0.0
    %4632 = vmatprep.subr.mxu0 0.0
    %4633 = vmatpush1.xpose.msra.mxu0 0.0
    %4634 = vmatprep.subr.mxu0 0.0
    %4635 = vmatpush1.xpose.msra.mxu0 0.0
    %4636 = vmatprep.subr.mxu0 0.0
    %4637 = vmatpush1.xpose.msra.mxu0 0.0
    %4638 = vmatprep.subr.mxu0 0.0
    %4639 = vmatpush1.xpose.msra.mxu0 0.0
    %4640 = vmatprep.subr.mxu0 0.0
    %4641 = vmatpush1.xpose.msra.mxu0 0.0
    %4642 = vmatprep.subr.mxu0 0.0
    %4643 = vmatpush1.xpose.msra.mxu0 0.0
    %4644 = vmatprep.subr.mxu0 0.0
    %4645 = vmatpush1.xpose.msra.mxu0 0.0
    %4646 = vmatprep.mubr.f32.mxu0 0.0
    %4647 = vmatmul.mubr.f32.gmra.mrb[0].mxu0 %v4577
    %v4648 = vpop.f32.mrb[0].mxu0
    %v4649 = vadd.f32 0.0, %v4648
    %v4650 = vpop.f32.mrb[0].mxu0
    %4651 = vdwg.mxu0
    %v4653 = vsel %vm630, %v4202, 0
    %v4656 = vsel %vm630, %v4350, 0
    %4658 = vmatprep.subr.mxu0 0.0
    %4659 = vmatpush1.xpose.msra.mxu0 %v4656
    %4660 = vmatprep.subr.mxu0 0.0
    %4661 = vmatpush1.xpose.msra.mxu0 0.0
    %4662 = vmatprep.subr.mxu0 0.0
    %4663 = vmatpush1.xpose.msra.mxu0 0.0
    %4664 = vmatprep.subr.mxu0 0.0
    %4665 = vmatpush1.xpose.msra.mxu0 0.0
    %4666 = vmatprep.subr.mxu0 0.0
    %4667 = vmatpush1.xpose.msra.mxu0 0.0
    %4668 = vmatprep.subr.mxu0 0.0
    %4669 = vmatpush1.xpose.msra.mxu0 0.0
    %4670 = vmatprep.subr.mxu0 0.0
    %4671 = vmatpush1.xpose.msra.mxu0 0.0
    %4672 = vmatprep.subr.mxu0 0.0
    %4673 = vmatpush1.xpose.msra.mxu0 0.0
    %4674 = vmatprep.subr.mxu0 0.0
    %4675 = vmatpush1.xpose.msra.mxu0 0.0
    %4676 = vmatprep.subr.mxu0 0.0
    %4677 = vmatpush1.xpose.msra.mxu0 0.0
    %4678 = vmatprep.subr.mxu0 0.0
    %4679 = vmatpush1.xpose.msra.mxu0 0.0
    %4680 = vmatprep.subr.mxu0 0.0
    %4681 = vmatpush1.xpose.msra.mxu0 0.0
    %4682 = vmatprep.subr.mxu0 0.0
    %4683 = vmatpush1.xpose.msra.mxu0 0.0
    %4684 = vmatprep.subr.mxu0 0.0
    %4685 = vmatpush1.xpose.msra.mxu0 0.0
    %4686 = vmatprep.subr.mxu0 0.0
    %4687 = vmatpush1.xpose.msra.mxu0 0.0
    %4688 = vmatprep.subr.mxu0 0.0
    %4689 = vmatpush1.xpose.msra.mxu0 0.0
    %4690 = vmatprep.subr.mxu0 0.0
    %4691 = vmatpush1.xpose.msra.mxu0 0.0
    %4692 = vmatprep.subr.mxu0 0.0
    %4693 = vmatpush1.xpose.msra.mxu0 0.0
    %4694 = vmatprep.subr.mxu0 0.0
    %4695 = vmatpush1.xpose.msra.mxu0 0.0
    %4696 = vmatprep.subr.mxu0 0.0
    %4697 = vmatpush1.xpose.msra.mxu0 0.0
    %4698 = vmatprep.subr.mxu0 0.0
    %4699 = vmatpush1.xpose.msra.mxu0 0.0
    %4700 = vmatprep.subr.mxu0 0.0
    %4701 = vmatpush1.xpose.msra.mxu0 0.0
    %4702 = vmatprep.subr.mxu0 0.0
    %4703 = vmatpush1.xpose.msra.mxu0 0.0
    %4704 = vmatprep.subr.mxu0 0.0
    %4705 = vmatpush1.xpose.msra.mxu0 0.0
    %4706 = vmatprep.subr.mxu0 0.0
    %4707 = vmatpush1.xpose.msra.mxu0 0.0
    %4708 = vmatprep.subr.mxu0 0.0
    %4709 = vmatpush1.xpose.msra.mxu0 0.0
    %4710 = vmatprep.subr.mxu0 0.0
    %4711 = vmatpush1.xpose.msra.mxu0 0.0
    %4712 = vmatprep.subr.mxu0 0.0
    %4713 = vmatpush1.xpose.msra.mxu0 0.0
    %4714 = vmatprep.subr.mxu0 0.0
    %4715 = vmatpush1.xpose.msra.mxu0 0.0
    %4716 = vmatprep.subr.mxu0 0.0
    %4717 = vmatpush1.xpose.msra.mxu0 0.0
    %4718 = vmatprep.subr.mxu0 0.0
    %4719 = vmatpush1.xpose.msra.mxu0 0.0
    %4720 = vmatprep.subr.mxu0 0.0
    %4721 = vmatpush1.xpose.msra.mxu0 0.0
    %4722 = vmatprep.mubr.f32.mxu0 0.0
    %4723 = vmatmul.mubr.f32.gmra.mrb[0].mxu0 %v4653
    %v4724 = vpop.f32.mrb[0].mxu0
    %v4725 = vadd.f32 0.0, %v4724
    %v4726 = vpop.f32.mrb[0].mxu0
    %4727 = vdwg.mxu0
    %v4729 = vsel %vm630, %v4203, 0
    %v4732 = vsel %vm630, %v4351, 0
    %4734 = vmatprep.subr.mxu0 0.0
    %4735 = vmatpush1.xpose.msra.mxu0 %v4732
    %4736 = vmatprep.subr.mxu0 0.0
    %4737 = vmatpush1.xpose.msra.mxu0 0.0
    %4738 = vmatprep.subr.mxu0 0.0
    %4739 = vmatpush1.xpose.msra.mxu0 0.0
    %4740 = vmatprep.subr.mxu0 0.0
    %4741 = vmatpush1.xpose.msra.mxu0 0.0
    %4742 = vmatprep.subr.mxu0 0.0
    %4743 = vmatpush1.xpose.msra.mxu0 0.0
    %4744 = vmatprep.subr.mxu0 0.0
    %4745 = vmatpush1.xpose.msra.mxu0 0.0
    %4746 = vmatprep.subr.mxu0 0.0
    %4747 = vmatpush1.xpose.msra.mxu0 0.0
    %4748 = vmatprep.subr.mxu0 0.0
    %4749 = vmatpush1.xpose.msra.mxu0 0.0
    %4750 = vmatprep.subr.mxu0 0.0
    %4751 = vmatpush1.xpose.msra.mxu0 0.0
    %4752 = vmatprep.subr.mxu0 0.0
    %4753 = vmatpush1.xpose.msra.mxu0 0.0
    %4754 = vmatprep.subr.mxu0 0.0
    %4755 = vmatpush1.xpose.msra.mxu0 0.0
    %4756 = vmatprep.subr.mxu0 0.0
    %4757 = vmatpush1.xpose.msra.mxu0 0.0
    %4758 = vmatprep.subr.mxu0 0.0
    %4759 = vmatpush1.xpose.msra.mxu0 0.0
    %4760 = vmatprep.subr.mxu0 0.0
    %4761 = vmatpush1.xpose.msra.mxu0 0.0
    %4762 = vmatprep.subr.mxu0 0.0
    %4763 = vmatpush1.xpose.msra.mxu0 0.0
    %4764 = vmatprep.subr.mxu0 0.0
    %4765 = vmatpush1.xpose.msra.mxu0 0.0
    %4766 = vmatprep.subr.mxu0 0.0
    %4767 = vmatpush1.xpose.msra.mxu0 0.0
    %4768 = vmatprep.subr.mxu0 0.0
    %4769 = vmatpush1.xpose.msra.mxu0 0.0
    %4770 = vmatprep.subr.mxu0 0.0
    %4771 = vmatpush1.xpose.msra.mxu0 0.0
    %4772 = vmatprep.subr.mxu0 0.0
    %4773 = vmatpush1.xpose.msra.mxu0 0.0
    %4774 = vmatprep.subr.mxu0 0.0
    %4775 = vmatpush1.xpose.msra.mxu0 0.0
    %4776 = vmatprep.subr.mxu0 0.0
    %4777 = vmatpush1.xpose.msra.mxu0 0.0
    %4778 = vmatprep.subr.mxu0 0.0
    %4779 = vmatpush1.xpose.msra.mxu0 0.0
    %4780 = vmatprep.subr.mxu0 0.0
    %4781 = vmatpush1.xpose.msra.mxu0 0.0
    %4782 = vmatprep.subr.mxu0 0.0
    %4783 = vmatpush1.xpose.msra.mxu0 0.0
    %4784 = vmatprep.subr.mxu0 0.0
    %4785 = vmatpush1.xpose.msra.mxu0 0.0
    %4786 = vmatprep.subr.mxu0 0.0
    %4787 = vmatpush1.xpose.msra.mxu0 0.0
    %4788 = vmatprep.subr.mxu0 0.0
    %4789 = vmatpush1.xpose.msra.mxu0 0.0
    %4790 = vmatprep.subr.mxu0 0.0
    %4791 = vmatpush1.xpose.msra.mxu0 0.0
    %4792 = vmatprep.subr.mxu0 0.0
    %4793 = vmatpush1.xpose.msra.mxu0 0.0
    %4794 = vmatprep.subr.mxu0 0.0
    %4795 = vmatpush1.xpose.msra.mxu0 0.0
    %4796 = vmatprep.subr.mxu0 0.0
    %4797 = vmatpush1.xpose.msra.mxu0 0.0
    %4798 = vmatprep.mubr.f32.mxu0 0.0
    %4799 = vmatmul.mubr.f32.gmra.mrb[0].mxu0 %v4729
    %v4800 = vpop.f32.mrb[0].mxu0
    %v4801 = vadd.f32 0.0, %v4800
    %v4802 = vpop.f32.mrb[0].mxu0
    %4803 = vdwg.mxu0
    %v4804 = vsel %vm630, %v4573, -inf
    %4805 = vmax.xlane.f32.xlu0 %v4804
    %v4806 = vpop.xlane.xlu0 %4805
    %v4807 = vsel %vm630, %v4649, -inf
    %4808 = vmax.xlane.f32.xlu0 %v4807
    %v4809 = vpop.xlane.xlu0 %4808
    %v4810 = vsel %vm630, %v4725, -inf
    %4811 = vmax.xlane.f32.xlu0 %v4810
    %v4812 = vpop.xlane.xlu0 %4811
    %v4813 = vsel %vm630, %v4801, -inf
    %4814 = vmax.xlane.f32.xlu0 %v4813
    %v4815 = vpop.xlane.xlu0 %4814
    %v4816 = vsub.f32 %v4573, %v4806
    %v4817 = vsub.f32 %v4649, %v4809
    %v4818 = vsub.f32 %v4725, %v4812
    %v4819 = vsub.f32 %v4801, %v4815
    %v4820 = vmul.f32 %v4816, 1.442695
    %v4821 = vpow.pop %v4820
    %v4822 = vmul.f32 %v4817, 1.442695
    %v4823 = vpow.pop %v4822
    %v4824 = vmul.f32 %v4818, 1.442695
    %v4825 = vpow.pop %v4824
    %v4826 = vmul.f32 %v4819, 1.442695
    %v4827 = vpow.pop %v4826
    %v4828 = vsel %vm630, %v4821, 0.0
    %4829 = vadd.xlane.f32.xlu0 %v4828
    %v4830 = vpop.xlane.xlu0 %4829
    %v4831 = vsel %vm630, %v4823, 0.0
    %4832 = vadd.xlane.f32.xlu0 %v4831
    %v4833 = vpop.xlane.xlu0 %4832
    %v4834 = vsel %vm630, %v4825, 0.0
    %4835 = vadd.xlane.f32.xlu0 %v4834
    %v4836 = vpop.xlane.xlu0 %4835
    %v4837 = vsel %vm630, %v4827, 0.0
    %4838 = vadd.xlane.f32.xlu0 %v4837
    %v4839 = vpop.xlane.xlu0 %4838
    %v4840 = vrcp.pop %v4830
    %v4841 = vrcp.pop %v4833
    %v4842 = vrcp.pop %v4836
    %v4843 = vrcp.pop %v4839
    %v4844 = vmul.f32 %v4821, %v4840
    %v4845 = vmul.f32 %v4823, %v4841
    %v4846 = vmul.f32 %v4825, %v4842
    %v4847 = vmul.f32 %v4827, %v4843
    %v4849 = vsel %vm630, %v4844, 0
    %4851 = vmatprep.subr.mxu0 0.0
    %4852 = vmatpush1.msra.mxu0 %v4496
    %4853 = vmatprep.subr.mxu0 0.0
    %4854 = vmatpush1.msra.mxu0 0.0
    %4855 = vmatprep.subr.mxu0 0.0
    %4856 = vmatpush1.msra.mxu0 0.0
    %4857 = vmatprep.subr.mxu0 0.0
    %4858 = vmatpush1.msra.mxu0 0.0
    %4859 = vmatprep.subr.mxu0 0.0
    %4860 = vmatpush1.msra.mxu0 0.0
    %4861 = vmatprep.subr.mxu0 0.0
    %4862 = vmatpush1.msra.mxu0 0.0
    %4863 = vmatprep.subr.mxu0 0.0
    %4864 = vmatpush1.msra.mxu0 0.0
    %4865 = vmatprep.subr.mxu0 0.0
    %4866 = vmatpush1.msra.mxu0 0.0
    %4867 = vmatprep.subr.mxu0 0.0
    %4868 = vmatpush1.msra.mxu0 0.0
    %4869 = vmatprep.subr.mxu0 0.0
    %4870 = vmatpush1.msra.mxu0 0.0
    %4871 = vmatprep.subr.mxu0 0.0
    %4872 = vmatpush1.msra.mxu0 0.0
    %4873 = vmatprep.subr.mxu0 0.0
    %4874 = vmatpush1.msra.mxu0 0.0
    %4875 = vmatprep.subr.mxu0 0.0
    %4876 = vmatpush1.msra.mxu0 0.0
    %4877 = vmatprep.subr.mxu0 0.0
    %4878 = vmatpush1.msra.mxu0 0.0
    %4879 = vmatprep.subr.mxu0 0.0
    %4880 = vmatpush1.msra.mxu0 0.0
    %4881 = vmatprep.subr.mxu0 0.0
    %4882 = vmatpush1.msra.mxu0 0.0
    %4883 = vmatprep.subr.mxu0 0.0
    %4884 = vmatpush1.msra.mxu0 0.0
    %4885 = vmatprep.subr.mxu0 0.0
    %4886 = vmatpush1.msra.mxu0 0.0
    %4887 = vmatprep.subr.mxu0 0.0
    %4888 = vmatpush1.msra.mxu0 0.0
    %4889 = vmatprep.subr.mxu0 0.0
    %4890 = vmatpush1.msra.mxu0 0.0
    %4891 = vmatprep.subr.mxu0 0.0
    %4892 = vmatpush1.msra.mxu0 0.0
    %4893 = vmatprep.subr.mxu0 0.0
    %4894 = vmatpush1.msra.mxu0 0.0
    %4895 = vmatprep.subr.mxu0 0.0
    %4896 = vmatpush1.msra.mxu0 0.0
    %4897 = vmatprep.subr.mxu0 0.0
    %4898 = vmatpush1.msra.mxu0 0.0
    %4899 = vmatprep.subr.mxu0 0.0
    %4900 = vmatpush1.msra.mxu0 0.0
    %4901 = vmatprep.subr.mxu0 0.0
    %4902 = vmatpush1.msra.mxu0 0.0
    %4903 = vmatprep.subr.mxu0 0.0
    %4904 = vmatpush1.msra.mxu0 0.0
    %4905 = vmatprep.subr.mxu0 0.0
    %4906 = vmatpush1.msra.mxu0 0.0
    %4907 = vmatprep.subr.mxu0 0.0
    %4908 = vmatpush1.msra.mxu0 0.0
    %4909 = vmatprep.subr.mxu0 0.0
    %4910 = vmatpush1.msra.mxu0 0.0
    %4911 = vmatprep.subr.mxu0 0.0
    %4912 = vmatpush1.msra.mxu0 0.0
    %4913 = vmatprep.subr.mxu0 0.0
    %4914 = vmatpush1.msra.mxu0 0.0
    %4915 = vmatprep.mubr.f32.mxu0 0.0
    %4916 = vmatmul.mubr.f32.gmra.mrb[0].mxu0 %v4849
    %v4917 = vpop.f32.mrb[0].mxu0
    %v4918 = vadd.f32 0.0, %v4917
    %v4919 = vpop.f32.mrb[0].mxu0
    %4920 = vdwg.mxu0
    %v4922 = vsel %vm630, %v4845, 0
    %4924 = vmatprep.subr.mxu0 0.0
    %4925 = vmatpush1.msra.mxu0 %v4497
    %4926 = vmatprep.subr.mxu0 0.0
    %4927 = vmatpush1.msra.mxu0 0.0
    %4928 = vmatprep.subr.mxu0 0.0
    %4929 = vmatpush1.msra.mxu0 0.0
    %4930 = vmatprep.subr.mxu0 0.0
    %4931 = vmatpush1.msra.mxu0 0.0
    %4932 = vmatprep.subr.mxu0 0.0
    %4933 = vmatpush1.msra.mxu0 0.0
    %4934 = vmatprep.subr.mxu0 0.0
    %4935 = vmatpush1.msra.mxu0 0.0
    %4936 = vmatprep.subr.mxu0 0.0
    %4937 = vmatpush1.msra.mxu0 0.0
    %4938 = vmatprep.subr.mxu0 0.0
    %4939 = vmatpush1.msra.mxu0 0.0
    %4940 = vmatprep.subr.mxu0 0.0
    %4941 = vmatpush1.msra.mxu0 0.0
    %4942 = vmatprep.subr.mxu0 0.0
    %4943 = vmatpush1.msra.mxu0 0.0
    %4944 = vmatprep.subr.mxu0 0.0
    %4945 = vmatpush1.msra.mxu0 0.0
    %4946 = vmatprep.subr.mxu0 0.0
    %4947 = vmatpush1.msra.mxu0 0.0
    %4948 = vmatprep.subr.mxu0 0.0
    %4949 = vmatpush1.msra.mxu0 0.0
    %4950 = vmatprep.subr.mxu0 0.0
    %4951 = vmatpush1.msra.mxu0 0.0
    %4952 = vmatprep.subr.mxu0 0.0
    %4953 = vmatpush1.msra.mxu0 0.0
    %4954 = vmatprep.subr.mxu0 0.0
    %4955 = vmatpush1.msra.mxu0 0.0
    %4956 = vmatprep.subr.mxu0 0.0
    %4957 = vmatpush1.msra.mxu0 0.0
    %4958 = vmatprep.subr.mxu0 0.0
    %4959 = vmatpush1.msra.mxu0 0.0
    %4960 = vmatprep.subr.mxu0 0.0
    %4961 = vmatpush1.msra.mxu0 0.0
    %4962 = vmatprep.subr.mxu0 0.0
    %4963 = vmatpush1.msra.mxu0 0.0
    %4964 = vmatprep.subr.mxu0 0.0
    %4965 = vmatpush1.msra.mxu0 0.0
    %4966 = vmatprep.subr.mxu0 0.0
    %4967 = vmatpush1.msra.mxu0 0.0
    %4968 = vmatprep.subr.mxu0 0.0
    %4969 = vmatpush1.msra.mxu0 0.0
    %4970 = vmatprep.subr.mxu0 0.0
    %4971 = vmatpush1.msra.mxu0 0.0
    %4972 = vmatprep.subr.mxu0 0.0
    %4973 = vmatpush1.msra.mxu0 0.0
    %4974 = vmatprep.subr.mxu0 0.0
    %4975 = vmatpush1.msra.mxu0 0.0
    %4976 = vmatprep.subr.mxu0 0.0
    %4977 = vmatpush1.msra.mxu0 0.0
    %4978 = vmatprep.subr.mxu0 0.0
    %4979 = vmatpush1.msra.mxu0 0.0
    %4980 = vmatprep.subr.mxu0 0.0
    %4981 = vmatpush1.msra.mxu0 0.0
    %4982 = vmatprep.subr.mxu0 0.0
    %4983 = vmatpush1.msra.mxu0 0.0
    %4984 = vmatprep.subr.mxu0 0.0
    %4985 = vmatpush1.msra.mxu0 0.0
    %4986 = vmatprep.subr.mxu0 0.0
    %4987 = vmatpush1.msra.mxu0 0.0
    %4988 = vmatprep.mubr.f32.mxu0 0.0
    %4989 = vmatmul.mubr.f32.gmra.mrb[0].mxu0 %v4922
    %v4990 = vpop.f32.mrb[0].mxu0
    %v4991 = vadd.f32 0.0, %v4990
    %v4992 = vpop.f32.mrb[0].mxu0
    %4993 = vdwg.mxu0
    %v4995 = vsel %vm630, %v4846, 0
    %4997 = vmatprep.subr.mxu0 0.0
    %4998 = vmatpush1.msra.mxu0 %v4498
    %4999 = vmatprep.subr.mxu0 0.0
    %5000 = vmatpush1.msra.mxu0 0.0
    %5001 = vmatprep.subr.mxu0 0.0
    %5002 = vmatpush1.msra.mxu0 0.0
    %5003 = vmatprep.subr.mxu0 0.0
    %5004 = vmatpush1.msra.mxu0 0.0
    %5005 = vmatprep.subr.mxu0 0.0
    %5006 = vmatpush1.msra.mxu0 0.0
    %5007 = vmatprep.subr.mxu0 0.0
    %5008 = vmatpush1.msra.mxu0 0.0
    %5009 = vmatprep.subr.mxu0 0.0
    %5010 = vmatpush1.msra.mxu0 0.0
    %5011 = vmatprep.subr.mxu0 0.0
    %5012 = vmatpush1.msra.mxu0 0.0
    %5013 = vmatprep.subr.mxu0 0.0
    %5014 = vmatpush1.msra.mxu0 0.0
    %5015 = vmatprep.subr.mxu0 0.0
    %5016 = vmatpush1.msra.mxu0 0.0
    %5017 = vmatprep.subr.mxu0 0.0
    %5018 = vmatpush1.msra.mxu0 0.0
    %5019 = vmatprep.subr.mxu0 0.0
    %5020 = vmatpush1.msra.mxu0 0.0
    %5021 = vmatprep.subr.mxu0 0.0
    %5022 = vmatpush1.msra.mxu0 0.0
    %5023 = vmatprep.subr.mxu0 0.0
    %5024 = vmatpush1.msra.mxu0 0.0
    %5025 = vmatprep.subr.mxu0 0.0
    %5026 = vmatpush1.msra.mxu0 0.0
    %5027 = vmatprep.subr.mxu0 0.0
    %5028 = vmatpush1.msra.mxu0 0.0
    %5029 = vmatprep.subr.mxu0 0.0
    %5030 = vmatpush1.msra.mxu0 0.0
    %5031 = vmatprep.subr.mxu0 0.0
    %5032 = vmatpush1.msra.mxu0 0.0
    %5033 = vmatprep.subr.mxu0 0.0
    %5034 = vmatpush1.msra.mxu0 0.0
    %5035 = vmatprep.subr.mxu0 0.0
    %5036 = vmatpush1.msra.mxu0 0.0
    %5037 = vmatprep.subr.mxu0 0.0
    %5038 = vmatpush1.msra.mxu0 0.0
    %5039 = vmatprep.subr.mxu0 0.0
    %5040 = vmatpush1.msra.mxu0 0.0
    %5041 = vmatprep.subr.mxu0 0.0
    %5042 = vmatpush1.msra.mxu0 0.0
    %5043 = vmatprep.subr.mxu0 0.0
    %5044 = vmatpush1.msra.mxu0 0.0
    %5045 = vmatprep.subr.mxu0 0.0
    %5046 = vmatpush1.msra.mxu0 0.0
    %5047 = vmatprep.subr.mxu0 0.0
    %5048 = vmatpush1.msra.mxu0 0.0
    %5049 = vmatprep.subr.mxu0 0.0
    %5050 = vmatpush1.msra.mxu0 0.0
    %5051 = vmatprep.subr.mxu0 0.0
    %5052 = vmatpush1.msra.mxu0 0.0
    %5053 = vmatprep.subr.mxu0 0.0
    %5054 = vmatpush1.msra.mxu0 0.0
    %5055 = vmatprep.subr.mxu0 0.0
    %5056 = vmatpush1.msra.mxu0 0.0
    %5057 = vmatprep.subr.mxu0 0.0
    %5058 = vmatpush1.msra.mxu0 0.0
    %5059 = vmatprep.subr.mxu0 0.0
    %5060 = vmatpush1.msra.mxu0 0.0
    %5061 = vmatprep.mubr.f32.mxu0 0.0
    %5062 = vmatmul.mubr.f32.gmra.mrb[0].mxu0 %v4995
    %v5063 = vpop.f32.mrb[0].mxu0
    %v5064 = vadd.f32 0.0, %v5063
    %v5065 = vpop.f32.mrb[0].mxu0
    %5066 = vdwg.mxu0
    %v5068 = vsel %vm630, %v4847, 0
    %5070 = vmatprep.subr.mxu0 0.0
    %5071 = vmatpush1.msra.mxu0 %v4499
    %5072 = vmatprep.subr.mxu0 0.0
    %5073 = vmatpush1.msra.mxu0 0.0
    %5074 = vmatprep.subr.mxu0 0.0
    %5075 = vmatpush1.msra.mxu0 0.0
    %5076 = vmatprep.subr.mxu0 0.0
    %5077 = vmatpush1.msra.mxu0 0.0
    %5078 = vmatprep.subr.mxu0 0.0
    %5079 = vmatpush1.msra.mxu0 0.0
    %5080 = vmatprep.subr.mxu0 0.0
    %5081 = vmatpush1.msra.mxu0 0.0
    %5082 = vmatprep.subr.mxu0 0.0
    %5083 = vmatpush1.msra.mxu0 0.0
    %5084 = vmatprep.subr.mxu0 0.0
    %5085 = vmatpush1.msra.mxu0 0.0
    %5086 = vmatprep.subr.mxu0 0.0
    %5087 = vmatpush1.msra.mxu0 0.0
    %5088 = vmatprep.subr.mxu0 0.0
    %5089 = vmatpush1.msra.mxu0 0.0
    %5090 = vmatprep.subr.mxu0 0.0
    %5091 = vmatpush1.msra.mxu0 0.0
    %5092 = vmatprep.subr.mxu0 0.0
    %5093 = vmatpush1.msra.mxu0 0.0
    %5094 = vmatprep.subr.mxu0 0.0
    %5095 = vmatpush1.msra.mxu0 0.0
    %5096 = vmatprep.subr.mxu0 0.0
    %5097 = vmatpush1.msra.mxu0 0.0
    %5098 = vmatprep.subr.mxu0 0.0
    %5099 = vmatpush1.msra.mxu0 0.0
    %5100 = vmatprep.subr.mxu0 0.0
    %5101 = vmatpush1.msra.mxu0 0.0
    %5102 = vmatprep.subr.mxu0 0.0
    %5103 = vmatpush1.msra.mxu0 0.0
    %5104 = vmatprep.subr.mxu0 0.0
    %5105 = vmatpush1.msra.mxu0 0.0
    %5106 = vmatprep.subr.mxu0 0.0
    %5107 = vmatpush1.msra.mxu0 0.0
    %5108 = vmatprep.subr.mxu0 0.0
    %5109 = vmatpush1.msra.mxu0 0.0
    %5110 = vmatprep.subr.mxu0 0.0
    %5111 = vmatpush1.msra.mxu0 0.0
    %5112 = vmatprep.subr.mxu0 0.0
    %5113 = vmatpush1.msra.mxu0 0.0
    %5114 = vmatprep.subr.mxu0 0.0
    %5115 = vmatpush1.msra.mxu0 0.0
    %5116 = vmatprep.subr.mxu0 0.0
    %5117 = vmatpush1.msra.mxu0 0.0
    %5118 = vmatprep.subr.mxu0 0.0
    %5119 = vmatpush1.msra.mxu0 0.0
    %5120 = vmatprep.subr.mxu0 0.0
    %5121 = vmatpush1.msra.mxu0 0.0
    %5122 = vmatprep.subr.mxu0 0.0
    %5123 = vmatpush1.msra.mxu0 0.0
    %5124 = vmatprep.subr.mxu0 0.0
    %5125 = vmatpush1.msra.mxu0 0.0
    %5126 = vmatprep.subr.mxu0 0.0
    %5127 = vmatpush1.msra.mxu0 0.0
    %5128 = vmatprep.subr.mxu0 0.0
    %5129 = vmatpush1.msra.mxu0 0.0
    %5130 = vmatprep.subr.mxu0 0.0
    %5131 = vmatpush1.msra.mxu0 0.0
    %5132 = vmatprep.subr.mxu0 0.0
    %5133 = vmatpush1.msra.mxu0 0.0
    %5134 = vmatprep.mubr.f32.mxu0 0.0
    %5135 = vmatmul.mubr.f32.gmra.mrb[0].mxu0 %v5068
    %v5136 = vpop.f32.mrb[0].mxu0
    %v5137 = vadd.f32 0.0, %v5136
    %v5138 = vpop.f32.mrb[0].mxu0
    %5139 = vdwg.mxu0
    %v5140 = vcombine.low %v4918, %v5064
    %v5141 = vcombine.high %v4918, %v5064
    %v5143 = vunpack.c.l.s4 1983009808
    %v5144 = vunpack.c.0.s8 %v5143
    %v5145 = vlaneseq
    %v5146 = vshrl.u32 %v5145, 7
    %v5147 = vsub.s32 %v5144, %v5146
    %v5148 = vrot.slane %v5140, %v5147
    %v5150 = vunpack.c.l.s4 1983009808
    %v5151 = vunpack.c.0.s8 %v5150
    %v5152 = vlaneseq
    %v5153 = vshrl.u32 %v5152, 7
    %v5154 = vsub.s32 %v5151, %v5153
    %v5155 = vrot.slane %v5141, %v5154
    %v5156 = vcombine.low %v4991, %v5137
    %v5157 = vcombine.high %v4991, %v5137
    %v5159 = vunpack.c.l.s4 1983009808
    %v5160 = vunpack.c.0.s8 %v5159
    %v5161 = vlaneseq
    %v5162 = vshrl.u32 %v5161, 7
    %v5163 = vsub.s32 %v5160, %v5162
    %v5164 = vrot.slane %v5156, %v5163
    %v5166 = vunpack.c.l.s4 1983009808
    %v5167 = vunpack.c.0.s8 %v5166
    %v5168 = vlaneseq
    %v5169 = vshrl.u32 %v5168, 7
    %v5170 = vsub.s32 %v5167, %v5169
    %v5171 = vrot.slane %v5157, %v5170
    %v5172 = vcombine.low %v5148, %v5164
    %v5173 = vcombine.high %v5148, %v5164
    %v5175 = vunpack.c.l.s4 1934713408
    %v5176 = vunpack.c.0.s8 %v5175
    %v5177 = vlaneseq
    %v5178 = vshrl.u32 %v5177, 7
    %v5179 = vsub.s32 %v5176, %v5178
    %v5180 = vrot.slane %v5172, %v5179
    %v5182 = vunpack.c.l.s4 1934713408
    %v5183 = vunpack.c.0.s8 %v5182
    %v5184 = vlaneseq
    %v5185 = vshrl.u32 %v5184, 7
    %v5186 = vsub.s32 %v5183, %v5185
    %v5187 = vrot.slane %v5173, %v5186
    %v5188 = vcombine.low %v5155, %v5171
    %v5189 = vcombine.high %v5155, %v5171
    %v5191 = vunpack.c.l.s4 1934713408
    %v5192 = vunpack.c.0.s8 %v5191
    %v5193 = vlaneseq
    %v5194 = vshrl.u32 %v5193, 7
    %v5195 = vsub.s32 %v5192, %v5194
    %v5196 = vrot.slane %v5188, %v5195
    %v5198 = vunpack.c.l.s4 1934713408
    %v5199 = vunpack.c.0.s8 %v5198
    %v5200 = vlaneseq
    %v5201 = vshrl.u32 %v5200, 7
    %v5202 = vsub.s32 %v5199, %v5201
    %v5203 = vrot.slane %v5189, %v5202
    %v5204 = vcombine.high %v5180, 0.0
    %v5205 = vcombine.high %v5187, 0.0
    %v5206 = vcombine.high %v5196, 0.0
    %v5207 = vcombine.high %v5203, 0.0
    %v5208 = vcombine.low %v5180, %v5187
    %v5210 = vunpack.c.l.s4 1983009808
    %v5211 = vunpack.c.0.s8 %v5210
    %v5212 = vlaneseq
    %v5213 = vshrl.u32 %v5212, 7
    %v5214 = vsub.s32 %v5211, %v5213
    %v5215 = vrot.slane %v5208, %v5214
    %v5216 = vcombine.low %v5204, %v5205
    %v5218 = vunpack.c.l.s4 1983009808
    %v5219 = vunpack.c.0.s8 %v5218
    %v5220 = vlaneseq
    %v5221 = vshrl.u32 %v5220, 7
    %v5222 = vsub.s32 %v5219, %v5221
    %v5223 = vrot.slane %v5216, %v5222
    %v5224 = vcombine.low %v5196, %v5203
    %v5226 = vunpack.c.l.s4 1983009808
    %v5227 = vunpack.c.0.s8 %v5226
    %v5228 = vlaneseq
    %v5229 = vshrl.u32 %v5228, 7
    %v5230 = vsub.s32 %v5227, %v5229
    %v5231 = vrot.slane %v5224, %v5230
    %v5232 = vcombine.low %v5206, %v5207
    %v5234 = vunpack.c.l.s4 1983009808
    %v5235 = vunpack.c.0.s8 %v5234
    %v5236 = vlaneseq
    %v5237 = vshrl.u32 %v5236, 7
    %v5238 = vsub.s32 %v5235, %v5237
    %v5239 = vrot.slane %v5232, %v5238
    %v5240 = vcombine.low %v5215, %v5223
    %v5241 = vcombine.high %v5215, %v5223
    %v5243 = vunpack.c.l.s4 1934713408
    %v5244 = vunpack.c.0.s8 %v5243
    %v5245 = vlaneseq
    %v5246 = vshrl.u32 %v5245, 7
    %v5247 = vsub.s32 %v5244, %v5246
    %v5248 = vrot.slane %v5240, %v5247
    %v5250 = vunpack.c.l.s4 1934713408
    %v5251 = vunpack.c.0.s8 %v5250
    %v5252 = vlaneseq
    %v5253 = vshrl.u32 %v5252, 7
    %v5254 = vsub.s32 %v5251, %v5253
    %v5255 = vrot.slane %v5241, %v5254
    %v5256 = vcombine.low %v5231, %v5239
    %v5257 = vcombine.high %v5231, %v5239
    %v5259 = vunpack.c.l.s4 1934713408
    %v5260 = vunpack.c.0.s8 %v5259
    %v5261 = vlaneseq
    %v5262 = vshrl.u32 %v5261, 7
    %v5263 = vsub.s32 %v5260, %v5262
    %v5264 = vrot.slane %v5256, %v5263
    %v5266 = vunpack.c.l.s4 1934713408
    %v5267 = vunpack.c.0.s8 %v5266
    %v5268 = vlaneseq
    %v5269 = vshrl.u32 %v5268, 7
    %v5270 = vsub.s32 %v5267, %v5269
    %v5271 = vrot.slane %v5257, %v5270
    %v5272 = vcombine.low %v5248, %v5264
    %v5273 = vcombine.high %v5248, %v5264
    %v5274 = vcombine.low %v5255, %v5271
    %v5275 = vcombine.high %v5255, %v5271
    %5277 = vrot.lane.b32.xlu0 %v5273, 8
    %v5278 = vpop.permute.xlu0 %5277
    %5281 = vrot.lane.b32.xlu0 %v5274, 16
    %v5282 = vpop.permute.xlu0 %5281
    %5285 = vrot.lane.b32.xlu0 %v5275, 24
    %v5286 = vpop.permute.xlu0 %5285
    %v5288 = vsel %vm630, %v5272, %v5278
    %v5289 = vsel %vm1420, %v5288, %v5282
    %v5290 = vsel %vm1422, %v5289, %v5286
    %v5292 = vsel %vm106, %v4057, 0
    %v5295 = vsel %vm106, %v5290, 0
    %5297 = vmatprep.subr.mxu0 0.0
    %5298 = vmatpush1.msra.mxu0 %v93
    %5299 = vmatprep.subr.mxu0 0.0
    %5300 = vmatpush1.msra.mxu0 %v94
    %5301 = vmatprep.subr.mxu0 0.0
    %5302 = vmatpush1.msra.mxu0 %v95
    %5303 = vmatprep.subr.mxu0 0.0
    %5304 = vmatpush1.msra.mxu0 %v96
    %5305 = vmatprep.subr.mxu0 0.0
    %5306 = vmatpush1.msra.mxu0 0.0
    %5307 = vmatprep.subr.mxu0 0.0
    %5308 = vmatpush1.msra.mxu0 0.0
    %5309 = vmatprep.subr.mxu0 0.0
    %5310 = vmatpush1.msra.mxu0 0.0
    %5311 = vmatprep.subr.mxu0 0.0
    %5312 = vmatpush1.msra.mxu0 0.0
    %5313 = vmatprep.subr.mxu0 0.0
    %5314 = vmatpush1.msra.mxu0 0.0
    %5315 = vmatprep.subr.mxu0 0.0
    %5316 = vmatpush1.msra.mxu0 0.0
    %5317 = vmatprep.subr.mxu0 0.0
    %5318 = vmatpush1.msra.mxu0 0.0
    %5319 = vmatprep.subr.mxu0 0.0
    %5320 = vmatpush1.msra.mxu0 0.0
    %5321 = vmatprep.subr.mxu0 0.0
    %5322 = vmatpush1.msra.mxu0 0.0
    %5323 = vmatprep.subr.mxu0 0.0
    %5324 = vmatpush1.msra.mxu0 0.0
    %5325 = vmatprep.subr.mxu0 0.0
    %5326 = vmatpush1.msra.mxu0 0.0
    %5327 = vmatprep.subr.mxu0 0.0
    %5328 = vmatpush1.msra.mxu0 0.0
    %5329 = vmatprep.subr.mxu0 0.0
    %5330 = vmatpush1.msra.mxu0 0.0
    %5331 = vmatprep.subr.mxu0 0.0
    %5332 = vmatpush1.msra.mxu0 0.0
    %5333 = vmatprep.subr.mxu0 0.0
    %5334 = vmatpush1.msra.mxu0 0.0
    %5335 = vmatprep.subr.mxu0 0.0
    %5336 = vmatpush1.msra.mxu0 0.0
    %5337 = vmatprep.subr.mxu0 0.0
    %5338 = vmatpush1.msra.mxu0 0.0
    %5339 = vmatprep.subr.mxu0 0.0
    %5340 = vmatpush1.msra.mxu0 0.0
    %5341 = vmatprep.subr.mxu0 0.0
    %5342 = vmatpush1.msra.mxu0 0.0
    %5343 = vmatprep.subr.mxu0 0.0
    %5344 = vmatpush1.msra.mxu0 0.0
    %5345 = vmatprep.subr.mxu0 0.0
    %5346 = vmatpush1.msra.mxu0 0.0
    %5347 = vmatprep.subr.mxu0 0.0
    %5348 = vmatpush1.msra.mxu0 0.0
    %5349 = vmatprep.subr.mxu0 0.0
    %5350 = vmatpush1.msra.mxu0 0.0
    %5351 = vmatprep.subr.mxu0 0.0
    %5352 = vmatpush1.msra.mxu0 0.0
    %5353 = vmatprep.subr.mxu0 0.0
    %5354 = vmatpush1.msra.mxu0 0.0
    %5355 = vmatprep.subr.mxu0 0.0
    %5356 = vmatpush1.msra.mxu0 0.0
    %5357 = vmatprep.subr.mxu0 0.0
    %5358 = vmatpush1.msra.mxu0 0.0
    %5359 = vmatprep.subr.mxu0 0.0
    %5360 = vmatpush1.msra.mxu0 0.0
    %5361 = vmatprep.mubr.f32.mxu0 0.0
    %5362 = vmatmul.mubr.f32.gmra.mrb[0].mxu0 %v5292
    %v5363 = vpop.f32.mrb[0].mxu0
    %v5364 = vadd.f32 %v2661, %v5363
    %v5365 = vpop.f32.mrb[0].mxu0
    %5366 = vmatprep.mubr.f32.mxu0 0.0
    %5367 = vmatmul.mubr.f32.gmra.mrb[0].mxu0 %v5295
    %v5368 = vpop.f32.mrb[0].mxu0
    %v5369 = vadd.f32 %v2661, %v5368
    %v5370 = vpop.f32.mrb[0].mxu0
    %5371 = vdwg.mxu0
    %v5372 = vadd.f32 %v98, %v5364
    %v5373 = vadd.f32 %v99, %v5369
    %v5374 = vsel %vm106, %v5372, 0.0
    %5375 = vadd.xlane.f32.xlu0 %v5374
    %v5376 = vpop.xlane.xlu0 %5375
    %v5377 = vsel %vm106, %v5373, 0.0
    %5378 = vadd.xlane.f32.xlu0 %v5377
    %v5379 = vpop.xlane.xlu0 %5378
    %v5380 = vrcp.pop 32.0
    %v5381 = vmul.f32 %v5376, %v5380
    %v5382 = vmul.f32 %v5379, %v5380
    %v5383 = vsub.f32 %v5372, %v5381
    %v5384 = vsub.f32 %v5373, %v5382
    %v5385 = vmul.f32 %v5383, %v5383
    %v5386 = vmul.f32 %v5384, %v5384
    %v5387 = vsel %vm106, %v5385, 0.0
    %5388 = vadd.xlane.f32.xlu0 %v5387
    %v5389 = vpop.xlane.xlu0 %5388
    %v5390 = vsel %vm106, %v5386, 0.0
    %5391 = vadd.xlane.f32.xlu0 %v5390
    %v5392 = vpop.xlane.xlu0 %5391
    %v5393 = vmul.f32 %v5389, %v5380
    %v5394 = vmul.f32 %v5392, %v5380
    %v5395 = vadd.f32 %v5393, 1e-05
    %v5396 = vadd.f32 %v5394, 1e-05
    %v5397 = vrsqrt.pop %v5395
    %v5398 = vrsqrt.pop %v5396
    %v5399 = vmul.f32 %v5383, %v5397
    %v5400 = vmul.f32 %v5384, %v5398
    %v5401 = vld [vmem:[#allocation5] sm:$0x1]
    %v5403 = vlaneseq
    %v5404 = vshrl.u32 %v5403, 7
    %v5405 = vsub.s32 0, %v5404
    %v5406 = vrot.slane %v5401, %v5405
    %v5408 = vmul.f32 %v5399, %v5406
    %v5409 = vmul.f32 %v5400, %v5406
    %v5410 = vld [vmem:[#allocation7] sm:$0x1]
    %v5412 = vlaneseq
    %v5413 = vshrl.u32 %v5412, 7
    %v5414 = vsub.s32 0, %v5413
    %v5415 = vrot.slane %v5410, %v5414
    %v5417 = vadd.f32 %v5408, %v5415
    %v5418 = vadd.f32 %v5409, %v5415
    %v5419 = vld [vmem:[%s7] sm:$0xff]
    %v5420 = vld [vmem:[%s7 + $0x8] sm:$0xff]
    %v5421 = vld [vmem:[%s7 + $0x10] sm:$0xff]
    %v5422 = vld [vmem:[%s7 + $0x18] sm:$0xff]
    %v5423 = vld [vmem:[#allocation8] sm:$0x1]
    %v5425 = vlaneseq
    %v5426 = vshrl.u32 %v5425, 7
    %v5427 = vsub.s32 0, %v5426
    %v5428 = vrot.slane %v5423, %v5427
    %v5431 = vsel %vm106, %v5417, 0
    %v5434 = vsel %vm106, %v5418, 0
    %5436 = vmatprep.subr.mxu0 0.0
    %5437 = vmatpush1.msra.mxu0 %v5419
    %5438 = vmatprep.subr.mxu0 0.0
    %5439 = vmatpush1.msra.mxu0 %v5420
    %5440 = vmatprep.subr.mxu0 0.0
    %5441 = vmatpush1.msra.mxu0 %v5421
    %5442 = vmatprep.subr.mxu0 0.0
    %5443 = vmatpush1.msra.mxu0 %v5422
    %5444 = vmatprep.subr.mxu0 0.0
    %5445 = vmatpush1.msra.mxu0 0.0
    %5446 = vmatprep.subr.mxu0 0.0
    %5447 = vmatpush1.msra.mxu0 0.0
    %5448 = vmatprep.subr.mxu0 0.0
    %5449 = vmatpush1.msra.mxu0 0.0
    %5450 = vmatprep.subr.mxu0 0.0
    %5451 = vmatpush1.msra.mxu0 0.0
    %5452 = vmatprep.subr.mxu0 0.0
    %5453 = vmatpush1.msra.mxu0 0.0
    %5454 = vmatprep.subr.mxu0 0.0
    %5455 = vmatpush1.msra.mxu0 0.0
    %5456 = vmatprep.subr.mxu0 0.0
    %5457 = vmatpush1.msra.mxu0 0.0
    %5458 = vmatprep.subr.mxu0 0.0
    %5459 = vmatpush1.msra.mxu0 0.0
    %5460 = vmatprep.subr.mxu0 0.0
    %5461 = vmatpush1.msra.mxu0 0.0
    %5462 = vmatprep.subr.mxu0 0.0
    %5463 = vmatpush1.msra.mxu0 0.0
    %5464 = vmatprep.subr.mxu0 0.0
    %5465 = vmatpush1.msra.mxu0 0.0
    %5466 = vmatprep.subr.mxu0 0.0
    %5467 = vmatpush1.msra.mxu0 0.0
    %5468 = vmatprep.subr.mxu0 0.0
    %5469 = vmatpush1.msra.mxu0 0.0
    %5470 = vmatprep.subr.mxu0 0.0
    %5471 = vmatpush1.msra.mxu0 0.0
    %5472 = vmatprep.subr.mxu0 0.0
    %5473 = vmatpush1.msra.mxu0 0.0
    %5474 = vmatprep.subr.mxu0 0.0
    %5475 = vmatpush1.msra.mxu0 0.0
    %5476 = vmatprep.subr.mxu0 0.0
    %5477 = vmatpush1.msra.mxu0 0.0
    %5478 = vmatprep.subr.mxu0 0.0
    %5479 = vmatpush1.msra.mxu0 0.0
    %5480 = vmatprep.subr.mxu0 0.0
    %5481 = vmatpush1.msra.mxu0 0.0
    %5482 = vmatprep.subr.mxu0 0.0
    %5483 = vmatpush1.msra.mxu0 0.0
    %5484 = vmatprep.subr.mxu0 0.0
    %5485 = vmatpush1.msra.mxu0 0.0
    %5486 = vmatprep.subr.mxu0 0.0
    %5487 = vmatpush1.msra.mxu0 0.0
    %5488 = vmatprep.subr.mxu0 0.0
    %5489 = vmatpush1.msra.mxu0 0.0
    %5490 = vmatprep.subr.mxu0 0.0
    %5491 = vmatpush1.msra.mxu0 0.0
    %5492 = vmatprep.subr.mxu0 0.0
    %5493 = vmatpush1.msra.mxu0 0.0
    %5494 = vmatprep.subr.mxu0 0.0
    %5495 = vmatpush1.msra.mxu0 0.0
    %5496 = vmatprep.subr.mxu0 0.0
    %5497 = vmatpush1.msra.mxu0 0.0
    %5498 = vmatprep.subr.mxu0 0.0
    %5499 = vmatpush1.msra.mxu0 0.0
    %5500 = vmatprep.mubr.f32.mxu0 0.0
    %5501 = vmatmul.mubr.f32.gmra.mrb[0].mxu0 %v5431
    %v5502 = vpop.f32.mrb[0].mxu0
    %v5503 = vadd.f32 %v5428, %v5502
    %v5504 = vpop.f32.mrb[0].mxu0
    %5505 = vmatprep.mubr.f32.mxu0 0.0
    %5506 = vmatmul.mubr.f32.gmra.mrb[0].mxu0 %v5434
    %v5507 = vpop.f32.mrb[0].mxu0
    %v5508 = vadd.f32 %v5428, %v5507
    %v5509 = vpop.f32.mrb[0].mxu0
    %5510 = vdwg.mxu0
    %v5511 = vmax.f32 %v5503, 0.0
    %v5512 = vmax.f32 %v5508, 0.0
    %v5513 = vld [vmem:[%s9] sm:$0xff]
    %v5514 = vld [vmem:[%s9 + $0x8] sm:$0xff]
    %v5515 = vld [vmem:[%s9 + $0x10] sm:$0xff]
    %v5516 = vld [vmem:[%s9 + $0x18] sm:$0xff]
    %v5517 = vld [vmem:[%s9 + $0x20] sm:$0xff]
    %v5518 = vld [vmem:[%s9 + $0x28] sm:$0xff]
    %v5519 = vld [vmem:[%s9 + $0x30] sm:$0xff]
    %v5520 = vld [vmem:[%s9 + $0x38] sm:$0xff]
    %v5521 = vld [vmem:[%s10] sm:$0x1]
    %v5523 = vlaneseq
    %v5524 = vshrl.u32 %v5523, 7
    %v5525 = vsub.s32 0, %v5524
    %v5526 = vrot.slane %v5521, %v5525
    %vm5528 = vcmask 523264
    %v5530 = vsel %vm5528, %v5511, 0
    %v5533 = vsel %vm5528, %v5512, 0
    %5535 = vmatprep.subr.mxu0 0.0
    %5536 = vmatpush1.msra.mxu0 %v5513
    %5537 = vmatprep.subr.mxu0 0.0
    %5538 = vmatpush1.msra.mxu0 %v5514
    %5539 = vmatprep.subr.mxu0 0.0
    %5540 = vmatpush1.msra.mxu0 %v5515
    %5541 = vmatprep.subr.mxu0 0.0
    %5542 = vmatpush1.msra.mxu0 %v5516
    %5543 = vmatprep.subr.mxu0 0.0
    %5544 = vmatpush1.msra.mxu0 %v5517
    %5545 = vmatprep.subr.mxu0 0.0
    %5546 = vmatpush1.msra.mxu0 %v5518
    %5547 = vmatprep.subr.mxu0 0.0
    %5548 = vmatpush1.msra.mxu0 %v5519
    %5549 = vmatprep.subr.mxu0 0.0
    %5550 = vmatpush1.msra.mxu0 %v5520
    %5551 = vmatprep.subr.mxu0 0.0
    %5552 = vmatpush1.msra.mxu0 0.0
    %5553 = vmatprep.subr.mxu0 0.0
    %5554 = vmatpush1.msra.mxu0 0.0
    %5555 = vmatprep.subr.mxu0 0.0
    %5556 = vmatpush1.msra.mxu0 0.0
    %5557 = vmatprep.subr.mxu0 0.0
    %5558 = vmatpush1.msra.mxu0 0.0
    %5559 = vmatprep.subr.mxu0 0.0
    %5560 = vmatpush1.msra.mxu0 0.0
    %5561 = vmatprep.subr.mxu0 0.0
    %5562 = vmatpush1.msra.mxu0 0.0
    %5563 = vmatprep.subr.mxu0 0.0
    %5564 = vmatpush1.msra.mxu0 0.0
    %5565 = vmatprep.subr.mxu0 0.0
    %5566 = vmatpush1.msra.mxu0 0.0
    %5567 = vmatprep.subr.mxu0 0.0
    %5568 = vmatpush1.msra.mxu0 0.0
    %5569 = vmatprep.subr.mxu0 0.0
    %5570 = vmatpush1.msra.mxu0 0.0
    %5571 = vmatprep.subr.mxu0 0.0
    %5572 = vmatpush1.msra.mxu0 0.0
    %5573 = vmatprep.subr.mxu0 0.0
    %5574 = vmatpush1.msra.mxu0 0.0
    %5575 = vmatprep.subr.mxu0 0.0
    %5576 = vmatpush1.msra.mxu0 0.0
    %5577 = vmatprep.subr.mxu0 0.0
    %5578 = vmatpush1.msra.mxu0 0.0
    %5579 = vmatprep.subr.mxu0 0.0
    %5580 = vmatpush1.msra.mxu0 0.0
    %5581 = vmatprep.subr.mxu0 0.0
    %5582 = vmatpush1.msra.mxu0 0.0
    %5583 = vmatprep.subr.mxu0 0.0
    %5584 = vmatpush1.msra.mxu0 0.0
    %5585 = vmatprep.subr.mxu0 0.0
    %5586 = vmatpush1.msra.mxu0 0.0
    %5587 = vmatprep.subr.mxu0 0.0
    %5588 = vmatpush1.msra.mxu0 0.0
    %5589 = vmatprep.subr.mxu0 0.0
    %5590 = vmatpush1.msra.mxu0 0.0
    %5591 = vmatprep.subr.mxu0 0.0
    %5592 = vmatpush1.msra.mxu0 0.0
    %5593 = vmatprep.subr.mxu0 0.0
    %5594 = vmatpush1.msra.mxu0 0.0
    %5595 = vmatprep.subr.mxu0 0.0
    %5596 = vmatpush1.msra.mxu0 0.0
    %5597 = vmatprep.subr.mxu0 0.0
    %5598 = vmatpush1.msra.mxu0 0.0
    %5599 = vmatprep.mubr.f32.mxu0 0.0
    %5600 = vmatmul.mubr.f32.gmra.mrb[0].mxu0 %v5530
    %v5601 = vpop.f32.mrb[0].mxu0
    %v5602 = vadd.f32 %v5526, %v5601
    %v5603 = vpop.f32.mrb[0].mxu0
    %5604 = vmatprep.mubr.f32.mxu0 0.0
    %5605 = vmatmul.mubr.f32.gmra.mrb[0].mxu0 %v5533
    %v5606 = vpop.f32.mrb[0].mxu0
    %v5607 = vadd.f32 %v5526, %v5606
    %v5608 = vpop.f32.mrb[0].mxu0
    %5609 = vdwg.mxu0
    %v5610 = vadd.f32 %v5372, %v5602
    %v5611 = vadd.f32 %v5373, %v5607
    %5612 = vst.msk [vmem:[#allocation10] sm:$0xff] %vm106, %v5610
    %5613 = vst.msk [vmem:[#allocation10 + $0x8] sm:$0xff] %vm106, %v5611
    // Predicated region
    $region62: #{tpu_custom_call.1} parent=1 // pred_check
      _
    $region63: #{tpu_custom_call.1} parent=1 // pred_check_branch
      %5615 = sbr.rel (0) target = $region65
    $region64: #{tpu_custom_call.1} parent=1 // pred_region
      %s5617 = ssub.s32 256, 256
      %5618 = vsyncadd [#allocation4], %s5617
      %s5619 = sshll.u32 [#allocation10], 4
      %s5620 = int_to_ptr.vmem [resolvable:$true] %s5619
      %5625 = dma.vmem_to_hbm [thread:$0]  %s5620, 256, %s11, [#allocation4], 128, 128, 8
    $region65: #{tpu_custom_call.1} parent=1 // pred_fallthru
      _
    // Predicated region
    $region66: #{tpu_custom_call.1} parent=1 // pred_check
      _
    $region67: #{tpu_custom_call.1} parent=1 // pred_check_branch
      %5627 = sbr.rel (0) target = $region69
    $region68: #{tpu_custom_call.1} parent=1 // pred_region
      %5628 = dma.done [#allocation4], 256
    $region69: #{tpu_custom_call.1} parent=1 // pred_fallthru
      _
    %5629 = vsyncpa [#allocation3], 1
    %5630 = vsyncpa [#allocation6], 1
    %5631 = vsyncpa [#allocation9], 1
    %5632 = vsyncpa [#allocation4], 1

</llo_original>
